<compile_context>
chip_gen: v6e
topology: v6e:2x2x1
jax: 0.10.0
libtpu: 0.0.40
codegen_flags: <defaults>
</compile_context>

<pallas_src>
import math

import jax
import jax.numpy as jnp
from jax.experimental import pallas as pl
from jax.experimental.pallas import tpu as pltpu


def decoder_block_forward(x, encoder_output, src_mask, tgt_mask, params, num_heads):
    B, S, D = x.shape
    S_kv = encoder_output.shape[1]
    d_k = D // num_heads
    d_ff = params["ffn"]["w1"].shape[0]
    eps = 1e-6
    scale = 1.0 / math.sqrt(d_k)

    # ---- host-side parameter packing (bf16 matmul operands, grid-resident) ----
    def pack_attn(p):
        # PyTorch Linear: y = x @ W.T + b  (W is (out, in)) -> pre-transpose to (in, out).
        # Fold the 1/sqrt(d_k) attention scale into the Q projection weight AND bias.
        w = jnp.stack([p["wq"].T * scale, p["wk"].T,
                       p["wv"].T, p["wo"].T]).astype(jnp.bfloat16)
        b = jnp.stack([p["bq"] * scale, p["bk"],
                       p["bv"], p["bo"]]).astype(jnp.float32)[:, None, :]
        return w, b

    w_sa, b_sa = pack_attn(params["self_attn"])
    w_ca, b_ca = pack_attn(params["cross_attn"])
    attn_w = jnp.concatenate([w_sa, w_ca], axis=0)          # (8, D, D)   bf16
    attn_b = jnp.concatenate([b_sa, b_ca], axis=0)          # (8, 1, D)   f32

    ffn_w1 = params["ffn"]["w1"].T.astype(jnp.bfloat16)     # (D, d_ff)   bf16
    ffn_b1 = params["ffn"]["b1"].astype(jnp.float32)[None, :]   # (1, d_ff) f32
    ffn_w2 = params["ffn"]["w2"].T.astype(jnp.bfloat16)     # (d_ff, D)   bf16
    ffn_b2 = params["ffn"]["b2"].astype(jnp.float32)[None, :]   # (1, D)    f32

    ln_list = []
    for a, b in params["ln"]:
        ln_list.extend([a, b])
    ln_p = jnp.stack(ln_list).astype(jnp.float32)[:, None, :]   # (6, 1, D) f32

    # Compact keep vectors instead of (B,S,S)-sized masks:
    #   tgt: causal structure is rebuilt in-kernel (row >= col); only the per-key
    #        padding component (last causal row) is streamed.
    #   src: per-key padding keep vector.
    tgt_full = (jnp.broadcast_to(tgt_mask, (B, 1, S, S)) != 0)[:, 0]
    tgt_keep = tgt_full[:, S - 1, :].astype(jnp.int32)[:, None, :]       # (B, 1, S)
    src_full = (jnp.broadcast_to(src_mask, (B, 1, S, S_kv)) != 0)[:, 0]
    src_keep = src_full[:, 0, :].astype(jnp.int32)[:, None, :]           # (B, 1, S_kv)

    enc_bf = encoder_output.astype(jnp.bfloat16)             # streamed matmul operand

    def kernel(x_ref, enc_ref, tgtk_ref, srck_ref,
               attn_w_ref, attn_b_ref,
               w1_ref, b1_ref, w2_ref, b2_ref,
               ln_ref, o_ref, ctx_scr):
        f32 = jnp.float32
        bf16 = jnp.bfloat16
        neg = jnp.float32(-1e9)
        zero = jnp.float32(0.0)

        def layer_norm(v, idx):
            # torch.var default is unbiased -> divide by (D - 1).
            mean = jnp.mean(v, axis=-1, keepdims=True)
            c = v - mean
            var = jnp.sum(c * c, axis=-1, keepdims=True) * (1.0 / (D - 1))
            inv = jax.lax.rsqrt(var + eps)
            return ln_ref[2 * idx] * (c * inv) + ln_ref[2 * idx + 1]

        def attention(xq_bf, xkv_bf, bias, base):
            # Full-width fused projections: one (Sq,D)x(D,D) matmul per Q/K/V/O.
            wq = attn_w_ref[base + 0]
            wk = attn_w_ref[base + 1]
            wv = attn_w_ref[base + 2]
            wo = attn_w_ref[base + 3]
            # Single full-width bf16 cast per tensor; head loop only slices bf16.
            q_all = (jnp.dot(xq_bf, wq, preferred_element_type=f32)
                     + attn_b_ref[base + 0]).astype(bf16)
            k_all = (jnp.dot(xkv_bf, wk, preferred_element_type=f32)
                     + attn_b_ref[base + 1]).astype(bf16)
            v_all = (jnp.dot(xkv_bf, wv, preferred_element_type=f32)
                     + attn_b_ref[base + 2]).astype(bf16)

            for h in range(num_heads):                        # static unroll over heads
                lo = h * d_k
                qh = q_all[:, lo:lo + d_k]
                kh = k_all[:, lo:lo + d_k]
                vh = v_all[:, lo:lo + d_k]
                # contract d_k of both operands: no explicit transpose of K.
                # Scale already folded into Q; mask applied as a single additive bias.
                s = jax.lax.dot_general(qh, kh, (((1,), (1,)), ((), ())),
                                        preferred_element_type=f32) + bias
                m = jnp.max(s, axis=-1, keepdims=True)
                p = jnp.exp(s - m)
                denom = jnp.sum(p, axis=-1, keepdims=True)    # >= 1 (max-subtracted)
                # TODO(synk): attention-prob dropout = eval-mode identity.
                ctx_h = jnp.dot(p.astype(bf16), vh, preferred_element_type=f32)
                # Deferred normalization: scale the (S,d_k) context, not (S,S_kv) probs.
                ctx_h = ctx_h * pl.reciprocal(denom, approx=True)
                ctx_scr[:, lo:lo + d_k] = ctx_h.astype(bf16)
            # One full-D O-projection on the MXU (no concatenate / lane shuffle).
            return jnp.dot(ctx_scr[...], wo, preferred_element_type=f32) + attn_b_ref[base + 3]

        # Additive mask biases, built once per grid step (hoisted out of head loops).
        row = jax.lax.broadcasted_iota(jnp.int32, (S, S), 0)
        col = jax.lax.broadcasted_iota(jnp.int32, (S, S), 1)
        tgt_keep_b = jnp.logical_and(row >= col, tgtk_ref[...] != 0)      # (S, S)
        tgt_bias = jnp.where(tgt_keep_b, zero, neg)                       # (S, S) f32
        src_bias = jnp.where(srck_ref[...] != 0, zero, neg)               # (1, S_kv) f32

        x_res = x_ref[...]                                    # (S, D) f32 residual stream
        enc = enc_ref[...]                                    # (S_kv, D) bf16

        # 1) pre-norm self-attention + residual
        xn = layer_norm(x_res, 0).astype(bf16)
        x_res = x_res + attention(xn, xn, tgt_bias, 0)

        # 2) pre-norm cross-attention + residual
        xn = layer_norm(x_res, 1).astype(bf16)
        x_res = x_res + attention(xn, enc, src_bias, 4)

        # 3) pre-norm feed-forward + residual
        xn = layer_norm(x_res, 2).astype(bf16)
        hdn = jnp.dot(xn, w1_ref[...], preferred_element_type=f32) + b1_ref[...]
        hdn = jnp.maximum(hdn, 0.0).astype(bf16)
        x_res = x_res + (jnp.dot(hdn, w2_ref[...], preferred_element_type=f32)
                         + b2_ref[...])

        o_ref[...] = x_res.astype(o_ref.dtype)

    # ---- VMEM budget & cost estimate (sized from actual shapes) ----
    weight_bytes = (attn_w.size * 2 + attn_b.size * 4
                    + ffn_w1.size * 2 + ffn_b1.size * 4
                    + ffn_w2.size * 2 + ffn_b2.size * 4 + ln_p.size * 4)
    act_bytes = S * D * 4 + S_kv * D * 2 + (S + S_kv) * 4 + S * D * 4
    inter_bytes = 2 * S * max(S, S_kv) * 4 + S * d_ff * 4 + S * D * 2
    vmem_limit = int(min(64 * 1024 * 1024,
                         max(16 * 1024 * 1024,
                             weight_bytes + 2 * act_bytes + inter_bytes + (2 << 20))))

    flops = int(B * (2 * D * D * (4 * S + 2 * S + 2 * S_kv)   # QKVO projections
                     + 4 * S * S * D                          # self-attn scores + PV
                     + 4 * S * S_kv * D                       # cross-attn scores + PV
                     + 4 * S * D * d_ff))                     # FFN
    transcendentals = int(B * (S * S + S * S_kv + 3 * S))
    bytes_accessed = int(2 * x.size * 4 + enc_bf.size * 2
                         + (tgt_keep.size + src_keep.size) * 4 + weight_bytes)

    return pl.pallas_call(
        kernel,
        out_shape=jax.ShapeDtypeStruct((B, S, D), x.dtype),
        grid_spec=pltpu.PrefetchScalarGridSpec(
            num_scalar_prefetch=0,
            grid=(B,),
            in_specs=[
                pl.BlockSpec((None, S, D), lambda b: (b, 0, 0)),       # x (f32)
                pl.BlockSpec((None, S_kv, D), lambda b: (b, 0, 0)),    # encoder out (bf16)
                pl.BlockSpec((None, 1, S), lambda b: (b, 0, 0)),       # tgt keep vector
                pl.BlockSpec((None, 1, S_kv), lambda b: (b, 0, 0)),    # src keep vector
                pl.BlockSpec((8, D, D), lambda b: (0, 0, 0)),          # attn weights (resident)
                pl.BlockSpec((8, 1, D), lambda b: (0, 0, 0)),          # attn biases (resident)
                pl.BlockSpec((D, d_ff), lambda b: (0, 0)),             # ffn w1
                pl.BlockSpec((1, d_ff), lambda b: (0, 0)),             # ffn b1
                pl.BlockSpec((d_ff, D), lambda b: (0, 0)),             # ffn w2
                pl.BlockSpec((1, D), lambda b: (0, 0)),                # ffn b2
                pl.BlockSpec((6, 1, D), lambda b: (0, 0, 0)),          # layernorm params
            ],
            out_specs=pl.BlockSpec((None, S, D), lambda b: (b, 0, 0)),
            scratch_shapes=[pltpu.VMEM((S, D), jnp.bfloat16)],         # per-head ctx slab
        ),
        compiler_params=pltpu.CompilerParams(
            dimension_semantics=("parallel",),
            vmem_limit_bytes=vmem_limit),
        cost_estimate=pl.CostEstimate(flops=flops,
                                      transcendentals=transcendentals,
                                      bytes_accessed=bytes_accessed),
    )(x, enc_bf, tgt_keep, src_keep, attn_w, attn_b,
      ffn_w1, ffn_b1, ffn_w2, ffn_b2, ln_p)


# ---------------------------- pure-JAX f32 reference ----------------------------

def _layer_norm_ref(x, alpha, bias, eps=1e-6):
    mean = jnp.mean(x, axis=-1, keepdims=True)
    var = jnp.var(x, axis=-1, keepdims=True, ddof=1)    # torch.var (unbiased)
    return alpha * (x - mean) / jnp.sqrt(var + eps) + bias


def _mha_ref(q, k, v, mask, p, num_heads):
    B, Sq, D = q.shape
    Sk = k.shape[1]
    d_k = D // num_heads

    def lin(t, w, b):
        return t @ w.T + b

    query = lin(q, p["wq"], p["bq"])
    key = lin(k, p["wk"], p["bk"])
    value = lin(v, p["wv"], p["bv"])

    def split(t, s):
        return t.reshape(B, s, num_heads, d_k).transpose(0, 2, 1, 3)

    query, key, value = split(query, Sq), split(key, Sk), split(value, Sk)
    scores = query @ key.transpose(0, 1, 3, 2) / math.sqrt(d_k)
    scores = jnp.where(mask == 0, -1e9, scores)
    attn = jax.nn.softmax(scores, axis=-1)
    ctx = attn @ value
    ctx = ctx.transpose(0, 2, 1, 3).reshape(B, Sq, D)
    return lin(ctx, p["wo"], p["bo"])


def decoder_block_reference(x, enc, src_mask, tgt_mask, params, num_heads):
    ln = params["ln"]
    xn = _layer_norm_ref(x, ln[0][0], ln[0][1])
    x = x + _mha_ref(xn, xn, xn, tgt_mask, params["self_attn"], num_heads)
    xn = _layer_norm_ref(x, ln[1][0], ln[1][1])
    x = x + _mha_ref(xn, enc, enc, src_mask, params["cross_attn"], num_heads)
    xn = _layer_norm_ref(x, ln[2][0], ln[2][1])
    ff = params["ffn"]
    h = jnp.maximum(xn @ ff["w1"].T + ff["b1"], 0.0)
    return x + (h @ ff["w2"].T + ff["b2"])


# ------------------------------------ demo ------------------------------------

if __name__ == "__main__":
    B, S, d_model, num_heads, d_ff = 2, 8, 32, 4, 64

    key = jax.random.PRNGKey(0)
    keys = jax.random.split(key, 28)
    _ctr = [0]

    def nk():
        k = keys[_ctr[0]]
        _ctr[0] += 1
        return k

    scale = 1.0 / math.sqrt(d_model)

    def make_attn():
        return {
            "wq": jax.random.normal(nk(), (d_model, d_model), jnp.float32) * scale,
            "bq": jax.random.normal(nk(), (d_model,), jnp.float32) * 0.1,
            "wk": jax.random.normal(nk(), (d_model, d_model), jnp.float32) * scale,
            "bk": jax.random.normal(nk(), (d_model,), jnp.float32) * 0.1,
            "wv": jax.random.normal(nk(), (d_model, d_model), jnp.float32) * scale,
            "bv": jax.random.normal(nk(), (d_model,), jnp.float32) * 0.1,
            "wo": jax.random.normal(nk(), (d_model, d_model), jnp.float32) * scale,
            "bo": jax.random.normal(nk(), (d_model,), jnp.float32) * 0.1,
        }

    def make_ln():
        a = 1.0 + 0.1 * jax.random.normal(nk(), (d_model,), jnp.float32)
        b = 0.1 * jax.random.normal(nk(), (d_model,), jnp.float32)
        return (a, b)

    params = {
        "self_attn": make_attn(),
        "cross_attn": make_attn(),
        "ffn": {
            "w1": jax.random.normal(nk(), (d_ff, d_model), jnp.float32) * scale,
            "b1": jax.random.normal(nk(), (d_ff,), jnp.float32) * 0.1,
            "w2": jax.random.normal(nk(), (d_model, d_ff), jnp.float32)
                  * (1.0 / math.sqrt(d_ff)),
            "b2": jax.random.normal(nk(), (d_model,), jnp.float32) * 0.1,
        },
        "ln": [make_ln(), make_ln(), make_ln()],
    }

    x = jax.random.normal(nk(), (B, S, d_model), jnp.float32)
    enc = jax.random.normal(nk(), (B, S, d_model), jnp.float32)

    # tgt_mask: causal (B,1,S,S); src_mask: padding mask (B,1,1,S) (batch 1 masks
    # the last two encoder positions). 1 = keep, 0 = masked, as in the PyTorch usage.
    causal = jnp.tril(jnp.ones((S, S), jnp.int32))
    tgt_mask = jnp.broadcast_to(causal[None, None], (B, 1, S, S))
    src_lens = jnp.array([S, S - 2])
    src_mask = (jnp.arange(S)[None, :] < src_lens[:, None]).astype(jnp.int32)[:, None, None, :]

    out = decoder_block_forward(x, enc, src_mask, tgt_mask, params, num_heads)
    out = jax.block_until_ready(out)

    ref = decoder_block_reference(x, enc, src_mask, tgt_mask, params, num_heads)
    assert out.shape == (B, S, d_model)
    # bf16 MXU operands + approx reciprocal -> relaxed tolerance vs. the pure-f32 reference.
    max_err = float(jnp.max(jnp.abs(out - ref)))
    assert jnp.allclose(out, ref, atol=1e-1, rtol=1e-1), max_err
    print("KERNEL_OK")
</pallas_src>

<mosaic_0001>
module attributes {stable_mosaic.version = 11 : i64} {
  func.func @kernel(%arg0: i32, %arg1: memref<1x8x32xf32, #tpu.memory_space<vmem>>, %arg2: memref<1x8x32xbf16, #tpu.memory_space<vmem>>, %arg3: memref<1x1x8xi32, #tpu.memory_space<vmem>>, %arg4: memref<1x1x8xi32, #tpu.memory_space<vmem>>, %arg5: memref<8x32x32xbf16, #tpu.memory_space<vmem>>, %arg6: memref<8x1x32xf32, #tpu.memory_space<vmem>>, %arg7: memref<32x64xbf16, #tpu.memory_space<vmem>>, %arg8: memref<1x64xf32, #tpu.memory_space<vmem>>, %arg9: memref<64x32xbf16, #tpu.memory_space<vmem>>, %arg10: memref<1x32xf32, #tpu.memory_space<vmem>>, %arg11: memref<6x1x32xf32, #tpu.memory_space<vmem>>, %arg12: memref<1x8x32xf32, #tpu.memory_space<vmem>>, %arg13: memref<8x32xbf16, #tpu.memory_space<vmem>>) attributes {dimension_semantics = [#tpu.dimension_semantics<parallel>], iteration_bounds = array<i64: 2>, scalar_prefetch = 0 : i64, scratch_operands = 1 : i64, tpu.core_type = #tpu.core_type<tc>, window_params = [{transform_indices = @transform_0, window_bounds = array<i64: 1, 8, 32>}, {transform_indices = @transform_1, window_bounds = array<i64: 1, 8, 32>}, {transform_indices = @transform_2, window_bounds = array<i64: 1, 1, 8>}, {transform_indices = @transform_3, window_bounds = array<i64: 1, 1, 8>}, {pipeline_mode = #tpu.pipeline_mode<synchronous>, transform_indices = @transform_4, window_bounds = array<i64: 8, 32, 32>}, {pipeline_mode = #tpu.pipeline_mode<synchronous>, transform_indices = @transform_5, window_bounds = array<i64: 8, 1, 32>}, {pipeline_mode = #tpu.pipeline_mode<synchronous>, transform_indices = @transform_6, window_bounds = array<i64: 32, 64>}, {pipeline_mode = #tpu.pipeline_mode<synchronous>, transform_indices = @transform_7, window_bounds = array<i64: 1, 64>}, {pipeline_mode = #tpu.pipeline_mode<synchronous>, transform_indices = @transform_8, window_bounds = array<i64: 64, 32>}, {pipeline_mode = #tpu.pipeline_mode<synchronous>, transform_indices = @transform_9, window_bounds = array<i64: 1, 32>}, {pipeline_mode = #tpu.pipeline_mode<synchronous>, transform_indices = @transform_10, window_bounds = array<i64: 6, 1, 32>}, {transform_indices = @transform_11, window_bounds = array<i64: 1, 8, 32>}]} {
    %0 = tpu.iota {dimensions = array<i32: 0>} : vector<8x8xi32>
    %1 = tpu.iota {dimensions = array<i32: 1>} : vector<8x8xi32>
    %2 = arith.cmpi sge, %0, %1 : vector<8x8xi32>
    %c0 = arith.constant 0 : index
    %c0_0 = arith.constant 0 : index
    %c0_1 = arith.constant 0 : index
    %3 = vector.load %arg3[%c0, %c0_0, %c0_1] : memref<1x1x8xi32, #tpu.memory_space<vmem>>, vector<1x1x8xi32>
    %4 = vector.shape_cast %3 : vector<1x1x8xi32> to vector<1x8xi32>
    %c0_i32 = arith.constant 0 : i32
    %5 = vector.broadcast %c0_i32 : i32 to vector<1x8xi32>
    %6 = arith.cmpi ne, %4, %5 : vector<1x8xi32>
    %7 = vector.broadcast %6 : vector<1x8xi1> to vector<8x8xi1>
    %8 = arith.andi %2, %7 : vector<8x8xi1>
    %cst = arith.constant 0.000000e+00 : f32
    %cst_2 = arith.constant -1.000000e+09 : f32
    %9 = vector.broadcast %cst : f32 to vector<8x8xf32>
    %10 = vector.broadcast %cst_2 : f32 to vector<8x8xf32>
    %11 = arith.select %8, %9, %10 : vector<8x8xi1>, vector<8x8xf32>
    %c0_3 = arith.constant 0 : index
    %c0_4 = arith.constant 0 : index
    %c0_5 = arith.constant 0 : index
    %12 = vector.load %arg4[%c0_3, %c0_4, %c0_5] : memref<1x1x8xi32, #tpu.memory_space<vmem>>, vector<1x1x8xi32>
    %13 = vector.shape_cast %12 : vector<1x1x8xi32> to vector<1x8xi32>
    %c0_i32_6 = arith.constant 0 : i32
    %14 = vector.broadcast %c0_i32_6 : i32 to vector<1x8xi32>
    %15 = arith.cmpi ne, %13, %14 : vector<1x8xi32>
    %cst_7 = arith.constant 0.000000e+00 : f32
    %cst_8 = arith.constant -1.000000e+09 : f32
    %16 = vector.broadcast %cst_7 : f32 to vector<1x8xf32>
    %17 = vector.broadcast %cst_8 : f32 to vector<1x8xf32>
    %18 = arith.select %15, %16, %17 : vector<1x8xi1>, vector<1x8xf32>
    %c0_9 = arith.constant 0 : index
    %c0_10 = arith.constant 0 : index
    %c0_11 = arith.constant 0 : index
    %19 = vector.load %arg1[%c0_9, %c0_10, %c0_11] : memref<1x8x32xf32, #tpu.memory_space<vmem>>, vector<1x8x32xf32>
    %20 = vector.shape_cast %19 : vector<1x8x32xf32> to vector<8x32xf32>
    %c0_12 = arith.constant 0 : index
    %c0_13 = arith.constant 0 : index
    %c0_14 = arith.constant 0 : index
    %21 = vector.load %arg2[%c0_12, %c0_13, %c0_14] : memref<1x8x32xbf16, #tpu.memory_space<vmem>>, vector<1x8x32xbf16>
    %22 = vector.shape_cast %21 : vector<1x8x32xbf16> to vector<8x32xbf16>
    %cst_15 = arith.constant dense<0.000000e+00> : vector<8xf32>
    %23 = vector.multi_reduction <add>, %20, %cst_15 [1] : vector<8x32xf32> to vector<8xf32>
    %24 = vector.shape_cast %23 : vector<8xf32> to vector<8x1xf32>
    %cst_16 = arith.constant 3.200000e+01 : f32
    %25 = vector.broadcast %cst_16 : f32 to vector<8x1xf32>
    %26 = arith.divf %24, %25 : vector<8x1xf32>
    %27 = vector.broadcast %26 : vector<8x1xf32> to vector<8x32xf32>
    %28 = arith.subf %20, %27 : vector<8x32xf32>
    %29 = arith.mulf %28, %28 : vector<8x32xf32>
    %cst_17 = arith.constant dense<0.000000e+00> : vector<8xf32>
    %30 = vector.multi_reduction <add>, %29, %cst_17 [1] : vector<8x32xf32> to vector<8xf32>
    %31 = vector.shape_cast %30 : vector<8xf32> to vector<8x1xf32>
    %cst_18 = arith.constant 0.0322580636 : f32
    %32 = vector.broadcast %cst_18 : f32 to vector<8x1xf32>
    %33 = arith.mulf %31, %32 : vector<8x1xf32>
    %cst_19 = arith.constant 9.99999997E-7 : f32
    %34 = vector.broadcast %cst_19 : f32 to vector<8x1xf32>
    %35 = arith.addf %33, %34 : vector<8x1xf32>
    %36 = math.rsqrt %35 : vector<8x1xf32>
    %c0_20 = arith.constant 0 : index
    %c0_21 = arith.constant 0 : index
    %c0_22 = arith.constant 0 : index
    %37 = vector.load %arg11[%c0_20, %c0_21, %c0_22] : memref<6x1x32xf32, #tpu.memory_space<vmem>>, vector<1x1x32xf32>
    %38 = vector.shape_cast %37 : vector<1x1x32xf32> to vector<1x32xf32>
    %39 = vector.broadcast %36 : vector<8x1xf32> to vector<8x32xf32>
    %40 = arith.mulf %28, %39 : vector<8x32xf32>
    %41 = vector.broadcast %38 : vector<1x32xf32> to vector<8x32xf32>
    %42 = arith.mulf %41, %40 : vector<8x32xf32>
    %c1 = arith.constant 1 : index
    %c0_23 = arith.constant 0 : index
    %c0_24 = arith.constant 0 : index
    %43 = vector.load %arg11[%c1, %c0_23, %c0_24] : memref<6x1x32xf32, #tpu.memory_space<vmem>>, vector<1x1x32xf32>
    %44 = vector.shape_cast %43 : vector<1x1x32xf32> to vector<1x32xf32>
    %45 = vector.broadcast %44 : vector<1x32xf32> to vector<8x32xf32>
    %46 = arith.addf %42, %45 : vector<8x32xf32>
    %47 = arith.truncf %46 : vector<8x32xf32> to vector<8x32xbf16>
    %c0_25 = arith.constant 0 : index
    %c0_26 = arith.constant 0 : index
    %c0_27 = arith.constant 0 : index
    %48 = vector.load %arg5[%c0_25, %c0_26, %c0_27] : memref<8x32x32xbf16, #tpu.memory_space<vmem>>, vector<1x32x32xbf16>
    %49 = vector.shape_cast %48 : vector<1x32x32xbf16> to vector<32x32xbf16>
    %c1_28 = arith.constant 1 : index
    %c0_29 = arith.constant 0 : index
    %c0_30 = arith.constant 0 : index
    %50 = vector.load %arg5[%c1_28, %c0_29, %c0_30] : memref<8x32x32xbf16, #tpu.memory_space<vmem>>, vector<1x32x32xbf16>
    %51 = vector.shape_cast %50 : vector<1x32x32xbf16> to vector<32x32xbf16>
    %c2 = arith.constant 2 : index
    %c0_31 = arith.constant 0 : index
    %c0_32 = arith.constant 0 : index
    %52 = vector.load %arg5[%c2, %c0_31, %c0_32] : memref<8x32x32xbf16, #tpu.memory_space<vmem>>, vector<1x32x32xbf16>
    %53 = vector.shape_cast %52 : vector<1x32x32xbf16> to vector<32x32xbf16>
    %c3 = arith.constant 3 : index
    %c0_33 = arith.constant 0 : index
    %c0_34 = arith.constant 0 : index
    %54 = vector.load %arg5[%c3, %c0_33, %c0_34] : memref<8x32x32xbf16, #tpu.memory_space<vmem>>, vector<1x32x32xbf16>
    %55 = vector.shape_cast %54 : vector<1x32x32xbf16> to vector<32x32xbf16>
    %cst_35 = arith.constant dense<0.000000e+00> : vector<8x32xf32>
    %56 = tpu.matmul %47, %49, %cst_35 {dimension_numbers = #tpu.dot_dimension_numbers<[1], [0], [0], [1], [0, 0, 1, 1], [], []>} : vector<8x32xbf16>, vector<32x32xbf16>, vector<8x32xf32> -> vector<8x32xf32>
    %c0_36 = arith.constant 0 : index
    %c0_37 = arith.constant 0 : index
    %c0_38 = arith.constant 0 : index
    %57 = vector.load %arg6[%c0_36, %c0_37, %c0_38] : memref<8x1x32xf32, #tpu.memory_space<vmem>>, vector<1x1x32xf32>
    %58 = vector.shape_cast %57 : vector<1x1x32xf32> to vector<1x32xf32>
    %59 = vector.broadcast %58 : vector<1x32xf32> to vector<8x32xf32>
    %60 = arith.addf %56, %59 : vector<8x32xf32>
    %61 = arith.truncf %60 : vector<8x32xf32> to vector<8x32xbf16>
    %cst_39 = arith.constant dense<0.000000e+00> : vector<8x32xf32>
    %62 = tpu.matmul %47, %51, %cst_39 {dimension_numbers = #tpu.dot_dimension_numbers<[1], [0], [0], [1], [0, 0, 1, 1], [], []>} : vector<8x32xbf16>, vector<32x32xbf16>, vector<8x32xf32> -> vector<8x32xf32>
    %c1_40 = arith.constant 1 : index
    %c0_41 = arith.constant 0 : index
    %c0_42 = arith.constant 0 : index
    %63 = vector.load %arg6[%c1_40, %c0_41, %c0_42] : memref<8x1x32xf32, #tpu.memory_space<vmem>>, vector<1x1x32xf32>
    %64 = vector.shape_cast %63 : vector<1x1x32xf32> to vector<1x32xf32>
    %65 = vector.broadcast %64 : vector<1x32xf32> to vector<8x32xf32>
    %66 = arith.addf %62, %65 : vector<8x32xf32>
    %67 = arith.truncf %66 : vector<8x32xf32> to vector<8x32xbf16>
    %cst_43 = arith.constant dense<0.000000e+00> : vector<8x32xf32>
    %68 = tpu.matmul %47, %53, %cst_43 {dimension_numbers = #tpu.dot_dimension_numbers<[1], [0], [0], [1], [0, 0, 1, 1], [], []>} : vector<8x32xbf16>, vector<32x32xbf16>, vector<8x32xf32> -> vector<8x32xf32>
    %c2_44 = arith.constant 2 : index
    %c0_45 = arith.constant 0 : index
    %c0_46 = arith.constant 0 : index
    %69 = vector.load %arg6[%c2_44, %c0_45, %c0_46] : memref<8x1x32xf32, #tpu.memory_space<vmem>>, vector<1x1x32xf32>
    %70 = vector.shape_cast %69 : vector<1x1x32xf32> to vector<1x32xf32>
    %71 = vector.broadcast %70 : vector<1x32xf32> to vector<8x32xf32>
    %72 = arith.addf %68, %71 : vector<8x32xf32>
    %73 = arith.truncf %72 : vector<8x32xf32> to vector<8x32xbf16>
    %74 = vector.extract_strided_slice %61 {offsets = [0, 0], sizes = [8, 8], strides = [1, 1]} : vector<8x32xbf16> to vector<8x8xbf16>
    %75 = vector.extract_strided_slice %67 {offsets = [0, 0], sizes = [8, 8], strides = [1, 1]} : vector<8x32xbf16> to vector<8x8xbf16>
    %76 = vector.extract_strided_slice %73 {offsets = [0, 0], sizes = [8, 8], strides = [1, 1]} : vector<8x32xbf16> to vector<8x8xbf16>
    %cst_47 = arith.constant dense<0.000000e+00> : vector<8x8xf32>
    %77 = tpu.matmul %74, %75, %cst_47 {dimension_numbers = #tpu.dot_dimension_numbers<[1], [1], [0], [0], [0, 0, 1, 0], [], []>} : vector<8x8xbf16>, vector<8x8xbf16>, vector<8x8xf32> -> vector<8x8xf32>
    %78 = arith.addf %77, %11 : vector<8x8xf32>
    %cst_48 = arith.constant dense<0xFF800000> : vector<8xf32>
    %79 = vector.multi_reduction <maximumf>, %78, %cst_48 [1] : vector<8x8xf32> to vector<8xf32>
    %80 = vector.shape_cast %79 : vector<8xf32> to vector<8x1xf32>
    %81 = vector.broadcast %80 : vector<8x1xf32> to vector<8x8xf32>
    %82 = arith.subf %78, %81 : vector<8x8xf32>
    %83 = math.exp %82 : vector<8x8xf32>
    %cst_49 = arith.constant dense<0.000000e+00> : vector<8xf32>
    %84 = vector.multi_reduction <add>, %83, %cst_49 [1] : vector<8x8xf32> to vector<8xf32>
    %85 = vector.shape_cast %84 : vector<8xf32> to vector<8x1xf32>
    %86 = arith.truncf %83 : vector<8x8xf32> to vector<8x8xbf16>
    %cst_50 = arith.constant dense<0.000000e+00> : vector<8x8xf32>
    %87 = tpu.matmul %86, %76, %cst_50 {dimension_numbers = #tpu.dot_dimension_numbers<[1], [0], [0], [1], [0, 0, 1, 1], [], []>} : vector<8x8xbf16>, vector<8x8xbf16>, vector<8x8xf32> -> vector<8x8xf32>
    %88 = tpu.reciprocal %85 {approx = true} : vector<8x1xf32> -> vector<8x1xf32>
    %89 = vector.broadcast %88 : vector<8x1xf32> to vector<8x8xf32>
    %90 = arith.mulf %87, %89 : vector<8x8xf32>
    %91 = arith.truncf %90 : vector<8x8xf32> to vector<8x8xbf16>
    %c0_51 = arith.constant 0 : index
    %c0_52 = arith.constant 0 : index
    %92 = vector.load %arg13[%c0_51, %c0_52] : memref<8x32xbf16, #tpu.memory_space<vmem>>, vector<8x8xbf16>
    tpu.vector_store %arg13[%c0_51, %c0_52], %91 {strides = array<i32>} : memref<8x32xbf16, #tpu.memory_space<vmem>>, vector<8x8xbf16>,
    %93 = vector.extract_strided_slice %61 {offsets = [0, 8], sizes = [8, 8], strides = [1, 1]} : vector<8x32xbf16> to vector<8x8xbf16>
    %94 = vector.extract_strided_slice %67 {offsets = [0, 8], sizes = [8, 8], strides = [1, 1]} : vector<8x32xbf16> to vector<8x8xbf16>
    %95 = vector.extract_strided_slice %73 {offsets = [0, 8], sizes = [8, 8], strides = [1, 1]} : vector<8x32xbf16> to vector<8x8xbf16>
    %cst_53 = arith.constant dense<0.000000e+00> : vector<8x8xf32>
    %96 = tpu.matmul %93, %94, %cst_53 {dimension_numbers = #tpu.dot_dimension_numbers<[1], [1], [0], [0], [0, 0, 1, 0], [], []>} : vector<8x8xbf16>, vector<8x8xbf16>, vector<8x8xf32> -> vector<8x8xf32>
    %97 = arith.addf %96, %11 : vector<8x8xf32>
    %cst_54 = arith.constant dense<0xFF800000> : vector<8xf32>
    %98 = vector.multi_reduction <maximumf>, %97, %cst_54 [1] : vector<8x8xf32> to vector<8xf32>
    %99 = vector.shape_cast %98 : vector<8xf32> to vector<8x1xf32>
    %100 = vector.broadcast %99 : vector<8x1xf32> to vector<8x8xf32>
    %101 = arith.subf %97, %100 : vector<8x8xf32>
    %102 = math.exp %101 : vector<8x8xf32>
    %cst_55 = arith.constant dense<0.000000e+00> : vector<8xf32>
    %103 = vector.multi_reduction <add>, %102, %cst_55 [1] : vector<8x8xf32> to vector<8xf32>
    %104 = vector.shape_cast %103 : vector<8xf32> to vector<8x1xf32>
    %105 = arith.truncf %102 : vector<8x8xf32> to vector<8x8xbf16>
    %cst_56 = arith.constant dense<0.000000e+00> : vector<8x8xf32>
    %106 = tpu.matmul %105, %95, %cst_56 {dimension_numbers = #tpu.dot_dimension_numbers<[1], [0], [0], [1], [0, 0, 1, 1], [], []>} : vector<8x8xbf16>, vector<8x8xbf16>, vector<8x8xf32> -> vector<8x8xf32>
    %107 = tpu.reciprocal %104 {approx = true} : vector<8x1xf32> -> vector<8x1xf32>
    %108 = vector.broadcast %107 : vector<8x1xf32> to vector<8x8xf32>
    %109 = arith.mulf %106, %108 : vector<8x8xf32>
    %110 = arith.truncf %109 : vector<8x8xf32> to vector<8x8xbf16>
    %c0_57 = arith.constant 0 : index
    %c8 = arith.constant 8 : index
    %111 = vector.load %arg13[%c0_57, %c8] : memref<8x32xbf16, #tpu.memory_space<vmem>>, vector<8x8xbf16>
    tpu.vector_store %arg13[%c0_57, %c8], %110 {strides = array<i32>} : memref<8x32xbf16, #tpu.memory_space<vmem>>, vector<8x8xbf16>,
    %112 = vector.extract_strided_slice %61 {offsets = [0, 16], sizes = [8, 8], strides = [1, 1]} : vector<8x32xbf16> to vector<8x8xbf16>
    %113 = vector.extract_strided_slice %67 {offsets = [0, 16], sizes = [8, 8], strides = [1, 1]} : vector<8x32xbf16> to vector<8x8xbf16>
    %114 = vector.extract_strided_slice %73 {offsets = [0, 16], sizes = [8, 8], strides = [1, 1]} : vector<8x32xbf16> to vector<8x8xbf16>
    %cst_58 = arith.constant dense<0.000000e+00> : vector<8x8xf32>
    %115 = tpu.matmul %112, %113, %cst_58 {dimension_numbers = #tpu.dot_dimension_numbers<[1], [1], [0], [0], [0, 0, 1, 0], [], []>} : vector<8x8xbf16>, vector<8x8xbf16>, vector<8x8xf32> -> vector<8x8xf32>
    %116 = arith.addf %115, %11 : vector<8x8xf32>
    %cst_59 = arith.constant dense<0xFF800000> : vector<8xf32>
    %117 = vector.multi_reduction <maximumf>, %116, %cst_59 [1] : vector<8x8xf32> to vector<8xf32>
    %118 = vector.shape_cast %117 : vector<8xf32> to vector<8x1xf32>
    %119 = vector.broadcast %118 : vector<8x1xf32> to vector<8x8xf32>
    %120 = arith.subf %116, %119 : vector<8x8xf32>
    %121 = math.exp %120 : vector<8x8xf32>
    %cst_60 = arith.constant dense<0.000000e+00> : vector<8xf32>
    %122 = vector.multi_reduction <add>, %121, %cst_60 [1] : vector<8x8xf32> to vector<8xf32>
    %123 = vector.shape_cast %122 : vector<8xf32> to vector<8x1xf32>
    %124 = arith.truncf %121 : vector<8x8xf32> to vector<8x8xbf16>
    %cst_61 = arith.constant dense<0.000000e+00> : vector<8x8xf32>
    %125 = tpu.matmul %124, %114, %cst_61 {dimension_numbers = #tpu.dot_dimension_numbers<[1], [0], [0], [1], [0, 0, 1, 1], [], []>} : vector<8x8xbf16>, vector<8x8xbf16>, vector<8x8xf32> -> vector<8x8xf32>
    %126 = tpu.reciprocal %123 {approx = true} : vector<8x1xf32> -> vector<8x1xf32>
    %127 = vector.broadcast %126 : vector<8x1xf32> to vector<8x8xf32>
    %128 = arith.mulf %125, %127 : vector<8x8xf32>
    %129 = arith.truncf %128 : vector<8x8xf32> to vector<8x8xbf16>
    %c0_62 = arith.constant 0 : index
    %c16 = arith.constant 16 : index
    %130 = vector.load %arg13[%c0_62, %c16] : memref<8x32xbf16, #tpu.memory_space<vmem>>, vector<8x8xbf16>
    tpu.vector_store %arg13[%c0_62, %c16], %129 {strides = array<i32>} : memref<8x32xbf16, #tpu.memory_space<vmem>>, vector<8x8xbf16>,
    %131 = vector.extract_strided_slice %61 {offsets = [0, 24], sizes = [8, 8], strides = [1, 1]} : vector<8x32xbf16> to vector<8x8xbf16>
    %132 = vector.extract_strided_slice %67 {offsets = [0, 24], sizes = [8, 8], strides = [1, 1]} : vector<8x32xbf16> to vector<8x8xbf16>
    %133 = vector.extract_strided_slice %73 {offsets = [0, 24], sizes = [8, 8], strides = [1, 1]} : vector<8x32xbf16> to vector<8x8xbf16>
    %cst_63 = arith.constant dense<0.000000e+00> : vector<8x8xf32>
    %134 = tpu.matmul %131, %132, %cst_63 {dimension_numbers = #tpu.dot_dimension_numbers<[1], [1], [0], [0], [0, 0, 1, 0], [], []>} : vector<8x8xbf16>, vector<8x8xbf16>, vector<8x8xf32> -> vector<8x8xf32>
    %135 = arith.addf %134, %11 : vector<8x8xf32>
    %cst_64 = arith.constant dense<0xFF800000> : vector<8xf32>
    %136 = vector.multi_reduction <maximumf>, %135, %cst_64 [1] : vector<8x8xf32> to vector<8xf32>
    %137 = vector.shape_cast %136 : vector<8xf32> to vector<8x1xf32>
    %138 = vector.broadcast %137 : vector<8x1xf32> to vector<8x8xf32>
    %139 = arith.subf %135, %138 : vector<8x8xf32>
    %140 = math.exp %139 : vector<8x8xf32>
    %cst_65 = arith.constant dense<0.000000e+00> : vector<8xf32>
    %141 = vector.multi_reduction <add>, %140, %cst_65 [1] : vector<8x8xf32> to vector<8xf32>
    %142 = vector.shape_cast %141 : vector<8xf32> to vector<8x1xf32>
    %143 = arith.truncf %140 : vector<8x8xf32> to vector<8x8xbf16>
    %cst_66 = arith.constant dense<0.000000e+00> : vector<8x8xf32>
    %144 = tpu.matmul %143, %133, %cst_66 {dimension_numbers = #tpu.dot_dimension_numbers<[1], [0], [0], [1], [0, 0, 1, 1], [], []>} : vector<8x8xbf16>, vector<8x8xbf16>, vector<8x8xf32> -> vector<8x8xf32>
    %145 = tpu.reciprocal %142 {approx = true} : vector<8x1xf32> -> vector<8x1xf32>
    %146 = vector.broadcast %145 : vector<8x1xf32> to vector<8x8xf32>
    %147 = arith.mulf %144, %146 : vector<8x8xf32>
    %148 = arith.truncf %147 : vector<8x8xf32> to vector<8x8xbf16>
    %c0_67 = arith.constant 0 : index
    %c24 = arith.constant 24 : index
    %149 = vector.load %arg13[%c0_67, %c24] : memref<8x32xbf16, #tpu.memory_space<vmem>>, vector<8x8xbf16>
    tpu.vector_store %arg13[%c0_67, %c24], %148 {strides = array<i32>} : memref<8x32xbf16, #tpu.memory_space<vmem>>, vector<8x8xbf16>,
    %c0_68 = arith.constant 0 : index
    %c0_69 = arith.constant 0 : index
    %150 = vector.load %arg13[%c0_68, %c0_69] : memref<8x32xbf16, #tpu.memory_space<vmem>>, vector<8x32xbf16>
    %cst_70 = arith.constant dense<0.000000e+00> : vector<8x32xf32>
    %151 = tpu.matmul %150, %55, %cst_70 {dimension_numbers = #tpu.dot_dimension_numbers<[1], [0], [0], [1], [0, 0, 1, 1], [], []>} : vector<8x32xbf16>, vector<32x32xbf16>, vector<8x32xf32> -> vector<8x32xf32>
    %c3_71 = arith.constant 3 : index
    %c0_72 = arith.constant 0 : index
    %c0_73 = arith.constant 0 : index
    %152 = vector.load %arg6[%c3_71, %c0_72, %c0_73] : memref<8x1x32xf32, #tpu.memory_space<vmem>>, vector<1x1x32xf32>
    %153 = vector.shape_cast %152 : vector<1x1x32xf32> to vector<1x32xf32>
    %154 = vector.broadcast %153 : vector<1x32xf32> to vector<8x32xf32>
    %155 = arith.addf %151, %154 : vector<8x32xf32>
    %156 = arith.addf %20, %155 : vector<8x32xf32>
    %cst_74 = arith.constant dense<0.000000e+00> : vector<8xf32>
    %157 = vector.multi_reduction <add>, %156, %cst_74 [1] : vector<8x32xf32> to vector<8xf32>
    %158 = vector.shape_cast %157 : vector<8xf32> to vector<8x1xf32>
    %cst_75 = arith.constant 3.200000e+01 : f32
    %159 = vector.broadcast %cst_75 : f32 to vector<8x1xf32>
    %160 = arith.divf %158, %159 : vector<8x1xf32>
    %161 = vector.broadcast %160 : vector<8x1xf32> to vector<8x32xf32>
    %162 = arith.subf %156, %161 : vector<8x32xf32>
    %163 = arith.mulf %162, %162 : vector<8x32xf32>
    %cst_76 = arith.constant dense<0.000000e+00> : vector<8xf32>
    %164 = vector.multi_reduction <add>, %163, %cst_76 [1] : vector<8x32xf32> to vector<8xf32>
    %165 = vector.shape_cast %164 : vector<8xf32> to vector<8x1xf32>
    %cst_77 = arith.constant 0.0322580636 : f32
    %166 = vector.broadcast %cst_77 : f32 to vector<8x1xf32>
    %167 = arith.mulf %165, %166 : vector<8x1xf32>
    %cst_78 = arith.constant 9.99999997E-7 : f32
    %168 = vector.broadcast %cst_78 : f32 to vector<8x1xf32>
    %169 = arith.addf %167, %168 : vector<8x1xf32>
    %170 = math.rsqrt %169 : vector<8x1xf32>
    %c2_79 = arith.constant 2 : index
    %c0_80 = arith.constant 0 : index
    %c0_81 = arith.constant 0 : index
    %171 = vector.load %arg11[%c2_79, %c0_80, %c0_81] : memref<6x1x32xf32, #tpu.memory_space<vmem>>, vector<1x1x32xf32>
    %172 = vector.shape_cast %171 : vector<1x1x32xf32> to vector<1x32xf32>
    %173 = vector.broadcast %170 : vector<8x1xf32> to vector<8x32xf32>
    %174 = arith.mulf %162, %173 : vector<8x32xf32>
    %175 = vector.broadcast %172 : vector<1x32xf32> to vector<8x32xf32>
    %176 = arith.mulf %175, %174 : vector<8x32xf32>
    %c3_82 = arith.constant 3 : index
    %c0_83 = arith.constant 0 : index
    %c0_84 = arith.constant 0 : index
    %177 = vector.load %arg11[%c3_82, %c0_83, %c0_84] : memref<6x1x32xf32, #tpu.memory_space<vmem>>, vector<1x1x32xf32>
    %178 = vector.shape_cast %177 : vector<1x1x32xf32> to vector<1x32xf32>
    %179 = vector.broadcast %178 : vector<1x32xf32> to vector<8x32xf32>
    %180 = arith.addf %176, %179 : vector<8x32xf32>
    %181 = arith.truncf %180 : vector<8x32xf32> to vector<8x32xbf16>
    %c4 = arith.constant 4 : index
    %c0_85 = arith.constant 0 : index
    %c0_86 = arith.constant 0 : index
    %182 = vector.load %arg5[%c4, %c0_85, %c0_86] : memref<8x32x32xbf16, #tpu.memory_space<vmem>>, vector<1x32x32xbf16>
    %183 = vector.shape_cast %182 : vector<1x32x32xbf16> to vector<32x32xbf16>
    %c5 = arith.constant 5 : index
    %c0_87 = arith.constant 0 : index
    %c0_88 = arith.constant 0 : index
    %184 = vector.load %arg5[%c5, %c0_87, %c0_88] : memref<8x32x32xbf16, #tpu.memory_space<vmem>>, vector<1x32x32xbf16>
    %185 = vector.shape_cast %184 : vector<1x32x32xbf16> to vector<32x32xbf16>
    %c6 = arith.constant 6 : index
    %c0_89 = arith.constant 0 : index
    %c0_90 = arith.constant 0 : index
    %186 = vector.load %arg5[%c6, %c0_89, %c0_90] : memref<8x32x32xbf16, #tpu.memory_space<vmem>>, vector<1x32x32xbf16>
    %187 = vector.shape_cast %186 : vector<1x32x32xbf16> to vector<32x32xbf16>
    %c7 = arith.constant 7 : index
    %c0_91 = arith.constant 0 : index
    %c0_92 = arith.constant 0 : index
    %188 = vector.load %arg5[%c7, %c0_91, %c0_92] : memref<8x32x32xbf16, #tpu.memory_space<vmem>>, vector<1x32x32xbf16>
    %189 = vector.shape_cast %188 : vector<1x32x32xbf16> to vector<32x32xbf16>
    %cst_93 = arith.constant dense<0.000000e+00> : vector<8x32xf32>
    %190 = tpu.matmul %181, %183, %cst_93 {dimension_numbers = #tpu.dot_dimension_numbers<[1], [0], [0], [1], [0, 0, 1, 1], [], []>} : vector<8x32xbf16>, vector<32x32xbf16>, vector<8x32xf32> -> vector<8x32xf32>
    %c4_94 = arith.constant 4 : index
    %c0_95 = arith.constant 0 : index
    %c0_96 = arith.constant 0 : index
    %191 = vector.load %arg6[%c4_94, %c0_95, %c0_96] : memref<8x1x32xf32, #tpu.memory_space<vmem>>, vector<1x1x32xf32>
    %192 = vector.shape_cast %191 : vector<1x1x32xf32> to vector<1x32xf32>
    %193 = vector.broadcast %192 : vector<1x32xf32> to vector<8x32xf32>
    %194 = arith.addf %190, %193 : vector<8x32xf32>
    %195 = arith.truncf %194 : vector<8x32xf32> to vector<8x32xbf16>
    %cst_97 = arith.constant dense<0.000000e+00> : vector<8x32xf32>
    %196 = tpu.matmul %22, %185, %cst_97 {dimension_numbers = #tpu.dot_dimension_numbers<[1], [0], [0], [1], [0, 0, 1, 1], [], []>} : vector<8x32xbf16>, vector<32x32xbf16>, vector<8x32xf32> -> vector<8x32xf32>
    %c5_98 = arith.constant 5 : index
    %c0_99 = arith.constant 0 : index
    %c0_100 = arith.constant 0 : index
    %197 = vector.load %arg6[%c5_98, %c0_99, %c0_100] : memref<8x1x32xf32, #tpu.memory_space<vmem>>, vector<1x1x32xf32>
    %198 = vector.shape_cast %197 : vector<1x1x32xf32> to vector<1x32xf32>
    %199 = vector.broadcast %198 : vector<1x32xf32> to vector<8x32xf32>
    %200 = arith.addf %196, %199 : vector<8x32xf32>
    %201 = arith.truncf %200 : vector<8x32xf32> to vector<8x32xbf16>
    %cst_101 = arith.constant dense<0.000000e+00> : vector<8x32xf32>
    %202 = tpu.matmul %22, %187, %cst_101 {dimension_numbers = #tpu.dot_dimension_numbers<[1], [0], [0], [1], [0, 0, 1, 1], [], []>} : vector<8x32xbf16>, vector<32x32xbf16>, vector<8x32xf32> -> vector<8x32xf32>
    %c6_102 = arith.constant 6 : index
    %c0_103 = arith.constant 0 : index
    %c0_104 = arith.constant 0 : index
    %203 = vector.load %arg6[%c6_102, %c0_103, %c0_104] : memref<8x1x32xf32, #tpu.memory_space<vmem>>, vector<1x1x32xf32>
    %204 = vector.shape_cast %203 : vector<1x1x32xf32> to vector<1x32xf32>
    %205 = vector.broadcast %204 : vector<1x32xf32> to vector<8x32xf32>
    %206 = arith.addf %202, %205 : vector<8x32xf32>
    %207 = arith.truncf %206 : vector<8x32xf32> to vector<8x32xbf16>
    %208 = vector.extract_strided_slice %195 {offsets = [0, 0], sizes = [8, 8], strides = [1, 1]} : vector<8x32xbf16> to vector<8x8xbf16>
    %209 = vector.extract_strided_slice %201 {offsets = [0, 0], sizes = [8, 8], strides = [1, 1]} : vector<8x32xbf16> to vector<8x8xbf16>
    %210 = vector.extract_strided_slice %207 {offsets = [0, 0], sizes = [8, 8], strides = [1, 1]} : vector<8x32xbf16> to vector<8x8xbf16>
    %cst_105 = arith.constant dense<0.000000e+00> : vector<8x8xf32>
    %211 = tpu.matmul %208, %209, %cst_105 {dimension_numbers = #tpu.dot_dimension_numbers<[1], [1], [0], [0], [0, 0, 1, 0], [], []>} : vector<8x8xbf16>, vector<8x8xbf16>, vector<8x8xf32> -> vector<8x8xf32>
    %212 = vector.broadcast %18 : vector<1x8xf32> to vector<8x8xf32>
    %213 = arith.addf %211, %212 : vector<8x8xf32>
    %cst_106 = arith.constant dense<0xFF800000> : vector<8xf32>
    %214 = vector.multi_reduction <maximumf>, %213, %cst_106 [1] : vector<8x8xf32> to vector<8xf32>
    %215 = vector.shape_cast %214 : vector<8xf32> to vector<8x1xf32>
    %216 = vector.broadcast %215 : vector<8x1xf32> to vector<8x8xf32>
    %217 = arith.subf %213, %216 : vector<8x8xf32>
    %218 = math.exp %217 : vector<8x8xf32>
    %cst_107 = arith.constant dense<0.000000e+00> : vector<8xf32>
    %219 = vector.multi_reduction <add>, %218, %cst_107 [1] : vector<8x8xf32> to vector<8xf32>
    %220 = vector.shape_cast %219 : vector<8xf32> to vector<8x1xf32>
    %221 = arith.truncf %218 : vector<8x8xf32> to vector<8x8xbf16>
    %cst_108 = arith.constant dense<0.000000e+00> : vector<8x8xf32>
    %222 = tpu.matmul %221, %210, %cst_108 {dimension_numbers = #tpu.dot_dimension_numbers<[1], [0], [0], [1], [0, 0, 1, 1], [], []>} : vector<8x8xbf16>, vector<8x8xbf16>, vector<8x8xf32> -> vector<8x8xf32>
    %223 = tpu.reciprocal %220 {approx = true} : vector<8x1xf32> -> vector<8x1xf32>
    %224 = vector.broadcast %223 : vector<8x1xf32> to vector<8x8xf32>
    %225 = arith.mulf %222, %224 : vector<8x8xf32>
    %226 = arith.truncf %225 : vector<8x8xf32> to vector<8x8xbf16>
    %c0_109 = arith.constant 0 : index
    %c0_110 = arith.constant 0 : index
    %227 = vector.load %arg13[%c0_109, %c0_110] : memref<8x32xbf16, #tpu.memory_space<vmem>>, vector<8x8xbf16>
    tpu.vector_store %arg13[%c0_109, %c0_110], %226 {strides = array<i32>} : memref<8x32xbf16, #tpu.memory_space<vmem>>, vector<8x8xbf16>,
    %228 = vector.extract_strided_slice %195 {offsets = [0, 8], sizes = [8, 8], strides = [1, 1]} : vector<8x32xbf16> to vector<8x8xbf16>
    %229 = vector.extract_strided_slice %201 {offsets = [0, 8], sizes = [8, 8], strides = [1, 1]} : vector<8x32xbf16> to vector<8x8xbf16>
    %230 = vector.extract_strided_slice %207 {offsets = [0, 8], sizes = [8, 8], strides = [1, 1]} : vector<8x32xbf16> to vector<8x8xbf16>
    %cst_111 = arith.constant dense<0.000000e+00> : vector<8x8xf32>
    %231 = tpu.matmul %228, %229, %cst_111 {dimension_numbers = #tpu.dot_dimension_numbers<[1], [1], [0], [0], [0, 0, 1, 0], [], []>} : vector<8x8xbf16>, vector<8x8xbf16>, vector<8x8xf32> -> vector<8x8xf32>
    %232 = vector.broadcast %18 : vector<1x8xf32> to vector<8x8xf32>
    %233 = arith.addf %231, %232 : vector<8x8xf32>
    %cst_112 = arith.constant dense<0xFF800000> : vector<8xf32>
    %234 = vector.multi_reduction <maximumf>, %233, %cst_112 [1] : vector<8x8xf32> to vector<8xf32>
    %235 = vector.shape_cast %234 : vector<8xf32> to vector<8x1xf32>
    %236 = vector.broadcast %235 : vector<8x1xf32> to vector<8x8xf32>
    %237 = arith.subf %233, %236 : vector<8x8xf32>
    %238 = math.exp %237 : vector<8x8xf32>
    %cst_113 = arith.constant dense<0.000000e+00> : vector<8xf32>
    %239 = vector.multi_reduction <add>, %238, %cst_113 [1] : vector<8x8xf32> to vector<8xf32>
    %240 = vector.shape_cast %239 : vector<8xf32> to vector<8x1xf32>
    %241 = arith.truncf %238 : vector<8x8xf32> to vector<8x8xbf16>
    %cst_114 = arith.constant dense<0.000000e+00> : vector<8x8xf32>
    %242 = tpu.matmul %241, %230, %cst_114 {dimension_numbers = #tpu.dot_dimension_numbers<[1], [0], [0], [1], [0, 0, 1, 1], [], []>} : vector<8x8xbf16>, vector<8x8xbf16>, vector<8x8xf32> -> vector<8x8xf32>
    %243 = tpu.reciprocal %240 {approx = true} : vector<8x1xf32> -> vector<8x1xf32>
    %244 = vector.broadcast %243 : vector<8x1xf32> to vector<8x8xf32>
    %245 = arith.mulf %242, %244 : vector<8x8xf32>
    %246 = arith.truncf %245 : vector<8x8xf32> to vector<8x8xbf16>
    %c0_115 = arith.constant 0 : index
    %c8_116 = arith.constant 8 : index
    %247 = vector.load %arg13[%c0_115, %c8_116] : memref<8x32xbf16, #tpu.memory_space<vmem>>, vector<8x8xbf16>
    tpu.vector_store %arg13[%c0_115, %c8_116], %246 {strides = array<i32>} : memref<8x32xbf16, #tpu.memory_space<vmem>>, vector<8x8xbf16>,
    %248 = vector.extract_strided_slice %195 {offsets = [0, 16], sizes = [8, 8], strides = [1, 1]} : vector<8x32xbf16> to vector<8x8xbf16>
    %249 = vector.extract_strided_slice %201 {offsets = [0, 16], sizes = [8, 8], strides = [1, 1]} : vector<8x32xbf16> to vector<8x8xbf16>
    %250 = vector.extract_strided_slice %207 {offsets = [0, 16], sizes = [8, 8], strides = [1, 1]} : vector<8x32xbf16> to vector<8x8xbf16>
    %cst_117 = arith.constant dense<0.000000e+00> : vector<8x8xf32>
    %251 = tpu.matmul %248, %249, %cst_117 {dimension_numbers = #tpu.dot_dimension_numbers<[1], [1], [0], [0], [0, 0, 1, 0], [], []>} : vector<8x8xbf16>, vector<8x8xbf16>, vector<8x8xf32> -> vector<8x8xf32>
    %252 = vector.broadcast %18 : vector<1x8xf32> to vector<8x8xf32>
    %253 = arith.addf %251, %252 : vector<8x8xf32>
    %cst_118 = arith.constant dense<0xFF800000> : vector<8xf32>
    %254 = vector.multi_reduction <maximumf>, %253, %cst_118 [1] : vector<8x8xf32> to vector<8xf32>
    %255 = vector.shape_cast %254 : vector<8xf32> to vector<8x1xf32>
    %256 = vector.broadcast %255 : vector<8x1xf32> to vector<8x8xf32>
    %257 = arith.subf %253, %256 : vector<8x8xf32>
    %258 = math.exp %257 : vector<8x8xf32>
    %cst_119 = arith.constant dense<0.000000e+00> : vector<8xf32>
    %259 = vector.multi_reduction <add>, %258, %cst_119 [1] : vector<8x8xf32> to vector<8xf32>
    %260 = vector.shape_cast %259 : vector<8xf32> to vector<8x1xf32>
    %261 = arith.truncf %258 : vector<8x8xf32> to vector<8x8xbf16>
    %cst_120 = arith.constant dense<0.000000e+00> : vector<8x8xf32>
    %262 = tpu.matmul %261, %250, %cst_120 {dimension_numbers = #tpu.dot_dimension_numbers<[1], [0], [0], [1], [0, 0, 1, 1], [], []>} : vector<8x8xbf16>, vector<8x8xbf16>, vector<8x8xf32> -> vector<8x8xf32>
    %263 = tpu.reciprocal %260 {approx = true} : vector<8x1xf32> -> vector<8x1xf32>
    %264 = vector.broadcast %263 : vector<8x1xf32> to vector<8x8xf32>
    %265 = arith.mulf %262, %264 : vector<8x8xf32>
    %266 = arith.truncf %265 : vector<8x8xf32> to vector<8x8xbf16>
    %c0_121 = arith.constant 0 : index
    %c16_122 = arith.constant 16 : index
    %267 = vector.load %arg13[%c0_121, %c16_122] : memref<8x32xbf16, #tpu.memory_space<vmem>>, vector<8x8xbf16>
    tpu.vector_store %arg13[%c0_121, %c16_122], %266 {strides = array<i32>} : memref<8x32xbf16, #tpu.memory_space<vmem>>, vector<8x8xbf16>,
    %268 = vector.extract_strided_slice %195 {offsets = [0, 24], sizes = [8, 8], strides = [1, 1]} : vector<8x32xbf16> to vector<8x8xbf16>
    %269 = vector.extract_strided_slice %201 {offsets = [0, 24], sizes = [8, 8], strides = [1, 1]} : vector<8x32xbf16> to vector<8x8xbf16>
    %270 = vector.extract_strided_slice %207 {offsets = [0, 24], sizes = [8, 8], strides = [1, 1]} : vector<8x32xbf16> to vector<8x8xbf16>
    %cst_123 = arith.constant dense<0.000000e+00> : vector<8x8xf32>
    %271 = tpu.matmul %268, %269, %cst_123 {dimension_numbers = #tpu.dot_dimension_numbers<[1], [1], [0], [0], [0, 0, 1, 0], [], []>} : vector<8x8xbf16>, vector<8x8xbf16>, vector<8x8xf32> -> vector<8x8xf32>
    %272 = vector.broadcast %18 : vector<1x8xf32> to vector<8x8xf32>
    %273 = arith.addf %271, %272 : vector<8x8xf32>
    %cst_124 = arith.constant dense<0xFF800000> : vector<8xf32>
    %274 = vector.multi_reduction <maximumf>, %273, %cst_124 [1] : vector<8x8xf32> to vector<8xf32>
    %275 = vector.shape_cast %274 : vector<8xf32> to vector<8x1xf32>
    %276 = vector.broadcast %275 : vector<8x1xf32> to vector<8x8xf32>
    %277 = arith.subf %273, %276 : vector<8x8xf32>
    %278 = math.exp %277 : vector<8x8xf32>
    %cst_125 = arith.constant dense<0.000000e+00> : vector<8xf32>
    %279 = vector.multi_reduction <add>, %278, %cst_125 [1] : vector<8x8xf32> to vector<8xf32>
    %280 = vector.shape_cast %279 : vector<8xf32> to vector<8x1xf32>
    %281 = arith.truncf %278 : vector<8x8xf32> to vector<8x8xbf16>
    %cst_126 = arith.constant dense<0.000000e+00> : vector<8x8xf32>
    %282 = tpu.matmul %281, %270, %cst_126 {dimension_numbers = #tpu.dot_dimension_numbers<[1], [0], [0], [1], [0, 0, 1, 1], [], []>} : vector<8x8xbf16>, vector<8x8xbf16>, vector<8x8xf32> -> vector<8x8xf32>
    %283 = tpu.reciprocal %280 {approx = true} : vector<8x1xf32> -> vector<8x1xf32>
    %284 = vector.broadcast %283 : vector<8x1xf32> to vector<8x8xf32>
    %285 = arith.mulf %282, %284 : vector<8x8xf32>
    %286 = arith.truncf %285 : vector<8x8xf32> to vector<8x8xbf16>
    %c0_127 = arith.constant 0 : index
    %c24_128 = arith.constant 24 : index
    %287 = vector.load %arg13[%c0_127, %c24_128] : memref<8x32xbf16, #tpu.memory_space<vmem>>, vector<8x8xbf16>
    tpu.vector_store %arg13[%c0_127, %c24_128], %286 {strides = array<i32>} : memref<8x32xbf16, #tpu.memory_space<vmem>>, vector<8x8xbf16>,
    %c0_129 = arith.constant 0 : index
    %c0_130 = arith.constant 0 : index
    %288 = vector.load %arg13[%c0_129, %c0_130] : memref<8x32xbf16, #tpu.memory_space<vmem>>, vector<8x32xbf16>
    %cst_131 = arith.constant dense<0.000000e+00> : vector<8x32xf32>
    %289 = tpu.matmul %288, %189, %cst_131 {dimension_numbers = #tpu.dot_dimension_numbers<[1], [0], [0], [1], [0, 0, 1, 1], [], []>} : vector<8x32xbf16>, vector<32x32xbf16>, vector<8x32xf32> -> vector<8x32xf32>
    %c7_132 = arith.constant 7 : index
    %c0_133 = arith.constant 0 : index
    %c0_134 = arith.constant 0 : index
    %290 = vector.load %arg6[%c7_132, %c0_133, %c0_134] : memref<8x1x32xf32, #tpu.memory_space<vmem>>, vector<1x1x32xf32>
    %291 = vector.shape_cast %290 : vector<1x1x32xf32> to vector<1x32xf32>
    %292 = vector.broadcast %291 : vector<1x32xf32> to vector<8x32xf32>
    %293 = arith.addf %289, %292 : vector<8x32xf32>
    %294 = arith.addf %156, %293 : vector<8x32xf32>
    %cst_135 = arith.constant dense<0.000000e+00> : vector<8xf32>
    %295 = vector.multi_reduction <add>, %294, %cst_135 [1] : vector<8x32xf32> to vector<8xf32>
    %296 = vector.shape_cast %295 : vector<8xf32> to vector<8x1xf32>
    %cst_136 = arith.constant 3.200000e+01 : f32
    %297 = vector.broadcast %cst_136 : f32 to vector<8x1xf32>
    %298 = arith.divf %296, %297 : vector<8x1xf32>
    %299 = vector.broadcast %298 : vector<8x1xf32> to vector<8x32xf32>
    %300 = arith.subf %294, %299 : vector<8x32xf32>
    %301 = arith.mulf %300, %300 : vector<8x32xf32>
    %cst_137 = arith.constant dense<0.000000e+00> : vector<8xf32>
    %302 = vector.multi_reduction <add>, %301, %cst_137 [1] : vector<8x32xf32> to vector<8xf32>
    %303 = vector.shape_cast %302 : vector<8xf32> to vector<8x1xf32>
    %cst_138 = arith.constant 0.0322580636 : f32
    %304 = vector.broadcast %cst_138 : f32 to vector<8x1xf32>
    %305 = arith.mulf %303, %304 : vector<8x1xf32>
    %cst_139 = arith.constant 9.99999997E-7 : f32
    %306 = vector.broadcast %cst_139 : f32 to vector<8x1xf32>
    %307 = arith.addf %305, %306 : vector<8x1xf32>
    %308 = math.rsqrt %307 : vector<8x1xf32>
    %c4_140 = arith.constant 4 : index
    %c0_141 = arith.constant 0 : index
    %c0_142 = arith.constant 0 : index
    %309 = vector.load %arg11[%c4_140, %c0_141, %c0_142] : memref<6x1x32xf32, #tpu.memory_space<vmem>>, vector<1x1x32xf32>
    %310 = vector.shape_cast %309 : vector<1x1x32xf32> to vector<1x32xf32>
    %311 = vector.broadcast %308 : vector<8x1xf32> to vector<8x32xf32>
    %312 = arith.mulf %300, %311 : vector<8x32xf32>
    %313 = vector.broadcast %310 : vector<1x32xf32> to vector<8x32xf32>
    %314 = arith.mulf %313, %312 : vector<8x32xf32>
    %c5_143 = arith.constant 5 : index
    %c0_144 = arith.constant 0 : index
    %c0_145 = arith.constant 0 : index
    %315 = vector.load %arg11[%c5_143, %c0_144, %c0_145] : memref<6x1x32xf32, #tpu.memory_space<vmem>>, vector<1x1x32xf32>
    %316 = vector.shape_cast %315 : vector<1x1x32xf32> to vector<1x32xf32>
    %317 = vector.broadcast %316 : vector<1x32xf32> to vector<8x32xf32>
    %318 = arith.addf %314, %317 : vector<8x32xf32>
    %319 = arith.truncf %318 : vector<8x32xf32> to vector<8x32xbf16>
    %c0_146 = arith.constant 0 : index
    %c0_147 = arith.constant 0 : index
    %320 = vector.load %arg7[%c0_146, %c0_147] : memref<32x64xbf16, #tpu.memory_space<vmem>>, vector<32x64xbf16>
    %cst_148 = arith.constant dense<0.000000e+00> : vector<8x64xf32>
    %321 = tpu.matmul %319, %320, %cst_148 {dimension_numbers = #tpu.dot_dimension_numbers<[1], [0], [0], [1], [0, 0, 1, 1], [], []>} : vector<8x32xbf16>, vector<32x64xbf16>, vector<8x64xf32> -> vector<8x64xf32>
    %c0_149 = arith.constant 0 : index
    %c0_150 = arith.constant 0 : index
    %322 = vector.load %arg8[%c0_149, %c0_150] : memref<1x64xf32, #tpu.memory_space<vmem>>, vector<1x64xf32>
    %323 = vector.broadcast %322 : vector<1x64xf32> to vector<8x64xf32>
    %324 = arith.addf %321, %323 : vector<8x64xf32>
    %cst_151 = arith.constant 0.000000e+00 : f32
    %325 = vector.broadcast %cst_151 : f32 to vector<8x64xf32>
    %326 = arith.maximumf %324, %325 : vector<8x64xf32>
    %327 = arith.truncf %326 : vector<8x64xf32> to vector<8x64xbf16>
    %c0_152 = arith.constant 0 : index
    %c0_153 = arith.constant 0 : index
    %328 = vector.load %arg9[%c0_152, %c0_153] : memref<64x32xbf16, #tpu.memory_space<vmem>>, vector<64x32xbf16>
    %cst_154 = arith.constant dense<0.000000e+00> : vector<8x32xf32>
    %329 = tpu.matmul %327, %328, %cst_154 {dimension_numbers = #tpu.dot_dimension_numbers<[1], [0], [0], [1], [0, 0, 1, 1], [], []>} : vector<8x64xbf16>, vector<64x32xbf16>, vector<8x32xf32> -> vector<8x32xf32>
    %c0_155 = arith.constant 0 : index
    %c0_156 = arith.constant 0 : index
    %330 = vector.load %arg10[%c0_155, %c0_156] : memref<1x32xf32, #tpu.memory_space<vmem>>, vector<1x32xf32>
    %331 = vector.broadcast %330 : vector<1x32xf32> to vector<8x32xf32>
    %332 = arith.addf %329, %331 : vector<8x32xf32>
    %333 = arith.addf %294, %332 : vector<8x32xf32>
    %c0_157 = arith.constant 0 : index
    %c0_158 = arith.constant 0 : index
    %c0_159 = arith.constant 0 : index
    %334 = vector.load %arg12[%c0_157, %c0_158, %c0_159] : memref<1x8x32xf32, #tpu.memory_space<vmem>>, vector<1x8x32xf32>
    %335 = vector.shape_cast %334 : vector<1x8x32xf32> to vector<8x32xf32>
    %336 = vector.shape_cast %333 : vector<8x32xf32> to vector<1x8x32xf32>
    tpu.vector_store %arg12[%c0_157, %c0_158, %c0_159], %336 {strides = array<i32>} : memref<1x8x32xf32, #tpu.memory_space<vmem>>, vector<1x8x32xf32>,
    return
  }
  func.func @transform_0(%arg0: i32) -> (i32, i32, i32) {
    %c0_i32 = arith.constant 0 : i32
    %c0_i32_0 = arith.constant 0 : i32
    %c0_i32_1 = arith.constant 0 : i32
    return %arg0, %c0_i32, %c0_i32_0 : i32, i32, i32
  }
  func.func @transform_1(%arg0: i32) -> (i32, i32, i32) {
    %c0_i32 = arith.constant 0 : i32
    %c0_i32_0 = arith.constant 0 : i32
    %c0_i32_1 = arith.constant 0 : i32
    return %arg0, %c0_i32, %c0_i32_0 : i32, i32, i32
  }
  func.func @transform_2(%arg0: i32) -> (i32, i32, i32) {
    %c0_i32 = arith.constant 0 : i32
    %c0_i32_0 = arith.constant 0 : i32
    %c0_i32_1 = arith.constant 0 : i32
    return %arg0, %c0_i32, %c0_i32_0 : i32, i32, i32
  }
  func.func @transform_3(%arg0: i32) -> (i32, i32, i32) {
    %c0_i32 = arith.constant 0 : i32
    %c0_i32_0 = arith.constant 0 : i32
    %c0_i32_1 = arith.constant 0 : i32
    return %arg0, %c0_i32, %c0_i32_0 : i32, i32, i32
  }
  func.func @transform_4(%arg0: i32) -> (i32, i32, i32) {
    %c0_i32 = arith.constant 0 : i32
    %c0_i32_0 = arith.constant 0 : i32
    %c0_i32_1 = arith.constant 0 : i32
    %c0_i32_2 = arith.constant 0 : i32
    return %c0_i32, %c0_i32_0, %c0_i32_1 : i32, i32, i32
  }
  func.func @transform_5(%arg0: i32) -> (i32, i32, i32) {
    %c0_i32 = arith.constant 0 : i32
    %c0_i32_0 = arith.constant 0 : i32
    %c0_i32_1 = arith.constant 0 : i32
    %c0_i32_2 = arith.constant 0 : i32
    return %c0_i32, %c0_i32_0, %c0_i32_1 : i32, i32, i32
  }
  func.func @transform_6(%arg0: i32) -> (i32, i32) {
    %c0_i32 = arith.constant 0 : i32
    %c0_i32_0 = arith.constant 0 : i32
    %c0_i32_1 = arith.constant 0 : i32
    return %c0_i32, %c0_i32_0 : i32, i32
  }
  func.func @transform_7(%arg0: i32) -> (i32, i32) {
    %c0_i32 = arith.constant 0 : i32
    %c0_i32_0 = arith.constant 0 : i32
    %c0_i32_1 = arith.constant 0 : i32
    return %c0_i32, %c0_i32_0 : i32, i32
  }
  func.func @transform_8(%arg0: i32) -> (i32, i32) {
    %c0_i32 = arith.constant 0 : i32
    %c0_i32_0 = arith.constant 0 : i32
    %c0_i32_1 = arith.constant 0 : i32
    return %c0_i32, %c0_i32_0 : i32, i32
  }
  func.func @transform_9(%arg0: i32) -> (i32, i32) {
    %c0_i32 = arith.constant 0 : i32
    %c0_i32_0 = arith.constant 0 : i32
    %c0_i32_1 = arith.constant 0 : i32
    return %c0_i32, %c0_i32_0 : i32, i32
  }
  func.func @transform_10(%arg0: i32) -> (i32, i32, i32) {
    %c0_i32 = arith.constant 0 : i32
    %c0_i32_0 = arith.constant 0 : i32
    %c0_i32_1 = arith.constant 0 : i32
    %c0_i32_2 = arith.constant 0 : i32
    return %c0_i32, %c0_i32_0, %c0_i32_1 : i32, i32, i32
  }
  func.func @transform_11(%arg0: i32) -> (i32, i32, i32) {
    %c0_i32 = arith.constant 0 : i32
    %c0_i32_0 = arith.constant 0 : i32
    %c0_i32_1 = arith.constant 0 : i32
    return %arg0, %c0_i32, %c0_i32_0 : i32, i32, i32
  }
}

</mosaic_0001>

<llo_original>
// kernel: tpu_custom_call.1
$region0: #{tpu_custom_call.1}
  #allocation0 [shape = 'u32[]', space=smem, size = 0x4, offset = 0x4, fixed_abs, tag = 'smem constant byte address 0x4 - core index']
  #allocation1 [shape = 'u32[144,128]{1,0:T(1,128)}', space=vmem, size = 0x12000, scoped, tag = 'internal scratch']
  #allocation2 [shape = 'bf16[8,32]{1,0:T(8,128)(2,1)}', space=vmem, size = 0x800, scoped, tag = 'scratch operand']
  %s0 = inlined_call_operand.vmem [shape: f32[2,8,32], index: 0, kind: input, shape index: {}]
  %s1 = inlined_call_operand.vmem [shape: bf16[2,8,32], index: 1, kind: input, shape index: {}]
  %s2 = inlined_call_operand.hbm [shape: s32[2,1,8], index: 2, kind: input, shape index: {}]
  %s3 = inlined_call_operand.hbm [shape: s32[2,1,8], index: 3, kind: input, shape index: {}]
  %s4 = inlined_call_operand.hbm [shape: bf16[8,32,32], index: 4, kind: input, shape index: {}]
  %s5 = inlined_call_operand.vmem [shape: f32[8,1,32], index: 5, kind: input, shape index: {}]
  %s6 = inlined_call_operand.vmem [shape: bf16[32,64], index: 6, kind: input, shape index: {}]
  %s7 = inlined_call_operand.vmem [shape: f32[1,64], index: 7, kind: input, shape index: {}]
  %s8 = inlined_call_operand.vmem [shape: bf16[64,32], index: 8, kind: input, shape index: {}]
  %s9 = inlined_call_operand.vmem [shape: f32[1,32], index: 9, kind: input, shape index: {}]
  %s10 = inlined_call_operand.vmem [shape: f32[6,1,32], index: 10, kind: input, shape index: {}]
  %s11 = inlined_call_operand.hbm [shape: f32[2,8,32], index: 11, kind: output, shape index: {}]
  %s12 = sld [smem:[#allocation0]]
  $region89: #{tpu_custom_call.1} parent=0
    _
  %s14 = ssub.s32 1, %s12
  %s15 = scalar_select 0, %s14, %s12
  $region1: #{tpu_custom_call.1} parent=0
    #allocation3 [shape = 'u8[1024]{0}', space=vmem, size = 0x400, scoped, tag = 'input window, operand 2']
    #allocation4 [shape = 's32[2]{0}', space=sflag, size = 0x8, scoped, tag = 'scoped memory for tpu_custom_call.1']
    #allocation5 [shape = 's32[2]{0}', space=sflag, size = 0x8, scoped, tag = 'scoped memory for tpu_custom_call.1']
    #allocation6 [shape = 'u8[1024]{0}', space=vmem, size = 0x400, scoped, tag = 'input window, operand 3']
    #allocation7 [shape = 's32[2]{0}', space=sflag, size = 0x8, scoped, tag = 'scoped memory for tpu_custom_call.1']
    #allocation8 [shape = 'u8[65536]{0}', space=vmem, size = 0x10000, scoped, tag = 'input window, operand 4, single buffered']
    #allocation9 [shape = 'u8[8192]{0}', space=vmem, size = 0x2000, scoped, tag = 'output window, operand 0']
    %16 = vsyncpa [#allocation4], 0
    %s17 = scalar_lea.sflag [#allocation4], 1
    %18 = vsyncpa %s17, 0
    %19 = vsyncpa [#allocation7], 0
    %s20 = scalar_lea.sflag [#allocation7], 1
    %21 = vsyncpa %s20, 0
    %22 = vsyncpa [#allocation5], 0
    %s23 = scalar_lea.sflag [#allocation5], 1
    %24 = vsyncpa %s23, 0
    loop: start=0, step=1, limit=4
    $region2: #{tpu_custom_call.1} parent=1 // loop_pre_header
      _
    $region3: #{tpu_custom_call.1} parent=1 // loop_header
      %s26 = sphi 0, %s30
      %p27 = scmp.ge.s32.totalorder %s26, 4
      %s36 = sphi 0, %s38
      %s39 = sphi 0, %s36
      %s40 = sphi 0, %s39
      %s56 = sphi 0, %s40
      %s62 = sphi 0, %s64
      %s65 = sphi 0, %s62
      %s66 = sphi 0, %s65
      %s82 = sphi 0, %s66
      %s88 = sphi 0, %s90
      %s91 = sphi 0, %s88
      %s92 = sphi 0, %s91
      %s108 = sphi 0, %s92
      %s114 = sphi 0, %s116
      %s117 = sphi 0, %s114
      %s118 = sphi 0, %s117
      %s134 = sphi 0, %s118
      %s138 = sphi 0, %s138
      %s140 = sphi 0, %s138
      %s141 = sphi 0, %s140
      %s155 = sphi 0, %s141
      %s159 = sphi 0, %s159
      %s161 = sphi 0, %s159
      %s162 = sphi 0, %s161
      %s176 = sphi 0, %s162
      %s180 = sphi 0, %s180
      %s182 = sphi 0, %s180
      %s183 = sphi 0, %s182
      %s197 = sphi 0, %s183
      %s201 = sphi 0, %s201
      %s203 = sphi 0, %s201
      %s204 = sphi 0, %s203
      %s218 = sphi 0, %s204
      %s222 = sphi 0, %s222
      %s224 = sphi 0, %s222
      %s225 = sphi 0, %s224
      %s239 = sphi 0, %s225
      %s243 = sphi 0, %s243
      %s245 = sphi 0, %s243
      %s246 = sphi 0, %s245
      %s260 = sphi 0, %s246
      %s264 = sphi 0, %s264
      %s266 = sphi 0, %s264
      %s267 = sphi 0, %s266
      %s281 = sphi 0, %s267
      %s287 = sphi 0, %s289
      %s290 = sphi 0, %s287
      %s291 = sphi 0, %s290
      %s307 = sphi 0, %s291
    $region4: #{tpu_custom_call.1} parent=1 // loop_header_branch
      %29 = sbr.rel (%p27) target = $region8
    $region5: #{tpu_custom_call.1} parent=1 // loop_body
      %s31 = ssub.s32 %s26, 1
      %s32 = ssub.s32 %s26, 2
      %s33 = sadd.s32 %s26, 1
      %s34 = ssub.s32 %s26, %s33
      %p35 = scmp.eq.s32.totalorder %s34, 0
      %s37 = sadd.s32 %s36, 1
      %s38 = scalar_select %p35, %s36, %s37
      %p41 = pneg %p35
      %p42 = scmp.eq.s32.totalorder %s26, 1
      %p43 = por %p41, %p42
      %p44 = scmp.ne.s32.totalorder %s36, %s39
      %p45 = scmp.eq.s32.totalorder %s26, 0
      %p46 = por %p44, %p45
      %p47 = scmp.ne.s32.totalorder %s36, %s39
      %p48 = scmp.eq.s32.totalorder %s31, 1
      %p49 = por %p47, %p48
      %p50 = scmp.ne.s32.totalorder %s39, %s40
      %p51 = scmp.eq.s32.totalorder %s31, 0
      %p52 = por %p50, %p51
      %p53 = scmp.ne.s32.totalorder %s39, %s40
      %p54 = scmp.eq.s32.totalorder %s32, 1
      %p55 = por %p53, %p54
      %p57 = scmp.ne.s32.totalorder %s40, %s56
      %p58 = scmp.eq.s32.totalorder %s32, 0
      %p59 = por %p57, %p58
      %s60 = ssub.s32 %s26, %s33
      %p61 = scmp.eq.s32.totalorder %s60, 0
      %s63 = sadd.s32 %s62, 1
      %s64 = scalar_select %p61, %s62, %s63
      %p67 = pneg %p61
      %p68 = scmp.eq.s32.totalorder %s26, 1
      %p69 = por %p67, %p68
      %p70 = scmp.ne.s32.totalorder %s62, %s65
      %p71 = scmp.eq.s32.totalorder %s26, 0
      %p72 = por %p70, %p71
      %p73 = scmp.ne.s32.totalorder %s62, %s65
      %p74 = scmp.eq.s32.totalorder %s31, 1
      %p75 = por %p73, %p74
      %p76 = scmp.ne.s32.totalorder %s65, %s66
      %p77 = scmp.eq.s32.totalorder %s31, 0
      %p78 = por %p76, %p77
      %p79 = scmp.ne.s32.totalorder %s65, %s66
      %p80 = scmp.eq.s32.totalorder %s32, 1
      %p81 = por %p79, %p80
      %p83 = scmp.ne.s32.totalorder %s66, %s82
      %p84 = scmp.eq.s32.totalorder %s32, 0
      %p85 = por %p83, %p84
      %s86 = ssub.s32 %s26, %s33
      %p87 = scmp.eq.s32.totalorder %s86, 0
      %s89 = sadd.s32 %s88, 1
      %s90 = scalar_select %p87, %s88, %s89
      %p93 = pneg %p87
      %p94 = scmp.eq.s32.totalorder %s26, 1
      %p95 = por %p93, %p94
      %p96 = scmp.ne.s32.totalorder %s88, %s91
      %p97 = scmp.eq.s32.totalorder %s26, 0
      %p98 = por %p96, %p97
      %p99 = scmp.ne.s32.totalorder %s88, %s91
      %p100 = scmp.eq.s32.totalorder %s31, 1
      %p101 = por %p99, %p100
      %p102 = scmp.ne.s32.totalorder %s91, %s92
      %p103 = scmp.eq.s32.totalorder %s31, 0
      %p104 = por %p102, %p103
      %p105 = scmp.ne.s32.totalorder %s91, %s92
      %p106 = scmp.eq.s32.totalorder %s32, 1
      %p107 = por %p105, %p106
      %p109 = scmp.ne.s32.totalorder %s92, %s108
      %p110 = scmp.eq.s32.totalorder %s32, 0
      %p111 = por %p109, %p110
      %s112 = ssub.s32 %s26, %s33
      %p113 = scmp.eq.s32.totalorder %s112, 0
      %s115 = sadd.s32 %s114, 1
      %s116 = scalar_select %p113, %s114, %s115
      %p119 = pneg %p113
      %p120 = scmp.eq.s32.totalorder %s26, 1
      %p121 = por %p119, %p120
      %p122 = scmp.ne.s32.totalorder %s114, %s117
      %p123 = scmp.eq.s32.totalorder %s26, 0
      %p124 = por %p122, %p123
      %p125 = scmp.ne.s32.totalorder %s114, %s117
      %p126 = scmp.eq.s32.totalorder %s31, 1
      %p127 = por %p125, %p126
      %p128 = scmp.ne.s32.totalorder %s117, %s118
      %p129 = scmp.eq.s32.totalorder %s31, 0
      %p130 = por %p128, %p129
      %p131 = scmp.ne.s32.totalorder %s117, %s118
      %p132 = scmp.eq.s32.totalorder %s32, 1
      %p133 = por %p131, %p132
      %p135 = scmp.ne.s32.totalorder %s118, %s134
      %p136 = scmp.eq.s32.totalorder %s32, 0
      %p137 = por %p135, %p136
      %s139 = sadd.s32 %s138, 1
      %p142 = scmp.eq.s32.totalorder %s26, 1
      %p143 = scmp.ne.s32.totalorder %s138, %s140
      %p144 = scmp.eq.s32.totalorder %s26, 0
      %p145 = por %p143, %p144
      %p146 = scmp.ne.s32.totalorder %s138, %s140
      %p147 = scmp.eq.s32.totalorder %s31, 1
      %p148 = por %p146, %p147
      %p149 = scmp.ne.s32.totalorder %s140, %s141
      %p150 = scmp.eq.s32.totalorder %s31, 0
      %p151 = por %p149, %p150
      %p152 = scmp.ne.s32.totalorder %s140, %s141
      %p153 = scmp.eq.s32.totalorder %s32, 1
      %p154 = por %p152, %p153
      %p156 = scmp.ne.s32.totalorder %s141, %s155
      %p157 = scmp.eq.s32.totalorder %s32, 0
      %p158 = por %p156, %p157
      %s160 = sadd.s32 %s159, 1
      %p163 = scmp.eq.s32.totalorder %s26, 1
      %p164 = scmp.ne.s32.totalorder %s159, %s161
      %p165 = scmp.eq.s32.totalorder %s26, 0
      %p166 = por %p164, %p165
      %p167 = scmp.ne.s32.totalorder %s159, %s161
      %p168 = scmp.eq.s32.totalorder %s31, 1
      %p169 = por %p167, %p168
      %p170 = scmp.ne.s32.totalorder %s161, %s162
      %p171 = scmp.eq.s32.totalorder %s31, 0
      %p172 = por %p170, %p171
      %p173 = scmp.ne.s32.totalorder %s161, %s162
      %p174 = scmp.eq.s32.totalorder %s32, 1
      %p175 = por %p173, %p174
      %p177 = scmp.ne.s32.totalorder %s162, %s176
      %p178 = scmp.eq.s32.totalorder %s32, 0
      %p179 = por %p177, %p178
      %s181 = sadd.s32 %s180, 1
      %p184 = scmp.eq.s32.totalorder %s26, 1
      %p185 = scmp.ne.s32.totalorder %s180, %s182
      %p186 = scmp.eq.s32.totalorder %s26, 0
      %p187 = por %p185, %p186
      %p188 = scmp.ne.s32.totalorder %s180, %s182
      %p189 = scmp.eq.s32.totalorder %s31, 1
      %p190 = por %p188, %p189
      %p191 = scmp.ne.s32.totalorder %s182, %s183
      %p192 = scmp.eq.s32.totalorder %s31, 0
      %p193 = por %p191, %p192
      %p194 = scmp.ne.s32.totalorder %s182, %s183
      %p195 = scmp.eq.s32.totalorder %s32, 1
      %p196 = por %p194, %p195
      %p198 = scmp.ne.s32.totalorder %s183, %s197
      %p199 = scmp.eq.s32.totalorder %s32, 0
      %p200 = por %p198, %p199
      %s202 = sadd.s32 %s201, 1
      %p205 = scmp.eq.s32.totalorder %s26, 1
      %p206 = scmp.ne.s32.totalorder %s201, %s203
      %p207 = scmp.eq.s32.totalorder %s26, 0
      %p208 = por %p206, %p207
      %p209 = scmp.ne.s32.totalorder %s201, %s203
      %p210 = scmp.eq.s32.totalorder %s31, 1
      %p211 = por %p209, %p210
      %p212 = scmp.ne.s32.totalorder %s203, %s204
      %p213 = scmp.eq.s32.totalorder %s31, 0
      %p214 = por %p212, %p213
      %p215 = scmp.ne.s32.totalorder %s203, %s204
      %p216 = scmp.eq.s32.totalorder %s32, 1
      %p217 = por %p215, %p216
      %p219 = scmp.ne.s32.totalorder %s204, %s218
      %p220 = scmp.eq.s32.totalorder %s32, 0
      %p221 = por %p219, %p220
      %s223 = sadd.s32 %s222, 1
      %p226 = scmp.eq.s32.totalorder %s26, 1
      %p227 = scmp.ne.s32.totalorder %s222, %s224
      %p228 = scmp.eq.s32.totalorder %s26, 0
      %p229 = por %p227, %p228
      %p230 = scmp.ne.s32.totalorder %s222, %s224
      %p231 = scmp.eq.s32.totalorder %s31, 1
      %p232 = por %p230, %p231
      %p233 = scmp.ne.s32.totalorder %s224, %s225
      %p234 = scmp.eq.s32.totalorder %s31, 0
      %p235 = por %p233, %p234
      %p236 = scmp.ne.s32.totalorder %s224, %s225
      %p237 = scmp.eq.s32.totalorder %s32, 1
      %p238 = por %p236, %p237
      %p240 = scmp.ne.s32.totalorder %s225, %s239
      %p241 = scmp.eq.s32.totalorder %s32, 0
      %p242 = por %p240, %p241
      %s244 = sadd.s32 %s243, 1
      %p247 = scmp.eq.s32.totalorder %s26, 1
      %p248 = scmp.ne.s32.totalorder %s243, %s245
      %p249 = scmp.eq.s32.totalorder %s26, 0
      %p250 = por %p248, %p249
      %p251 = scmp.ne.s32.totalorder %s243, %s245
      %p252 = scmp.eq.s32.totalorder %s31, 1
      %p253 = por %p251, %p252
      %p254 = scmp.ne.s32.totalorder %s245, %s246
      %p255 = scmp.eq.s32.totalorder %s31, 0
      %p256 = por %p254, %p255
      %p257 = scmp.ne.s32.totalorder %s245, %s246
      %p258 = scmp.eq.s32.totalorder %s32, 1
      %p259 = por %p257, %p258
      %p261 = scmp.ne.s32.totalorder %s246, %s260
      %p262 = scmp.eq.s32.totalorder %s32, 0
      %p263 = por %p261, %p262
      %s265 = sadd.s32 %s264, 1
      %p268 = scmp.eq.s32.totalorder %s26, 1
      %p269 = scmp.ne.s32.totalorder %s264, %s266
      %p270 = scmp.eq.s32.totalorder %s26, 0
      %p271 = por %p269, %p270
      %p272 = scmp.ne.s32.totalorder %s264, %s266
      %p273 = scmp.eq.s32.totalorder %s31, 1
      %p274 = por %p272, %p273
      %p275 = scmp.ne.s32.totalorder %s266, %s267
      %p276 = scmp.eq.s32.totalorder %s31, 0
      %p277 = por %p275, %p276
      %p278 = scmp.ne.s32.totalorder %s266, %s267
      %p279 = scmp.eq.s32.totalorder %s32, 1
      %p280 = por %p278, %p279
      %p282 = scmp.ne.s32.totalorder %s267, %s281
      %p283 = scmp.eq.s32.totalorder %s32, 0
      %p284 = por %p282, %p283
      %s285 = ssub.s32 %s26, %s33
      %p286 = scmp.eq.s32.totalorder %s285, 0
      %s288 = sadd.s32 %s287, 1
      %s289 = scalar_select %p286, %s287, %s288
      %p292 = pneg %p286
      %p293 = scmp.eq.s32.totalorder %s26, 1
      %p294 = por %p292, %p293
      %p295 = scmp.ne.s32.totalorder %s287, %s290
      %p296 = scmp.eq.s32.totalorder %s26, 0
      %p297 = por %p295, %p296
      %p298 = scmp.ne.s32.totalorder %s287, %s290
      %p299 = scmp.eq.s32.totalorder %s31, 1
      %p300 = por %p298, %p299
      %p301 = scmp.ne.s32.totalorder %s290, %s291
      %p302 = scmp.eq.s32.totalorder %s31, 0
      %p303 = por %p301, %p302
      %p304 = scmp.ne.s32.totalorder %s290, %s291
      %p305 = scmp.eq.s32.totalorder %s32, 1
      %p306 = por %p304, %p305
      %p308 = scmp.ne.s32.totalorder %s291, %s307
      %p309 = scmp.eq.s32.totalorder %s32, 0
      %p310 = por %p308, %p309
      %p311 = scmp.le.s32.totalorder 1, %s26
      %p312 = scmp.lt.s32.totalorder %s26, 3
      %p313 = pnand %p311, %p312
      %p314 = pneg %p313
      // Predicated region
      $region9: #{tpu_custom_call.1} parent=5 // pred_check
        _
      $region10: #{tpu_custom_call.1} parent=5 // pred_check_branch
        %316 = sbr.rel (%p313) target = $region12
      $region11: #{tpu_custom_call.1} parent=5 // pred_region
        %s317 = ssub.s32 %s26, 1
        // Predicated region
        $region13: #{tpu_custom_call.1} parent=11 // pred_check
          %p318 = pneg %p151
        $region14: #{tpu_custom_call.1} parent=11 // pred_check_branch
          %320 = sbr.rel (%p318) target = $region16
        $region15: #{tpu_custom_call.1} parent=11 // pred_region
          %s322 = ssub.s32 2048, 2048
          %323 = vsyncadd [#allocation7], %s322
          %s324 = sshll.u32 [#allocation8], 4
          %s325 = int_to_ptr.vmem [resolvable:$true] %s324
          %330 = dma.hbm_to_vmem [thread:$0]  %s4, 2048, %s325, [#allocation7], 64, 64, 4
        $region16: #{tpu_custom_call.1} parent=11 // pred_fallthru
          _
        // Predicated region
        $region17: #{tpu_custom_call.1} parent=11 // pred_check
          %p331 = pneg %p172
        $region18: #{tpu_custom_call.1} parent=11 // pred_check_branch
          %333 = sbr.rel (%p331) target = $region20
        $region19: #{tpu_custom_call.1} parent=11 // pred_region
          _
        $region20: #{tpu_custom_call.1} parent=11 // pred_fallthru
          _
        // Predicated region
        $region21: #{tpu_custom_call.1} parent=11 // pred_check
          %p334 = pneg %p193
        $region22: #{tpu_custom_call.1} parent=11 // pred_check_branch
          %336 = sbr.rel (%p334) target = $region24
        $region23: #{tpu_custom_call.1} parent=11 // pred_region
          _
        $region24: #{tpu_custom_call.1} parent=11 // pred_fallthru
          _
        // Predicated region
        $region25: #{tpu_custom_call.1} parent=11 // pred_check
          %p337 = pneg %p214
        $region26: #{tpu_custom_call.1} parent=11 // pred_check_branch
          %339 = sbr.rel (%p337) target = $region28
        $region27: #{tpu_custom_call.1} parent=11 // pred_region
          _
        $region28: #{tpu_custom_call.1} parent=11 // pred_fallthru
          _
        // Predicated region
        $region29: #{tpu_custom_call.1} parent=11 // pred_check
          %p340 = pneg %p235
        $region30: #{tpu_custom_call.1} parent=11 // pred_check_branch
          %342 = sbr.rel (%p340) target = $region32
        $region31: #{tpu_custom_call.1} parent=11 // pred_region
          _
        $region32: #{tpu_custom_call.1} parent=11 // pred_fallthru
          _
        // Predicated region
        $region33: #{tpu_custom_call.1} parent=11 // pred_check
          %p343 = pneg %p256
        $region34: #{tpu_custom_call.1} parent=11 // pred_check_branch
          %345 = sbr.rel (%p343) target = $region36
        $region35: #{tpu_custom_call.1} parent=11 // pred_region
          _
        $region36: #{tpu_custom_call.1} parent=11 // pred_fallthru
          _
        // Predicated region
        $region37: #{tpu_custom_call.1} parent=11 // pred_check
          %p346 = pneg %p277
        $region38: #{tpu_custom_call.1} parent=11 // pred_check_branch
          %348 = sbr.rel (%p346) target = $region40
        $region39: #{tpu_custom_call.1} parent=11 // pred_region
          _
        $region40: #{tpu_custom_call.1} parent=11 // pred_fallthru
          _
      $region12: #{tpu_custom_call.1} parent=5 // pred_fallthru
        _
      %p349 = scmp.lt.s32.totalorder %s26, 2
      // Predicated region
      $region41: #{tpu_custom_call.1} parent=5 // pred_check
        %p350 = pneg %p349
      $region42: #{tpu_custom_call.1} parent=5 // pred_check_branch
        %352 = sbr.rel (%p350) target = $region44
      $region43: #{tpu_custom_call.1} parent=5 // pred_region
        // Predicated region
        $region45: #{tpu_custom_call.1} parent=43 // pred_check
          %p353 = pneg %p46
        $region46: #{tpu_custom_call.1} parent=43 // pred_check_branch
          %355 = sbr.rel (%p353) target = $region48
        $region47: #{tpu_custom_call.1} parent=43 // pred_region
          %p356 = scmp.lt.s32.totalorder %s26, 1
          %s357 = scalar_select %p356, %s26, 1
          %s358 = smul.addr %s357, 8
          %s359 = scalar_lea.vmem %s0, %s358
        $region48: #{tpu_custom_call.1} parent=43 // pred_fallthru
          _
        // Predicated region
        $region49: #{tpu_custom_call.1} parent=43 // pred_check
          %p360 = pneg %p72
        $region50: #{tpu_custom_call.1} parent=43 // pred_check_branch
          %362 = sbr.rel (%p360) target = $region52
        $region51: #{tpu_custom_call.1} parent=43 // pred_region
          %p363 = scmp.lt.s32.totalorder %s26, 1
          %s364 = scalar_select %p363, %s26, 1
          %s365 = smul.addr %s364, 4
          %s366 = scalar_lea.vmem %s1, %s365
        $region52: #{tpu_custom_call.1} parent=43 // pred_fallthru
          _
        // Predicated region
        $region53: #{tpu_custom_call.1} parent=43 // pred_check
          %p367 = pneg %p98
        $region54: #{tpu_custom_call.1} parent=43 // pred_check_branch
          %369 = sbr.rel (%p367) target = $region56
        $region55: #{tpu_custom_call.1} parent=43 // pred_region
          %s370 = sand.u32 %s88, 1
          %s371 = scalar_lea.sflag [#allocation4], %s370
          %s372 = sand.u32 %s88, 1
          %s373 = scalar_lea.vmem [#allocation3], %s372
          %s375 = ssub.s32 16, 16
          %376 = vsyncadd %s371, %s375
          %s377 = smul.addr %s26, 16
          %s378 = scalar_lea.hbm %s2, %s377
          %s380 = sshll.u32 %s373, 4
          %s381 = int_to_ptr.vmem [resolvable:$true] %s380
          %383 = dma.hbm_to_vmem [thread:$0]  %s378, 16, %s381, %s371
        $region56: #{tpu_custom_call.1} parent=43 // pred_fallthru
          _
        // Predicated region
        $region57: #{tpu_custom_call.1} parent=43 // pred_check
          %p384 = pneg %p124
        $region58: #{tpu_custom_call.1} parent=43 // pred_check_branch
          %386 = sbr.rel (%p384) target = $region60
        $region59: #{tpu_custom_call.1} parent=43 // pred_region
          %s387 = sand.u32 %s26, 1
          %s388 = scalar_lea.sflag [#allocation7], %s387
          %s389 = sand.u32 %s114, 1
          %s390 = scalar_lea.vmem [#allocation6], %s389
          %s392 = ssub.s32 16, 16
          %393 = vsyncadd %s388, %s392
          %s394 = smul.addr %s26, 16
          %s395 = scalar_lea.hbm %s3, %s394
          %s397 = sshll.u32 %s390, 4
          %s398 = int_to_ptr.vmem [resolvable:$true] %s397
          %400 = dma.hbm_to_vmem [thread:$0]  %s395, 16, %s398, %s388
        $region60: #{tpu_custom_call.1} parent=43 // pred_fallthru
          _
      $region44: #{tpu_custom_call.1} parent=5 // pred_fallthru
        _
      %p401 = scmp.le.s32.totalorder 1, %s26
      %p402 = scmp.lt.s32.totalorder %s26, 3
      %p403 = pnand %p401, %p402
      %p404 = pneg %p403
      // Predicated region
      $region61: #{tpu_custom_call.1} parent=5 // pred_check
        _
      $region62: #{tpu_custom_call.1} parent=5 // pred_check_branch
        %406 = sbr.rel (%p403) target = $region64
      $region63: #{tpu_custom_call.1} parent=5 // pred_region
        %s407 = ssub.s32 %s26, 1
        %s408 = sand.u32 %s91, 1
        %s409 = scalar_lea.sflag [#allocation4], %s408
        %s410 = sand.u32 %s91, 1
        %s411 = scalar_lea.vmem [#allocation3], %s410
        // Predicated region
        $region65: #{tpu_custom_call.1} parent=63 // pred_check
          %p412 = pneg %p104
        $region66: #{tpu_custom_call.1} parent=63 // pred_check_branch
          %414 = sbr.rel (%p412) target = $region68
        $region67: #{tpu_custom_call.1} parent=63 // pred_region
          %415 = dma.done %s409, 16
        $region68: #{tpu_custom_call.1} parent=63 // pred_fallthru
          _
        %s416 = sand.u32 %s31, 1
        %s417 = scalar_lea.sflag [#allocation7], %s416
        %s418 = sand.u32 %s117, 1
        %s419 = scalar_lea.vmem [#allocation6], %s418
        // Predicated region
        $region69: #{tpu_custom_call.1} parent=63 // pred_check
          %p420 = pneg %p130
        $region70: #{tpu_custom_call.1} parent=63 // pred_check_branch
          %422 = sbr.rel (%p420) target = $region72
        $region71: #{tpu_custom_call.1} parent=63 // pred_region
          %423 = dma.done %s417, 16
        $region72: #{tpu_custom_call.1} parent=63 // pred_fallthru
          _
        // Predicated region
        $region73: #{tpu_custom_call.1} parent=63 // pred_check
          %p424 = pneg %p151
        $region74: #{tpu_custom_call.1} parent=63 // pred_check_branch
          %426 = sbr.rel (%p424) target = $region76
        $region75: #{tpu_custom_call.1} parent=63 // pred_region
          %427 = dma.done [#allocation7], 2048
        $region76: #{tpu_custom_call.1} parent=63 // pred_fallthru
          _
        %p428 = scmp.lt.s32.totalorder %s31, 1
        %s429 = scalar_select %p428, %s31, 1
        %s430 = smul.addr %s429, 8
        %s431 = scalar_lea.vmem %s0, %s430
        %p432 = pneg %p52
        %p433 = pneg %p49
        %p434 = scmp.lt.s32.totalorder %s31, 1
        %s435 = scalar_select %p434, %s31, 1
        %s436 = smul.addr %s435, 4
        %s437 = scalar_lea.vmem %s1, %s436
        %p438 = pneg %p78
        %p439 = pneg %p75
        %s440 = sand.u32 %s91, 1
        %s441 = scalar_lea.sflag [#allocation4], %s440
        %s442 = sand.u32 %s91, 1
        %s443 = scalar_lea.vmem [#allocation3], %s442
        %p444 = pneg %p104
        %p445 = pneg %p101
        %s446 = sand.u32 %s31, 1
        %s447 = scalar_lea.sflag [#allocation7], %s446
        %s448 = sand.u32 %s117, 1
        %s449 = scalar_lea.vmem [#allocation6], %s448
        %p450 = pneg %p130
        %p451 = pneg %p127
        %p452 = pneg %p151
        %p453 = pneg %p148
        %p454 = pneg %p172
        %p455 = pneg %p169
        %p456 = pneg %p193
        %p457 = pneg %p190
        %p458 = pneg %p214
        %p459 = pneg %p211
        %p460 = pneg %p235
        %p461 = pneg %p232
        %p462 = pneg %p256
        %p463 = pneg %p253
        %p464 = pneg %p277
        %p465 = pneg %p274
        %p466 = pneg %p303
        %p467 = pneg %p300
        %s468 = sand.u32 %s290, 1
        %s469 = scalar_lea.sflag [#allocation5], %s468
        %s470 = sand.u32 %s290, 1
        %s471 = smul.addr %s470, 8
        %s472 = scalar_lea.vmem [#allocation9], %s471
        %p473 = scmp.lt.s32.totalorder %s31, 1
        %s474 = scalar_select %p473, %s31, 1
        %s475 = smul.addr %s474, 8
        %s476 = scalar_lea.vmem %s0, %s475
        %p477 = scmp.lt.s32.totalorder %s31, 1
        %s478 = scalar_select %p477, %s31, 1
        %s479 = smul.addr %s478, 4
        %s480 = scalar_lea.vmem %s1, %s479
        %v482 = vlaneseq
        %v483 = vshrl.u32 %v482, 7
        %v484 = vlaneseq
        %v485 = vand.u32 %v484, 127
        %vm486 = vcmp.ge.s32.totalorder %v483, %v485
        %v487 = vld [vmem:[%s411] sm:$0x1]
        %vm488 = vcmp.ne.s32.totalorder %v487, 0
        %v489 = vsel %vm488, 1, 0
        %v490 = vlaneseq
        %v491 = vshrl.u32 %v490, 7
        %v492 = vsub.s32 0, %v491
        %v493 = vrot.slane %v489, %v492
        %vm494 = vcmp.eq.s32.totalorder %v493, 1
        %vm495 = vmand %vm486, %vm494
        %v496 = vsel %vm495, 0.0, -1e+09
        %v497 = vld [vmem:[%s419] sm:$0x1]
        %vm498 = vcmp.ne.s32.totalorder %v497, 0
        %v499 = vsel %vm498, 0.0, -1e+09
        %v500 = vld [vmem:[%s476] sm:$0xff]
        %v501 = vld [vmem:[%s480] sm:$0xf]
        %vm502 = vcmask 261120
        %v503 = vsel %vm502, %v500, 0.0
        %504 = vadd.xlane.f32.xlu0 %v503
        %v505 = vpop.xlane.xlu0 %504
        %v506 = vrcp.pop 32.0
        %v507 = vmul.f32 %v505, %v506
        %v508 = vsub.f32 %v500, %v507
        %v509 = vmul.f32 %v508, %v508
        %v510 = vsel %vm502, %v509, 0.0
        %511 = vadd.xlane.f32.xlu0 %v510
        %v512 = vpop.xlane.xlu0 %511
        %v513 = vmul.f32 %v512, 0.032258064
        %v514 = vadd.f32 %v513, 1e-06
        %v515 = vrsqrt.pop %v514
        %v516 = vld [vmem:[%s10] sm:$0x1]
        %v517 = vmul.f32 %v508, %v515
        %v519 = vlaneseq
        %v520 = vshrl.u32 %v519, 7
        %v521 = vsub.s32 0, %v520
        %v522 = vrot.slane %v516, %v521
        %v524 = vmul.f32 %v522, %v517
        %s525 = scalar_lea.vmem %s10, 1
        %v526 = vld [vmem:[%s525] sm:$0x1]
        %v528 = vlaneseq
        %v529 = vshrl.u32 %v528, 7
        %v530 = vsub.s32 0, %v529
        %v531 = vrot.slane %v526, %v530
        %v533 = vadd.f32 %v524, %v531
        %v534 = vpack.c.bf16 %v533, %v533
        %v535 = vld [vmem:[#allocation8] sm:$0xf]
        %v536 = vld [vmem:[#allocation8 + $0x4] sm:$0xf]
        %v537 = vld [vmem:[#allocation8 + $0x8] sm:$0xf]
        %v538 = vld [vmem:[#allocation8 + $0xc] sm:$0xf]
        %s539 = scalar_lea.vmem [#allocation8], 16
        %v540 = vld [vmem:[%s539] sm:$0xf]
        %v541 = vld [vmem:[%s539 + $0x4] sm:$0xf]
        %v542 = vld [vmem:[%s539 + $0x8] sm:$0xf]
        %v543 = vld [vmem:[%s539 + $0xc] sm:$0xf]
        %s544 = scalar_lea.vmem [#allocation8], 32
        %v545 = vld [vmem:[%s544] sm:$0xf]
        %v546 = vld [vmem:[%s544 + $0x4] sm:$0xf]
        %v547 = vld [vmem:[%s544 + $0x8] sm:$0xf]
        %v548 = vld [vmem:[%s544 + $0xc] sm:$0xf]
        %s549 = scalar_lea.vmem [#allocation8], 48
        %v550 = vld [vmem:[%s549] sm:$0xf]
        %v551 = vld [vmem:[%s549 + $0x4] sm:$0xf]
        %v552 = vld [vmem:[%s549 + $0x8] sm:$0xf]
        %v553 = vld [vmem:[%s549 + $0xc] sm:$0xf]
        %v554 = vld [vmem:[%s5] sm:$0x1]
        %v556 = vlaneseq
        %v557 = vshrl.u32 %v556, 7
        %v558 = vsub.s32 0, %v557
        %v559 = vrot.slane %v554, %v558
        %v565 = vunpack.c.l.b16 %v535
        %v566 = vunpack.c.l.b16 %v536
        %v567 = vunpack.c.l.b16 %v537
        %v568 = vunpack.c.l.b16 %v538
        %v569 = vpack.c.b16 %v566, %v565
        %v570 = vpack.c.b16 %v568, %v567
        %v574 = vsel %vm502, %v534, 0
        %576 = vmatprep.subr.bf16.mxu0 0
        %577 = vmatpush1.bf16.msra.mxu0 0
        %578 = vmatprep.subr.bf16.mxu0 0
        %579 = vmatpush1.bf16.msra.mxu0 0
        %580 = vmatprep.subr.bf16.mxu0 0
        %581 = vmatpush1.bf16.msra.mxu0 0
        %582 = vmatprep.subr.bf16.mxu0 0
        %583 = vmatpush1.bf16.msra.mxu0 0
        %584 = vmatprep.subr.bf16.mxu0 0
        %585 = vmatpush1.bf16.msra.mxu0 0
        %586 = vmatprep.subr.bf16.mxu0 0
        %587 = vmatpush1.bf16.msra.mxu0 0
        %588 = vmatprep.subr.bf16.mxu0 0
        %589 = vmatpush1.bf16.msra.mxu0 %v570
        %590 = vmatprep.subr.bf16.mxu0 0
        %591 = vmatpush1.bf16.msra.mxu0 %v569
        %592 = vmatprep.subr.bf16.mxu0 0
        %593 = vmatpush2.bf16.msra.mxu0 0
        %594 = vmatprep.subr.bf16.mxu0 0
        %595 = vmatpush2.bf16.msra.mxu0 0
        %596 = vmatprep.subr.bf16.mxu0 0
        %597 = vmatpush2.bf16.msra.mxu0 0
        %598 = vmatprep.subr.bf16.mxu0 0
        %599 = vmatpush2.bf16.msra.mxu0 0
        %600 = vmatprep.subr.bf16.mxu0 0
        %601 = vmatpush2.bf16.msra.mxu0 0
        %602 = vmatprep.subr.bf16.mxu0 0
        %603 = vmatpush2.bf16.msra.mxu0 0
        %604 = vmatprep.subr.bf16.mxu0 0
        %605 = vmatpush2.bf16.msra.mxu0 0
        %606 = vmatprep.subr.bf16.mxu0 0
        %607 = vmatpush2.bf16.msra.mxu0 0
        %608 = vmatprep.mubr.bf16.mxu0 0
        %609 = vmatmul.mubr.bf16.gmra.mxu0 %v574
        %v610 = vpop.f32.mrf.mxu0
        %v611 = vadd.f32 %v559, %v610
        %v612 = vpop.f32.mrf.mxu0
        %v613 = vpop.f32.mrf.mxu0
        %v614 = vpop.f32.mrf.mxu0
        %615 = vdwg.mxu0
        %v616 = vpack.c.bf16 %v611, %v611
        %s617 = scalar_lea.vmem %s5, 1
        %v618 = vld [vmem:[%s617] sm:$0x1]
        %v620 = vlaneseq
        %v621 = vshrl.u32 %v620, 7
        %v622 = vsub.s32 0, %v621
        %v623 = vrot.slane %v618, %v622
        %v629 = vunpack.c.l.b16 %v540
        %v630 = vunpack.c.l.b16 %v541
        %v631 = vunpack.c.l.b16 %v542
        %v632 = vunpack.c.l.b16 %v543
        %v633 = vpack.c.b16 %v630, %v629
        %v634 = vpack.c.b16 %v632, %v631
        %637 = vmatprep.subr.bf16.mxu0 0
        %638 = vmatpush1.bf16.msra.mxu0 0
        %639 = vmatprep.subr.bf16.mxu0 0
        %640 = vmatpush1.bf16.msra.mxu0 0
        %641 = vmatprep.subr.bf16.mxu0 0
        %642 = vmatpush1.bf16.msra.mxu0 0
        %643 = vmatprep.subr.bf16.mxu0 0
        %644 = vmatpush1.bf16.msra.mxu0 0
        %645 = vmatprep.subr.bf16.mxu0 0
        %646 = vmatpush1.bf16.msra.mxu0 0
        %647 = vmatprep.subr.bf16.mxu0 0
        %648 = vmatpush1.bf16.msra.mxu0 0
        %649 = vmatprep.subr.bf16.mxu0 0
        %650 = vmatpush1.bf16.msra.mxu0 %v634
        %651 = vmatprep.subr.bf16.mxu0 0
        %652 = vmatpush1.bf16.msra.mxu0 %v633
        %653 = vmatprep.subr.bf16.mxu0 0
        %654 = vmatpush2.bf16.msra.mxu0 0
        %655 = vmatprep.subr.bf16.mxu0 0
        %656 = vmatpush2.bf16.msra.mxu0 0
        %657 = vmatprep.subr.bf16.mxu0 0
        %658 = vmatpush2.bf16.msra.mxu0 0
        %659 = vmatprep.subr.bf16.mxu0 0
        %660 = vmatpush2.bf16.msra.mxu0 0
        %661 = vmatprep.subr.bf16.mxu0 0
        %662 = vmatpush2.bf16.msra.mxu0 0
        %663 = vmatprep.subr.bf16.mxu0 0
        %664 = vmatpush2.bf16.msra.mxu0 0
        %665 = vmatprep.subr.bf16.mxu0 0
        %666 = vmatpush2.bf16.msra.mxu0 0
        %667 = vmatprep.subr.bf16.mxu0 0
        %668 = vmatpush2.bf16.msra.mxu0 0
        %669 = vmatprep.mubr.bf16.mxu0 0
        %670 = vmatmul.mubr.bf16.gmra.mxu0 %v574
        %v671 = vpop.f32.mrf.mxu0
        %v672 = vadd.f32 %v623, %v671
        %v673 = vpop.f32.mrf.mxu0
        %v674 = vpop.f32.mrf.mxu0
        %v675 = vpop.f32.mrf.mxu0
        %676 = vdwg.mxu0
        %v677 = vpack.c.bf16 %v672, %v672
        %s678 = scalar_lea.vmem %s5, 2
        %v679 = vld [vmem:[%s678] sm:$0x1]
        %v681 = vlaneseq
        %v682 = vshrl.u32 %v681, 7
        %v683 = vsub.s32 0, %v682
        %v684 = vrot.slane %v679, %v683
        %v690 = vunpack.c.l.b16 %v545
        %v691 = vunpack.c.l.b16 %v546
        %v692 = vunpack.c.l.b16 %v547
        %v693 = vunpack.c.l.b16 %v548
        %v694 = vpack.c.b16 %v691, %v690
        %v695 = vpack.c.b16 %v693, %v692
        %698 = vmatprep.subr.bf16.mxu0 0
        %699 = vmatpush1.bf16.msra.mxu0 0
        %700 = vmatprep.subr.bf16.mxu0 0
        %701 = vmatpush1.bf16.msra.mxu0 0
        %702 = vmatprep.subr.bf16.mxu0 0
        %703 = vmatpush1.bf16.msra.mxu0 0
        %704 = vmatprep.subr.bf16.mxu0 0
        %705 = vmatpush1.bf16.msra.mxu0 0
        %706 = vmatprep.subr.bf16.mxu0 0
        %707 = vmatpush1.bf16.msra.mxu0 0
        %708 = vmatprep.subr.bf16.mxu0 0
        %709 = vmatpush1.bf16.msra.mxu0 0
        %710 = vmatprep.subr.bf16.mxu0 0
        %711 = vmatpush1.bf16.msra.mxu0 %v695
        %712 = vmatprep.subr.bf16.mxu0 0
        %713 = vmatpush1.bf16.msra.mxu0 %v694
        %714 = vmatprep.subr.bf16.mxu0 0
        %715 = vmatpush2.bf16.msra.mxu0 0
        %716 = vmatprep.subr.bf16.mxu0 0
        %717 = vmatpush2.bf16.msra.mxu0 0
        %718 = vmatprep.subr.bf16.mxu0 0
        %719 = vmatpush2.bf16.msra.mxu0 0
        %720 = vmatprep.subr.bf16.mxu0 0
        %721 = vmatpush2.bf16.msra.mxu0 0
        %722 = vmatprep.subr.bf16.mxu0 0
        %723 = vmatpush2.bf16.msra.mxu0 0
        %724 = vmatprep.subr.bf16.mxu0 0
        %725 = vmatpush2.bf16.msra.mxu0 0
        %726 = vmatprep.subr.bf16.mxu0 0
        %727 = vmatpush2.bf16.msra.mxu0 0
        %728 = vmatprep.subr.bf16.mxu0 0
        %729 = vmatpush2.bf16.msra.mxu0 0
        %730 = vmatprep.mubr.bf16.mxu0 0
        %731 = vmatmul.mubr.bf16.gmra.mxu0 %v574
        %v732 = vpop.f32.mrf.mxu0
        %v733 = vadd.f32 %v684, %v732
        %v734 = vpop.f32.mrf.mxu0
        %v735 = vpop.f32.mrf.mxu0
        %v736 = vpop.f32.mrf.mxu0
        %737 = vdwg.mxu0
        %v738 = vpack.c.bf16 %v733, %v733
        %vm739 = vcmask 64512
        %v741 = vsel %vm739, %v616, 0
        %v744 = vsel %vm739, %v677, 0
        %746 = vmatprep.subr.bf16.mxu0 0
        %747 = vmatpush1.bf16.xpose.msra.mxu0 0
        %748 = vmatprep.subr.bf16.mxu0 0
        %749 = vmatpush1.bf16.xpose.msra.mxu0 0
        %750 = vmatprep.subr.bf16.mxu0 0
        %751 = vmatpush1.bf16.xpose.msra.mxu0 0
        %752 = vmatprep.subr.bf16.mxu0 0
        %753 = vmatpush1.bf16.xpose.msra.mxu0 0
        %754 = vmatprep.subr.bf16.mxu0 0
        %755 = vmatpush1.bf16.xpose.msra.mxu0 0
        %756 = vmatprep.subr.bf16.mxu0 0
        %757 = vmatpush1.bf16.xpose.msra.mxu0 0
        %758 = vmatprep.subr.bf16.mxu0 0
        %759 = vmatpush1.bf16.xpose.msra.mxu0 0
        %760 = vmatprep.subr.bf16.mxu0 0
        %761 = vmatpush1.bf16.xpose.msra.mxu0 %v744
        %762 = vmatprep.subr.bf16.mxu0 0
        %763 = vmatpush2.bf16.xpose.msra.mxu0 0
        %764 = vmatprep.subr.bf16.mxu0 0
        %765 = vmatpush2.bf16.xpose.msra.mxu0 0
        %766 = vmatprep.subr.bf16.mxu0 0
        %767 = vmatpush2.bf16.xpose.msra.mxu0 0
        %768 = vmatprep.subr.bf16.mxu0 0
        %769 = vmatpush2.bf16.xpose.msra.mxu0 0
        %770 = vmatprep.subr.bf16.mxu0 0
        %771 = vmatpush2.bf16.xpose.msra.mxu0 0
        %772 = vmatprep.subr.bf16.mxu0 0
        %773 = vmatpush2.bf16.xpose.msra.mxu0 0
        %774 = vmatprep.subr.bf16.mxu0 0
        %775 = vmatpush2.bf16.xpose.msra.mxu0 0
        %776 = vmatprep.subr.bf16.mxu0 0
        %777 = vmatpush2.bf16.xpose.msra.mxu0 0
        %778 = vmatprep.mubr.bf16.mxu0 0
        %779 = vmatmul.mubr.bf16.gmra.mxu0 %v741
        %v780 = vpop.f32.mrf.mxu0
        %v781 = vadd.f32 %v496, %v780
        %v782 = vpop.f32.mrf.mxu0
        %v783 = vpop.f32.mrf.mxu0
        %v784 = vpop.f32.mrf.mxu0
        %785 = vdwg.mxu0
        %v786 = vsel %vm739, %v781, -inf
        %787 = vmax.xlane.f32.xlu0 %v786
        %v788 = vpop.xlane.xlu0 %787
        %v789 = vsub.f32 %v781, %v788
        %v790 = vmul.f32 %v789, 1.442695
        %v791 = vpow.pop %v790
        %v792 = vsel %vm739, %v791, 0.0
        %793 = vadd.xlane.f32.xlu0 %v792
        %v794 = vpop.xlane.xlu0 %793
        %v795 = vpack.c.bf16 %v791, %v791
        %v797 = vsel %vm739, %v795, 0
        %vm799 = vcmask 1043456
        %v801 = vsel %vm799, %v738, 0
        %803 = vmatprep.subr.bf16.mxu0 0
        %804 = vmatpush1.bf16.msra.mxu0 0
        %805 = vmatprep.subr.bf16.mxu0 0
        %806 = vmatpush1.bf16.msra.mxu0 0
        %807 = vmatprep.subr.bf16.mxu0 0
        %808 = vmatpush1.bf16.msra.mxu0 0
        %809 = vmatprep.subr.bf16.mxu0 0
        %810 = vmatpush1.bf16.msra.mxu0 0
        %811 = vmatprep.subr.bf16.mxu0 0
        %812 = vmatpush1.bf16.msra.mxu0 0
        %813 = vmatprep.subr.bf16.mxu0 0
        %814 = vmatpush1.bf16.msra.mxu0 0
        %815 = vmatprep.subr.bf16.mxu0 0
        %816 = vmatpush1.bf16.msra.mxu0 0
        %817 = vmatprep.subr.bf16.mxu0 0
        %818 = vmatpush1.bf16.msra.mxu0 %v801
        %819 = vmatprep.subr.bf16.mxu0 0
        %820 = vmatpush2.bf16.msra.mxu0 0
        %821 = vmatprep.subr.bf16.mxu0 0
        %822 = vmatpush2.bf16.msra.mxu0 0
        %823 = vmatprep.subr.bf16.mxu0 0
        %824 = vmatpush2.bf16.msra.mxu0 0
        %825 = vmatprep.subr.bf16.mxu0 0
        %826 = vmatpush2.bf16.msra.mxu0 0
        %827 = vmatprep.subr.bf16.mxu0 0
        %828 = vmatpush2.bf16.msra.mxu0 0
        %829 = vmatprep.subr.bf16.mxu0 0
        %830 = vmatpush2.bf16.msra.mxu0 0
        %831 = vmatprep.subr.bf16.mxu0 0
        %832 = vmatpush2.bf16.msra.mxu0 0
        %833 = vmatprep.subr.bf16.mxu0 0
        %834 = vmatpush2.bf16.msra.mxu0 0
        %835 = vmatprep.mubr.bf16.mxu0 0
        %836 = vmatmul.mubr.bf16.gmra.mxu0 %v797
        %v837 = vpop.f32.mrf.mxu0
        %v838 = vadd.f32 0.0, %v837
        %v839 = vpop.f32.mrf.mxu0
        %v840 = vpop.f32.mrf.mxu0
        %v841 = vpop.f32.mrf.mxu0
        %842 = vdwg.mxu0
        %v843 = vrcp.pop %v794
        %v844 = vmul.f32 %v838, %v843
        %v845 = vpack.c.bf16 %v844, %v844
        %vm846 = vcmask 60416
        %847 = vst.msk [vmem:[#allocation2] sm:$0xf] %vm846, %v845
        %849 = vrot.lane.b32.xlu0 %v616, 120
        %v850 = vpop.permute.xlu0 %849
        %852 = vrot.lane.b32.xlu0 %v677, 120
        %v853 = vpop.permute.xlu0 %852
        %v855 = vsel %vm739, %v850, 0
        %v858 = vsel %vm739, %v853, 0
        %860 = vmatprep.subr.bf16.mxu0 0
        %861 = vmatpush1.bf16.xpose.msra.mxu0 0
        %862 = vmatprep.subr.bf16.mxu0 0
        %863 = vmatpush1.bf16.xpose.msra.mxu0 0
        %864 = vmatprep.subr.bf16.mxu0 0
        %865 = vmatpush1.bf16.xpose.msra.mxu0 0
        %866 = vmatprep.subr.bf16.mxu0 0
        %867 = vmatpush1.bf16.xpose.msra.mxu0 0
        %868 = vmatprep.subr.bf16.mxu0 0
        %869 = vmatpush1.bf16.xpose.msra.mxu0 0
        %870 = vmatprep.subr.bf16.mxu0 0
        %871 = vmatpush1.bf16.xpose.msra.mxu0 0
        %872 = vmatprep.subr.bf16.mxu0 0
        %873 = vmatpush1.bf16.xpose.msra.mxu0 0
        %874 = vmatprep.subr.bf16.mxu0 0
        %875 = vmatpush1.bf16.xpose.msra.mxu0 %v858
        %876 = vmatprep.subr.bf16.mxu0 0
        %877 = vmatpush2.bf16.xpose.msra.mxu0 0
        %878 = vmatprep.subr.bf16.mxu0 0
        %879 = vmatpush2.bf16.xpose.msra.mxu0 0
        %880 = vmatprep.subr.bf16.mxu0 0
        %881 = vmatpush2.bf16.xpose.msra.mxu0 0
        %882 = vmatprep.subr.bf16.mxu0 0
        %883 = vmatpush2.bf16.xpose.msra.mxu0 0
        %884 = vmatprep.subr.bf16.mxu0 0
        %885 = vmatpush2.bf16.xpose.msra.mxu0 0
        %886 = vmatprep.subr.bf16.mxu0 0
        %887 = vmatpush2.bf16.xpose.msra.mxu0 0
        %888 = vmatprep.subr.bf16.mxu0 0
        %889 = vmatpush2.bf16.xpose.msra.mxu0 0
        %890 = vmatprep.subr.bf16.mxu0 0
        %891 = vmatpush2.bf16.xpose.msra.mxu0 0
        %892 = vmatprep.mubr.bf16.mxu0 0
        %893 = vmatmul.mubr.bf16.gmra.mxu0 %v855
        %v894 = vpop.f32.mrf.mxu0
        %v895 = vadd.f32 %v496, %v894
        %v896 = vpop.f32.mrf.mxu0
        %v897 = vpop.f32.mrf.mxu0
        %v898 = vpop.f32.mrf.mxu0
        %899 = vdwg.mxu0
        %v900 = vsel %vm739, %v895, -inf
        %901 = vmax.xlane.f32.xlu0 %v900
        %v902 = vpop.xlane.xlu0 %901
        %v903 = vsub.f32 %v895, %v902
        %v904 = vmul.f32 %v903, 1.442695
        %v905 = vpow.pop %v904
        %v906 = vsel %vm739, %v905, 0.0
        %907 = vadd.xlane.f32.xlu0 %v906
        %v908 = vpop.xlane.xlu0 %907
        %v909 = vpack.c.bf16 %v905, %v905
        %911 = vrot.lane.b32.xlu0 %v738, 120
        %v912 = vpop.permute.xlu0 %911
        %v914 = vsel %vm739, %v909, 0
        %v917 = vsel %vm799, %v912, 0
        %919 = vmatprep.subr.bf16.mxu0 0
        %920 = vmatpush1.bf16.msra.mxu0 0
        %921 = vmatprep.subr.bf16.mxu0 0
        %922 = vmatpush1.bf16.msra.mxu0 0
        %923 = vmatprep.subr.bf16.mxu0 0
        %924 = vmatpush1.bf16.msra.mxu0 0
        %925 = vmatprep.subr.bf16.mxu0 0
        %926 = vmatpush1.bf16.msra.mxu0 0
        %927 = vmatprep.subr.bf16.mxu0 0
        %928 = vmatpush1.bf16.msra.mxu0 0
        %929 = vmatprep.subr.bf16.mxu0 0
        %930 = vmatpush1.bf16.msra.mxu0 0
        %931 = vmatprep.subr.bf16.mxu0 0
        %932 = vmatpush1.bf16.msra.mxu0 0
        %933 = vmatprep.subr.bf16.mxu0 0
        %934 = vmatpush1.bf16.msra.mxu0 %v917
        %935 = vmatprep.subr.bf16.mxu0 0
        %936 = vmatpush2.bf16.msra.mxu0 0
        %937 = vmatprep.subr.bf16.mxu0 0
        %938 = vmatpush2.bf16.msra.mxu0 0
        %939 = vmatprep.subr.bf16.mxu0 0
        %940 = vmatpush2.bf16.msra.mxu0 0
        %941 = vmatprep.subr.bf16.mxu0 0
        %942 = vmatpush2.bf16.msra.mxu0 0
        %943 = vmatprep.subr.bf16.mxu0 0
        %944 = vmatpush2.bf16.msra.mxu0 0
        %945 = vmatprep.subr.bf16.mxu0 0
        %946 = vmatpush2.bf16.msra.mxu0 0
        %947 = vmatprep.subr.bf16.mxu0 0
        %948 = vmatpush2.bf16.msra.mxu0 0
        %949 = vmatprep.subr.bf16.mxu0 0
        %950 = vmatpush2.bf16.msra.mxu0 0
        %951 = vmatprep.mubr.bf16.mxu0 0
        %952 = vmatmul.mubr.bf16.gmra.mxu0 %v914
        %v953 = vpop.f32.mrf.mxu0
        %v954 = vadd.f32 0.0, %v953
        %v955 = vpop.f32.mrf.mxu0
        %v956 = vpop.f32.mrf.mxu0
        %v957 = vpop.f32.mrf.mxu0
        %958 = vdwg.mxu0
        %v959 = vrcp.pop %v908
        %v960 = vmul.f32 %v954, %v959
        %v961 = vpack.c.bf16 %v960, %v960
        %v963 = vunpack.c.l.b16 %v961
        %v964 = vpack.c.b16 %v963, %v963
        %965 = vrot.lane.b32.xlu0 %v964, 8
        %v966 = vpop.permute.xlu0 %965
        %vm968 = vcmask 126016
        %969 = vst.msk [vmem:[#allocation2] sm:$0xf] %vm968, %v966
        %970 = vrot.lane.b32.xlu0 %v616, 112
        %v971 = vpop.permute.xlu0 %970
        %972 = vrot.lane.b32.xlu0 %v677, 112
        %v973 = vpop.permute.xlu0 %972
        %v975 = vsel %vm739, %v971, 0
        %v978 = vsel %vm739, %v973, 0
        %980 = vmatprep.subr.bf16.mxu0 0
        %981 = vmatpush1.bf16.xpose.msra.mxu0 0
        %982 = vmatprep.subr.bf16.mxu0 0
        %983 = vmatpush1.bf16.xpose.msra.mxu0 0
        %984 = vmatprep.subr.bf16.mxu0 0
        %985 = vmatpush1.bf16.xpose.msra.mxu0 0
        %986 = vmatprep.subr.bf16.mxu0 0
        %987 = vmatpush1.bf16.xpose.msra.mxu0 0
        %988 = vmatprep.subr.bf16.mxu0 0
        %989 = vmatpush1.bf16.xpose.msra.mxu0 0
        %990 = vmatprep.subr.bf16.mxu0 0
        %991 = vmatpush1.bf16.xpose.msra.mxu0 0
        %992 = vmatprep.subr.bf16.mxu0 0
        %993 = vmatpush1.bf16.xpose.msra.mxu0 0
        %994 = vmatprep.subr.bf16.mxu0 0
        %995 = vmatpush1.bf16.xpose.msra.mxu0 %v978
        %996 = vmatprep.subr.bf16.mxu0 0
        %997 = vmatpush2.bf16.xpose.msra.mxu0 0
        %998 = vmatprep.subr.bf16.mxu0 0
        %999 = vmatpush2.bf16.xpose.msra.mxu0 0
        %1000 = vmatprep.subr.bf16.mxu0 0
        %1001 = vmatpush2.bf16.xpose.msra.mxu0 0
        %1002 = vmatprep.subr.bf16.mxu0 0
        %1003 = vmatpush2.bf16.xpose.msra.mxu0 0
        %1004 = vmatprep.subr.bf16.mxu0 0
        %1005 = vmatpush2.bf16.xpose.msra.mxu0 0
        %1006 = vmatprep.subr.bf16.mxu0 0
        %1007 = vmatpush2.bf16.xpose.msra.mxu0 0
        %1008 = vmatprep.subr.bf16.mxu0 0
        %1009 = vmatpush2.bf16.xpose.msra.mxu0 0
        %1010 = vmatprep.subr.bf16.mxu0 0
        %1011 = vmatpush2.bf16.xpose.msra.mxu0 0
        %1012 = vmatprep.mubr.bf16.mxu0 0
        %1013 = vmatmul.mubr.bf16.gmra.mxu0 %v975
        %v1014 = vpop.f32.mrf.mxu0
        %v1015 = vadd.f32 %v496, %v1014
        %v1016 = vpop.f32.mrf.mxu0
        %v1017 = vpop.f32.mrf.mxu0
        %v1018 = vpop.f32.mrf.mxu0
        %1019 = vdwg.mxu0
        %v1020 = vsel %vm739, %v1015, -inf
        %1021 = vmax.xlane.f32.xlu0 %v1020
        %v1022 = vpop.xlane.xlu0 %1021
        %v1023 = vsub.f32 %v1015, %v1022
        %v1024 = vmul.f32 %v1023, 1.442695
        %v1025 = vpow.pop %v1024
        %v1026 = vsel %vm739, %v1025, 0.0
        %1027 = vadd.xlane.f32.xlu0 %v1026
        %v1028 = vpop.xlane.xlu0 %1027
        %v1029 = vpack.c.bf16 %v1025, %v1025
        %1030 = vrot.lane.b32.xlu0 %v738, 112
        %v1031 = vpop.permute.xlu0 %1030
        %v1033 = vsel %vm739, %v1029, 0
        %v1036 = vsel %vm799, %v1031, 0
        %1038 = vmatprep.subr.bf16.mxu0 0
        %1039 = vmatpush1.bf16.msra.mxu0 0
        %1040 = vmatprep.subr.bf16.mxu0 0
        %1041 = vmatpush1.bf16.msra.mxu0 0
        %1042 = vmatprep.subr.bf16.mxu0 0
        %1043 = vmatpush1.bf16.msra.mxu0 0
        %1044 = vmatprep.subr.bf16.mxu0 0
        %1045 = vmatpush1.bf16.msra.mxu0 0
        %1046 = vmatprep.subr.bf16.mxu0 0
        %1047 = vmatpush1.bf16.msra.mxu0 0
        %1048 = vmatprep.subr.bf16.mxu0 0
        %1049 = vmatpush1.bf16.msra.mxu0 0
        %1050 = vmatprep.subr.bf16.mxu0 0
        %1051 = vmatpush1.bf16.msra.mxu0 0
        %1052 = vmatprep.subr.bf16.mxu0 0
        %1053 = vmatpush1.bf16.msra.mxu0 %v1036
        %1054 = vmatprep.subr.bf16.mxu0 0
        %1055 = vmatpush2.bf16.msra.mxu0 0
        %1056 = vmatprep.subr.bf16.mxu0 0
        %1057 = vmatpush2.bf16.msra.mxu0 0
        %1058 = vmatprep.subr.bf16.mxu0 0
        %1059 = vmatpush2.bf16.msra.mxu0 0
        %1060 = vmatprep.subr.bf16.mxu0 0
        %1061 = vmatpush2.bf16.msra.mxu0 0
        %1062 = vmatprep.subr.bf16.mxu0 0
        %1063 = vmatpush2.bf16.msra.mxu0 0
        %1064 = vmatprep.subr.bf16.mxu0 0
        %1065 = vmatpush2.bf16.msra.mxu0 0
        %1066 = vmatprep.subr.bf16.mxu0 0
        %1067 = vmatpush2.bf16.msra.mxu0 0
        %1068 = vmatprep.subr.bf16.mxu0 0
        %1069 = vmatpush2.bf16.msra.mxu0 0
        %1070 = vmatprep.mubr.bf16.mxu0 0
        %1071 = vmatmul.mubr.bf16.gmra.mxu0 %v1033
        %v1072 = vpop.f32.mrf.mxu0
        %v1073 = vadd.f32 0.0, %v1072
        %v1074 = vpop.f32.mrf.mxu0
        %v1075 = vpop.f32.mrf.mxu0
        %v1076 = vpop.f32.mrf.mxu0
        %1077 = vdwg.mxu0
        %v1078 = vrcp.pop %v1028
        %v1079 = vmul.f32 %v1073, %v1078
        %v1080 = vpack.c.bf16 %v1079, %v1079
        %v1082 = vunpack.c.l.b16 %v1080
        %v1083 = vpack.c.b16 %v1082, %v1082
        %1084 = vrot.lane.b32.xlu0 %v1083, 16
        %v1085 = vpop.permute.xlu0 %1084
        %vm1087 = vcmask 191616
        %1088 = vst.msk [vmem:[#allocation2] sm:$0xf] %vm1087, %v1085
        %1089 = vrot.lane.b32.xlu0 %v616, 104
        %v1090 = vpop.permute.xlu0 %1089
        %1091 = vrot.lane.b32.xlu0 %v677, 104
        %v1092 = vpop.permute.xlu0 %1091
        %v1094 = vsel %vm739, %v1090, 0
        %v1097 = vsel %vm739, %v1092, 0
        %1099 = vmatprep.subr.bf16.mxu0 0
        %1100 = vmatpush1.bf16.xpose.msra.mxu0 0
        %1101 = vmatprep.subr.bf16.mxu0 0
        %1102 = vmatpush1.bf16.xpose.msra.mxu0 0
        %1103 = vmatprep.subr.bf16.mxu0 0
        %1104 = vmatpush1.bf16.xpose.msra.mxu0 0
        %1105 = vmatprep.subr.bf16.mxu0 0
        %1106 = vmatpush1.bf16.xpose.msra.mxu0 0
        %1107 = vmatprep.subr.bf16.mxu0 0
        %1108 = vmatpush1.bf16.xpose.msra.mxu0 0
        %1109 = vmatprep.subr.bf16.mxu0 0
        %1110 = vmatpush1.bf16.xpose.msra.mxu0 0
        %1111 = vmatprep.subr.bf16.mxu0 0
        %1112 = vmatpush1.bf16.xpose.msra.mxu0 0
        %1113 = vmatprep.subr.bf16.mxu0 0
        %1114 = vmatpush1.bf16.xpose.msra.mxu0 %v1097
        %1115 = vmatprep.subr.bf16.mxu0 0
        %1116 = vmatpush2.bf16.xpose.msra.mxu0 0
        %1117 = vmatprep.subr.bf16.mxu0 0
        %1118 = vmatpush2.bf16.xpose.msra.mxu0 0
        %1119 = vmatprep.subr.bf16.mxu0 0
        %1120 = vmatpush2.bf16.xpose.msra.mxu0 0
        %1121 = vmatprep.subr.bf16.mxu0 0
        %1122 = vmatpush2.bf16.xpose.msra.mxu0 0
        %1123 = vmatprep.subr.bf16.mxu0 0
        %1124 = vmatpush2.bf16.xpose.msra.mxu0 0
        %1125 = vmatprep.subr.bf16.mxu0 0
        %1126 = vmatpush2.bf16.xpose.msra.mxu0 0
        %1127 = vmatprep.subr.bf16.mxu0 0
        %1128 = vmatpush2.bf16.xpose.msra.mxu0 0
        %1129 = vmatprep.subr.bf16.mxu0 0
        %1130 = vmatpush2.bf16.xpose.msra.mxu0 0
        %1131 = vmatprep.mubr.bf16.mxu0 0
        %1132 = vmatmul.mubr.bf16.gmra.mxu0 %v1094
        %v1133 = vpop.f32.mrf.mxu0
        %v1134 = vadd.f32 %v496, %v1133
        %v1135 = vpop.f32.mrf.mxu0
        %v1136 = vpop.f32.mrf.mxu0
        %v1137 = vpop.f32.mrf.mxu0
        %1138 = vdwg.mxu0
        %v1139 = vsel %vm739, %v1134, -inf
        %1140 = vmax.xlane.f32.xlu0 %v1139
        %v1141 = vpop.xlane.xlu0 %1140
        %v1142 = vsub.f32 %v1134, %v1141
        %v1143 = vmul.f32 %v1142, 1.442695
        %v1144 = vpow.pop %v1143
        %v1145 = vsel %vm739, %v1144, 0.0
        %1146 = vadd.xlane.f32.xlu0 %v1145
        %v1147 = vpop.xlane.xlu0 %1146
        %v1148 = vpack.c.bf16 %v1144, %v1144
        %1149 = vrot.lane.b32.xlu0 %v738, 104
        %v1150 = vpop.permute.xlu0 %1149
        %v1152 = vsel %vm739, %v1148, 0
        %v1155 = vsel %vm799, %v1150, 0
        %1157 = vmatprep.subr.bf16.mxu0 0
        %1158 = vmatpush1.bf16.msra.mxu0 0
        %1159 = vmatprep.subr.bf16.mxu0 0
        %1160 = vmatpush1.bf16.msra.mxu0 0
        %1161 = vmatprep.subr.bf16.mxu0 0
        %1162 = vmatpush1.bf16.msra.mxu0 0
        %1163 = vmatprep.subr.bf16.mxu0 0
        %1164 = vmatpush1.bf16.msra.mxu0 0
        %1165 = vmatprep.subr.bf16.mxu0 0
        %1166 = vmatpush1.bf16.msra.mxu0 0
        %1167 = vmatprep.subr.bf16.mxu0 0
        %1168 = vmatpush1.bf16.msra.mxu0 0
        %1169 = vmatprep.subr.bf16.mxu0 0
        %1170 = vmatpush1.bf16.msra.mxu0 0
        %1171 = vmatprep.subr.bf16.mxu0 0
        %1172 = vmatpush1.bf16.msra.mxu0 %v1155
        %1173 = vmatprep.subr.bf16.mxu0 0
        %1174 = vmatpush2.bf16.msra.mxu0 0
        %1175 = vmatprep.subr.bf16.mxu0 0
        %1176 = vmatpush2.bf16.msra.mxu0 0
        %1177 = vmatprep.subr.bf16.mxu0 0
        %1178 = vmatpush2.bf16.msra.mxu0 0
        %1179 = vmatprep.subr.bf16.mxu0 0
        %1180 = vmatpush2.bf16.msra.mxu0 0
        %1181 = vmatprep.subr.bf16.mxu0 0
        %1182 = vmatpush2.bf16.msra.mxu0 0
        %1183 = vmatprep.subr.bf16.mxu0 0
        %1184 = vmatpush2.bf16.msra.mxu0 0
        %1185 = vmatprep.subr.bf16.mxu0 0
        %1186 = vmatpush2.bf16.msra.mxu0 0
        %1187 = vmatprep.subr.bf16.mxu0 0
        %1188 = vmatpush2.bf16.msra.mxu0 0
        %1189 = vmatprep.mubr.bf16.mxu0 0
        %1190 = vmatmul.mubr.bf16.gmra.mxu0 %v1152
        %v1191 = vpop.f32.mrf.mxu0
        %v1192 = vadd.f32 0.0, %v1191
        %v1193 = vpop.f32.mrf.mxu0
        %v1194 = vpop.f32.mrf.mxu0
        %v1195 = vpop.f32.mrf.mxu0
        %1196 = vdwg.mxu0
        %v1197 = vrcp.pop %v1147
        %v1198 = vmul.f32 %v1192, %v1197
        %v1199 = vpack.c.bf16 %v1198, %v1198
        %v1201 = vunpack.c.l.b16 %v1199
        %v1202 = vpack.c.b16 %v1201, %v1201
        %1203 = vrot.lane.b32.xlu0 %v1202, 24
        %v1204 = vpop.permute.xlu0 %1203
        %vm1206 = vcmask 257216
        %1207 = vst.msk [vmem:[#allocation2] sm:$0xf] %vm1206, %v1204
        %v1208 = vld [vmem:[#allocation2] sm:$0xf]
        %s1209 = scalar_lea.vmem %s5, 3
        %v1210 = vld [vmem:[%s1209] sm:$0x1]
        %v1212 = vlaneseq
        %v1213 = vshrl.u32 %v1212, 7
        %v1214 = vsub.s32 0, %v1213
        %v1215 = vrot.slane %v1210, %v1214
        %v1221 = vunpack.c.l.b16 %v550
        %v1222 = vunpack.c.l.b16 %v551
        %v1223 = vunpack.c.l.b16 %v552
        %v1224 = vunpack.c.l.b16 %v553
        %v1225 = vpack.c.b16 %v1222, %v1221
        %v1226 = vpack.c.b16 %v1224, %v1223
        %v1230 = vsel %vm502, %v1208, 0
        %1232 = vmatprep.subr.bf16.mxu0 0
        %1233 = vmatpush1.bf16.msra.mxu0 0
        %1234 = vmatprep.subr.bf16.mxu0 0
        %1235 = vmatpush1.bf16.msra.mxu0 0
        %1236 = vmatprep.subr.bf16.mxu0 0
        %1237 = vmatpush1.bf16.msra.mxu0 0
        %1238 = vmatprep.subr.bf16.mxu0 0
        %1239 = vmatpush1.bf16.msra.mxu0 0
        %1240 = vmatprep.subr.bf16.mxu0 0
        %1241 = vmatpush1.bf16.msra.mxu0 0
        %1242 = vmatprep.subr.bf16.mxu0 0
        %1243 = vmatpush1.bf16.msra.mxu0 0
        %1244 = vmatprep.subr.bf16.mxu0 0
        %1245 = vmatpush1.bf16.msra.mxu0 %v1226
        %1246 = vmatprep.subr.bf16.mxu0 0
        %1247 = vmatpush1.bf16.msra.mxu0 %v1225
        %1248 = vmatprep.subr.bf16.mxu0 0
        %1249 = vmatpush2.bf16.msra.mxu0 0
        %1250 = vmatprep.subr.bf16.mxu0 0
        %1251 = vmatpush2.bf16.msra.mxu0 0
        %1252 = vmatprep.subr.bf16.mxu0 0
        %1253 = vmatpush2.bf16.msra.mxu0 0
        %1254 = vmatprep.subr.bf16.mxu0 0
        %1255 = vmatpush2.bf16.msra.mxu0 0
        %1256 = vmatprep.subr.bf16.mxu0 0
        %1257 = vmatpush2.bf16.msra.mxu0 0
        %1258 = vmatprep.subr.bf16.mxu0 0
        %1259 = vmatpush2.bf16.msra.mxu0 0
        %1260 = vmatprep.subr.bf16.mxu0 0
        %1261 = vmatpush2.bf16.msra.mxu0 0
        %1262 = vmatprep.subr.bf16.mxu0 0
        %1263 = vmatpush2.bf16.msra.mxu0 0
        %1264 = vmatprep.mubr.bf16.mxu0 0
        %1265 = vmatmul.mubr.bf16.gmra.mxu0 %v1230
        %v1266 = vpop.f32.mrf.mxu0
        %v1267 = vadd.f32 %v1215, %v1266
        %v1268 = vpop.f32.mrf.mxu0
        %v1269 = vpop.f32.mrf.mxu0
        %v1270 = vpop.f32.mrf.mxu0
        %1271 = vdwg.mxu0
        %v1272 = vadd.f32 %v500, %v1267
        %v1273 = vsel %vm502, %v1272, 0.0
        %1274 = vadd.xlane.f32.xlu0 %v1273
        %v1275 = vpop.xlane.xlu0 %1274
        %v1276 = vmul.f32 %v1275, %v506
        %v1277 = vsub.f32 %v1272, %v1276
        %v1278 = vmul.f32 %v1277, %v1277
        %v1279 = vsel %vm502, %v1278, 0.0
        %1280 = vadd.xlane.f32.xlu0 %v1279
        %v1281 = vpop.xlane.xlu0 %1280
        %v1282 = vmul.f32 %v1281, 0.032258064
        %v1283 = vadd.f32 %v1282, 1e-06
        %v1284 = vrsqrt.pop %v1283
        %s1285 = scalar_lea.vmem %s10, 2
        %v1286 = vld [vmem:[%s1285] sm:$0x1]
        %v1287 = vmul.f32 %v1277, %v1284
        %v1289 = vlaneseq
        %v1290 = vshrl.u32 %v1289, 7
        %v1291 = vsub.s32 0, %v1290
        %v1292 = vrot.slane %v1286, %v1291
        %v1294 = vmul.f32 %v1292, %v1287
        %s1295 = scalar_lea.vmem %s10, 3
        %v1296 = vld [vmem:[%s1295] sm:$0x1]
        %v1298 = vlaneseq
        %v1299 = vshrl.u32 %v1298, 7
        %v1300 = vsub.s32 0, %v1299
        %v1301 = vrot.slane %v1296, %v1300
        %v1303 = vadd.f32 %v1294, %v1301
        %v1304 = vpack.c.bf16 %v1303, %v1303
        %s1305 = scalar_lea.vmem [#allocation8], 64
        %v1306 = vld [vmem:[%s1305] sm:$0xf]
        %v1307 = vld [vmem:[%s1305 + $0x4] sm:$0xf]
        %v1308 = vld [vmem:[%s1305 + $0x8] sm:$0xf]
        %v1309 = vld [vmem:[%s1305 + $0xc] sm:$0xf]
        %s1310 = scalar_lea.vmem [#allocation8], 80
        %v1311 = vld [vmem:[%s1310] sm:$0xf]
        %v1312 = vld [vmem:[%s1310 + $0x4] sm:$0xf]
        %v1313 = vld [vmem:[%s1310 + $0x8] sm:$0xf]
        %v1314 = vld [vmem:[%s1310 + $0xc] sm:$0xf]
        %s1315 = scalar_lea.vmem [#allocation8], 96
        %v1316 = vld [vmem:[%s1315] sm:$0xf]
        %v1317 = vld [vmem:[%s1315 + $0x4] sm:$0xf]
        %v1318 = vld [vmem:[%s1315 + $0x8] sm:$0xf]
        %v1319 = vld [vmem:[%s1315 + $0xc] sm:$0xf]
        %s1320 = scalar_lea.vmem [#allocation8], 112
        %v1321 = vld [vmem:[%s1320] sm:$0xf]
        %v1322 = vld [vmem:[%s1320 + $0x4] sm:$0xf]
        %v1323 = vld [vmem:[%s1320 + $0x8] sm:$0xf]
        %v1324 = vld [vmem:[%s1320 + $0xc] sm:$0xf]
        %s1325 = scalar_lea.vmem %s5, 4
        %v1326 = vld [vmem:[%s1325] sm:$0x1]
        %v1328 = vlaneseq
        %v1329 = vshrl.u32 %v1328, 7
        %v1330 = vsub.s32 0, %v1329
        %v1331 = vrot.slane %v1326, %v1330
        %v1337 = vunpack.c.l.b16 %v1306
        %v1338 = vunpack.c.l.b16 %v1307
        %v1339 = vunpack.c.l.b16 %v1308
        %v1340 = vunpack.c.l.b16 %v1309
        %v1341 = vpack.c.b16 %v1338, %v1337
        %v1342 = vpack.c.b16 %v1340, %v1339
        %v1346 = vsel %vm502, %v1304, 0
        %1348 = vmatprep.subr.bf16.mxu0 0
        %1349 = vmatpush1.bf16.msra.mxu0 0
        %1350 = vmatprep.subr.bf16.mxu0 0
        %1351 = vmatpush1.bf16.msra.mxu0 0
        %1352 = vmatprep.subr.bf16.mxu0 0
        %1353 = vmatpush1.bf16.msra.mxu0 0
        %1354 = vmatprep.subr.bf16.mxu0 0
        %1355 = vmatpush1.bf16.msra.mxu0 0
        %1356 = vmatprep.subr.bf16.mxu0 0
        %1357 = vmatpush1.bf16.msra.mxu0 0
        %1358 = vmatprep.subr.bf16.mxu0 0
        %1359 = vmatpush1.bf16.msra.mxu0 0
        %1360 = vmatprep.subr.bf16.mxu0 0
        %1361 = vmatpush1.bf16.msra.mxu0 %v1342
        %1362 = vmatprep.subr.bf16.mxu0 0
        %1363 = vmatpush1.bf16.msra.mxu0 %v1341
        %1364 = vmatprep.subr.bf16.mxu0 0
        %1365 = vmatpush2.bf16.msra.mxu0 0
        %1366 = vmatprep.subr.bf16.mxu0 0
        %1367 = vmatpush2.bf16.msra.mxu0 0
        %1368 = vmatprep.subr.bf16.mxu0 0
        %1369 = vmatpush2.bf16.msra.mxu0 0
        %1370 = vmatprep.subr.bf16.mxu0 0
        %1371 = vmatpush2.bf16.msra.mxu0 0
        %1372 = vmatprep.subr.bf16.mxu0 0
        %1373 = vmatpush2.bf16.msra.mxu0 0
        %1374 = vmatprep.subr.bf16.mxu0 0
        %1375 = vmatpush2.bf16.msra.mxu0 0
        %1376 = vmatprep.subr.bf16.mxu0 0
        %1377 = vmatpush2.bf16.msra.mxu0 0
        %1378 = vmatprep.subr.bf16.mxu0 0
        %1379 = vmatpush2.bf16.msra.mxu0 0
        %1380 = vmatprep.mubr.bf16.mxu0 0
        %1381 = vmatmul.mubr.bf16.gmra.mxu0 %v1346
        %v1382 = vpop.f32.mrf.mxu0
        %v1383 = vadd.f32 %v1331, %v1382
        %v1384 = vpop.f32.mrf.mxu0
        %v1385 = vpop.f32.mrf.mxu0
        %v1386 = vpop.f32.mrf.mxu0
        %1387 = vdwg.mxu0
        %v1388 = vpack.c.bf16 %v1383, %v1383
        %s1389 = scalar_lea.vmem %s5, 5
        %v1390 = vld [vmem:[%s1389] sm:$0x1]
        %v1392 = vlaneseq
        %v1393 = vshrl.u32 %v1392, 7
        %v1394 = vsub.s32 0, %v1393
        %v1395 = vrot.slane %v1390, %v1394
        %v1401 = vunpack.c.l.b16 %v1311
        %v1402 = vunpack.c.l.b16 %v1312
        %v1403 = vunpack.c.l.b16 %v1313
        %v1404 = vunpack.c.l.b16 %v1314
        %v1405 = vpack.c.b16 %v1402, %v1401
        %v1406 = vpack.c.b16 %v1404, %v1403
        %v1410 = vsel %vm502, %v501, 0
        %1412 = vmatprep.subr.bf16.mxu0 0
        %1413 = vmatpush1.bf16.msra.mxu0 0
        %1414 = vmatprep.subr.bf16.mxu0 0
        %1415 = vmatpush1.bf16.msra.mxu0 0
        %1416 = vmatprep.subr.bf16.mxu0 0
        %1417 = vmatpush1.bf16.msra.mxu0 0
        %1418 = vmatprep.subr.bf16.mxu0 0
        %1419 = vmatpush1.bf16.msra.mxu0 0
        %1420 = vmatprep.subr.bf16.mxu0 0
        %1421 = vmatpush1.bf16.msra.mxu0 0
        %1422 = vmatprep.subr.bf16.mxu0 0
        %1423 = vmatpush1.bf16.msra.mxu0 0
        %1424 = vmatprep.subr.bf16.mxu0 0
        %1425 = vmatpush1.bf16.msra.mxu0 %v1406
        %1426 = vmatprep.subr.bf16.mxu0 0
        %1427 = vmatpush1.bf16.msra.mxu0 %v1405
        %1428 = vmatprep.subr.bf16.mxu0 0
        %1429 = vmatpush2.bf16.msra.mxu0 0
        %1430 = vmatprep.subr.bf16.mxu0 0
        %1431 = vmatpush2.bf16.msra.mxu0 0
        %1432 = vmatprep.subr.bf16.mxu0 0
        %1433 = vmatpush2.bf16.msra.mxu0 0
        %1434 = vmatprep.subr.bf16.mxu0 0
        %1435 = vmatpush2.bf16.msra.mxu0 0
        %1436 = vmatprep.subr.bf16.mxu0 0
        %1437 = vmatpush2.bf16.msra.mxu0 0
        %1438 = vmatprep.subr.bf16.mxu0 0
        %1439 = vmatpush2.bf16.msra.mxu0 0
        %1440 = vmatprep.subr.bf16.mxu0 0
        %1441 = vmatpush2.bf16.msra.mxu0 0
        %1442 = vmatprep.subr.bf16.mxu0 0
        %1443 = vmatpush2.bf16.msra.mxu0 0
        %1444 = vmatprep.mubr.bf16.mxu0 0
        %1445 = vmatmul.mubr.bf16.gmra.mxu0 %v1410
        %v1446 = vpop.f32.mrf.mxu0
        %v1447 = vadd.f32 %v1395, %v1446
        %v1448 = vpop.f32.mrf.mxu0
        %v1449 = vpop.f32.mrf.mxu0
        %v1450 = vpop.f32.mrf.mxu0
        %1451 = vdwg.mxu0
        %v1452 = vpack.c.bf16 %v1447, %v1447
        %s1453 = scalar_lea.vmem %s5, 6
        %v1454 = vld [vmem:[%s1453] sm:$0x1]
        %v1456 = vlaneseq
        %v1457 = vshrl.u32 %v1456, 7
        %v1458 = vsub.s32 0, %v1457
        %v1459 = vrot.slane %v1454, %v1458
        %v1465 = vunpack.c.l.b16 %v1316
        %v1466 = vunpack.c.l.b16 %v1317
        %v1467 = vunpack.c.l.b16 %v1318
        %v1468 = vunpack.c.l.b16 %v1319
        %v1469 = vpack.c.b16 %v1466, %v1465
        %v1470 = vpack.c.b16 %v1468, %v1467
        %1473 = vmatprep.subr.bf16.mxu0 0
        %1474 = vmatpush1.bf16.msra.mxu0 0
        %1475 = vmatprep.subr.bf16.mxu0 0
        %1476 = vmatpush1.bf16.msra.mxu0 0
        %1477 = vmatprep.subr.bf16.mxu0 0
        %1478 = vmatpush1.bf16.msra.mxu0 0
        %1479 = vmatprep.subr.bf16.mxu0 0
        %1480 = vmatpush1.bf16.msra.mxu0 0
        %1481 = vmatprep.subr.bf16.mxu0 0
        %1482 = vmatpush1.bf16.msra.mxu0 0
        %1483 = vmatprep.subr.bf16.mxu0 0
        %1484 = vmatpush1.bf16.msra.mxu0 0
        %1485 = vmatprep.subr.bf16.mxu0 0
        %1486 = vmatpush1.bf16.msra.mxu0 %v1470
        %1487 = vmatprep.subr.bf16.mxu0 0
        %1488 = vmatpush1.bf16.msra.mxu0 %v1469
        %1489 = vmatprep.subr.bf16.mxu0 0
        %1490 = vmatpush2.bf16.msra.mxu0 0
        %1491 = vmatprep.subr.bf16.mxu0 0
        %1492 = vmatpush2.bf16.msra.mxu0 0
        %1493 = vmatprep.subr.bf16.mxu0 0
        %1494 = vmatpush2.bf16.msra.mxu0 0
        %1495 = vmatprep.subr.bf16.mxu0 0
        %1496 = vmatpush2.bf16.msra.mxu0 0
        %1497 = vmatprep.subr.bf16.mxu0 0
        %1498 = vmatpush2.bf16.msra.mxu0 0
        %1499 = vmatprep.subr.bf16.mxu0 0
        %1500 = vmatpush2.bf16.msra.mxu0 0
        %1501 = vmatprep.subr.bf16.mxu0 0
        %1502 = vmatpush2.bf16.msra.mxu0 0
        %1503 = vmatprep.subr.bf16.mxu0 0
        %1504 = vmatpush2.bf16.msra.mxu0 0
        %1505 = vmatprep.mubr.bf16.mxu0 0
        %1506 = vmatmul.mubr.bf16.gmra.mxu0 %v1410
        %v1507 = vpop.f32.mrf.mxu0
        %v1508 = vadd.f32 %v1459, %v1507
        %v1509 = vpop.f32.mrf.mxu0
        %v1510 = vpop.f32.mrf.mxu0
        %v1511 = vpop.f32.mrf.mxu0
        %1512 = vdwg.mxu0
        %v1513 = vpack.c.bf16 %v1508, %v1508
        %v1515 = vlaneseq
        %v1516 = vshrl.u32 %v1515, 7
        %v1517 = vsub.s32 0, %v1516
        %v1518 = vrot.slane %v499, %v1517
        %v1521 = vsel %vm739, %v1388, 0
        %v1524 = vsel %vm739, %v1452, 0
        %1526 = vmatprep.subr.bf16.mxu0 0
        %1527 = vmatpush1.bf16.xpose.msra.mxu0 0
        %1528 = vmatprep.subr.bf16.mxu0 0
        %1529 = vmatpush1.bf16.xpose.msra.mxu0 0
        %1530 = vmatprep.subr.bf16.mxu0 0
        %1531 = vmatpush1.bf16.xpose.msra.mxu0 0
        %1532 = vmatprep.subr.bf16.mxu0 0
        %1533 = vmatpush1.bf16.xpose.msra.mxu0 0
        %1534 = vmatprep.subr.bf16.mxu0 0
        %1535 = vmatpush1.bf16.xpose.msra.mxu0 0
        %1536 = vmatprep.subr.bf16.mxu0 0
        %1537 = vmatpush1.bf16.xpose.msra.mxu0 0
        %1538 = vmatprep.subr.bf16.mxu0 0
        %1539 = vmatpush1.bf16.xpose.msra.mxu0 0
        %1540 = vmatprep.subr.bf16.mxu0 0
        %1541 = vmatpush1.bf16.xpose.msra.mxu0 %v1524
        %1542 = vmatprep.subr.bf16.mxu0 0
        %1543 = vmatpush2.bf16.xpose.msra.mxu0 0
        %1544 = vmatprep.subr.bf16.mxu0 0
        %1545 = vmatpush2.bf16.xpose.msra.mxu0 0
        %1546 = vmatprep.subr.bf16.mxu0 0
        %1547 = vmatpush2.bf16.xpose.msra.mxu0 0
        %1548 = vmatprep.subr.bf16.mxu0 0
        %1549 = vmatpush2.bf16.xpose.msra.mxu0 0
        %1550 = vmatprep.subr.bf16.mxu0 0
        %1551 = vmatpush2.bf16.xpose.msra.mxu0 0
        %1552 = vmatprep.subr.bf16.mxu0 0
        %1553 = vmatpush2.bf16.xpose.msra.mxu0 0
        %1554 = vmatprep.subr.bf16.mxu0 0
        %1555 = vmatpush2.bf16.xpose.msra.mxu0 0
        %1556 = vmatprep.subr.bf16.mxu0 0
        %1557 = vmatpush2.bf16.xpose.msra.mxu0 0
        %1558 = vmatprep.mubr.bf16.mxu0 0
        %1559 = vmatmul.mubr.bf16.gmra.mxu0 %v1521
        %v1560 = vpop.f32.mrf.mxu0
        %v1561 = vadd.f32 %v1518, %v1560
        %v1562 = vpop.f32.mrf.mxu0
        %v1563 = vpop.f32.mrf.mxu0
        %v1564 = vpop.f32.mrf.mxu0
        %1565 = vdwg.mxu0
        %v1566 = vsel %vm739, %v1561, -inf
        %1567 = vmax.xlane.f32.xlu0 %v1566
        %v1568 = vpop.xlane.xlu0 %1567
        %v1569 = vsub.f32 %v1561, %v1568
        %v1570 = vmul.f32 %v1569, 1.442695
        %v1571 = vpow.pop %v1570
        %v1572 = vsel %vm739, %v1571, 0.0
        %1573 = vadd.xlane.f32.xlu0 %v1572
        %v1574 = vpop.xlane.xlu0 %1573
        %v1575 = vpack.c.bf16 %v1571, %v1571
        %v1577 = vsel %vm739, %v1575, 0
        %v1580 = vsel %vm799, %v1513, 0
        %1582 = vmatprep.subr.bf16.mxu0 0
        %1583 = vmatpush1.bf16.msra.mxu0 0
        %1584 = vmatprep.subr.bf16.mxu0 0
        %1585 = vmatpush1.bf16.msra.mxu0 0
        %1586 = vmatprep.subr.bf16.mxu0 0
        %1587 = vmatpush1.bf16.msra.mxu0 0
        %1588 = vmatprep.subr.bf16.mxu0 0
        %1589 = vmatpush1.bf16.msra.mxu0 0
        %1590 = vmatprep.subr.bf16.mxu0 0
        %1591 = vmatpush1.bf16.msra.mxu0 0
        %1592 = vmatprep.subr.bf16.mxu0 0
        %1593 = vmatpush1.bf16.msra.mxu0 0
        %1594 = vmatprep.subr.bf16.mxu0 0
        %1595 = vmatpush1.bf16.msra.mxu0 0
        %1596 = vmatprep.subr.bf16.mxu0 0
        %1597 = vmatpush1.bf16.msra.mxu0 %v1580
        %1598 = vmatprep.subr.bf16.mxu0 0
        %1599 = vmatpush2.bf16.msra.mxu0 0
        %1600 = vmatprep.subr.bf16.mxu0 0
        %1601 = vmatpush2.bf16.msra.mxu0 0
        %1602 = vmatprep.subr.bf16.mxu0 0
        %1603 = vmatpush2.bf16.msra.mxu0 0
        %1604 = vmatprep.subr.bf16.mxu0 0
        %1605 = vmatpush2.bf16.msra.mxu0 0
        %1606 = vmatprep.subr.bf16.mxu0 0
        %1607 = vmatpush2.bf16.msra.mxu0 0
        %1608 = vmatprep.subr.bf16.mxu0 0
        %1609 = vmatpush2.bf16.msra.mxu0 0
        %1610 = vmatprep.subr.bf16.mxu0 0
        %1611 = vmatpush2.bf16.msra.mxu0 0
        %1612 = vmatprep.subr.bf16.mxu0 0
        %1613 = vmatpush2.bf16.msra.mxu0 0
        %1614 = vmatprep.mubr.bf16.mxu0 0
        %1615 = vmatmul.mubr.bf16.gmra.mxu0 %v1577
        %v1616 = vpop.f32.mrf.mxu0
        %v1617 = vadd.f32 0.0, %v1616
        %v1618 = vpop.f32.mrf.mxu0
        %v1619 = vpop.f32.mrf.mxu0
        %v1620 = vpop.f32.mrf.mxu0
        %1621 = vdwg.mxu0
        %v1622 = vrcp.pop %v1574
        %v1623 = vmul.f32 %v1617, %v1622
        %v1624 = vpack.c.bf16 %v1623, %v1623
        %1625 = vst.msk [vmem:[#allocation2] sm:$0xf] %vm846, %v1624
        %1627 = vrot.lane.b32.xlu0 %v1388, 120
        %v1628 = vpop.permute.xlu0 %1627
        %1630 = vrot.lane.b32.xlu0 %v1452, 120
        %v1631 = vpop.permute.xlu0 %1630
        %v1633 = vsel %vm739, %v1628, 0
        %v1636 = vsel %vm739, %v1631, 0
        %1638 = vmatprep.subr.bf16.mxu0 0
        %1639 = vmatpush1.bf16.xpose.msra.mxu0 0
        %1640 = vmatprep.subr.bf16.mxu0 0
        %1641 = vmatpush1.bf16.xpose.msra.mxu0 0
        %1642 = vmatprep.subr.bf16.mxu0 0
        %1643 = vmatpush1.bf16.xpose.msra.mxu0 0
        %1644 = vmatprep.subr.bf16.mxu0 0
        %1645 = vmatpush1.bf16.xpose.msra.mxu0 0
        %1646 = vmatprep.subr.bf16.mxu0 0
        %1647 = vmatpush1.bf16.xpose.msra.mxu0 0
        %1648 = vmatprep.subr.bf16.mxu0 0
        %1649 = vmatpush1.bf16.xpose.msra.mxu0 0
        %1650 = vmatprep.subr.bf16.mxu0 0
        %1651 = vmatpush1.bf16.xpose.msra.mxu0 0
        %1652 = vmatprep.subr.bf16.mxu0 0
        %1653 = vmatpush1.bf16.xpose.msra.mxu0 %v1636
        %1654 = vmatprep.subr.bf16.mxu0 0
        %1655 = vmatpush2.bf16.xpose.msra.mxu0 0
        %1656 = vmatprep.subr.bf16.mxu0 0
        %1657 = vmatpush2.bf16.xpose.msra.mxu0 0
        %1658 = vmatprep.subr.bf16.mxu0 0
        %1659 = vmatpush2.bf16.xpose.msra.mxu0 0
        %1660 = vmatprep.subr.bf16.mxu0 0
        %1661 = vmatpush2.bf16.xpose.msra.mxu0 0
        %1662 = vmatprep.subr.bf16.mxu0 0
        %1663 = vmatpush2.bf16.xpose.msra.mxu0 0
        %1664 = vmatprep.subr.bf16.mxu0 0
        %1665 = vmatpush2.bf16.xpose.msra.mxu0 0
        %1666 = vmatprep.subr.bf16.mxu0 0
        %1667 = vmatpush2.bf16.xpose.msra.mxu0 0
        %1668 = vmatprep.subr.bf16.mxu0 0
        %1669 = vmatpush2.bf16.xpose.msra.mxu0 0
        %1670 = vmatprep.mubr.bf16.mxu0 0
        %1671 = vmatmul.mubr.bf16.gmra.mxu0 %v1633
        %v1672 = vpop.f32.mrf.mxu0
        %v1673 = vadd.f32 %v1518, %v1672
        %v1674 = vpop.f32.mrf.mxu0
        %v1675 = vpop.f32.mrf.mxu0
        %v1676 = vpop.f32.mrf.mxu0
        %1677 = vdwg.mxu0
        %v1678 = vsel %vm739, %v1673, -inf
        %1679 = vmax.xlane.f32.xlu0 %v1678
        %v1680 = vpop.xlane.xlu0 %1679
        %v1681 = vsub.f32 %v1673, %v1680
        %v1682 = vmul.f32 %v1681, 1.442695
        %v1683 = vpow.pop %v1682
        %v1684 = vsel %vm739, %v1683, 0.0
        %1685 = vadd.xlane.f32.xlu0 %v1684
        %v1686 = vpop.xlane.xlu0 %1685
        %v1687 = vpack.c.bf16 %v1683, %v1683
        %1689 = vrot.lane.b32.xlu0 %v1513, 120
        %v1690 = vpop.permute.xlu0 %1689
        %v1692 = vsel %vm739, %v1687, 0
        %v1695 = vsel %vm799, %v1690, 0
        %1697 = vmatprep.subr.bf16.mxu0 0
        %1698 = vmatpush1.bf16.msra.mxu0 0
        %1699 = vmatprep.subr.bf16.mxu0 0
        %1700 = vmatpush1.bf16.msra.mxu0 0
        %1701 = vmatprep.subr.bf16.mxu0 0
        %1702 = vmatpush1.bf16.msra.mxu0 0
        %1703 = vmatprep.subr.bf16.mxu0 0
        %1704 = vmatpush1.bf16.msra.mxu0 0
        %1705 = vmatprep.subr.bf16.mxu0 0
        %1706 = vmatpush1.bf16.msra.mxu0 0
        %1707 = vmatprep.subr.bf16.mxu0 0
        %1708 = vmatpush1.bf16.msra.mxu0 0
        %1709 = vmatprep.subr.bf16.mxu0 0
        %1710 = vmatpush1.bf16.msra.mxu0 0
        %1711 = vmatprep.subr.bf16.mxu0 0
        %1712 = vmatpush1.bf16.msra.mxu0 %v1695
        %1713 = vmatprep.subr.bf16.mxu0 0
        %1714 = vmatpush2.bf16.msra.mxu0 0
        %1715 = vmatprep.subr.bf16.mxu0 0
        %1716 = vmatpush2.bf16.msra.mxu0 0
        %1717 = vmatprep.subr.bf16.mxu0 0
        %1718 = vmatpush2.bf16.msra.mxu0 0
        %1719 = vmatprep.subr.bf16.mxu0 0
        %1720 = vmatpush2.bf16.msra.mxu0 0
        %1721 = vmatprep.subr.bf16.mxu0 0
        %1722 = vmatpush2.bf16.msra.mxu0 0
        %1723 = vmatprep.subr.bf16.mxu0 0
        %1724 = vmatpush2.bf16.msra.mxu0 0
        %1725 = vmatprep.subr.bf16.mxu0 0
        %1726 = vmatpush2.bf16.msra.mxu0 0
        %1727 = vmatprep.subr.bf16.mxu0 0
        %1728 = vmatpush2.bf16.msra.mxu0 0
        %1729 = vmatprep.mubr.bf16.mxu0 0
        %1730 = vmatmul.mubr.bf16.gmra.mxu0 %v1692
        %v1731 = vpop.f32.mrf.mxu0
        %v1732 = vadd.f32 0.0, %v1731
        %v1733 = vpop.f32.mrf.mxu0
        %v1734 = vpop.f32.mrf.mxu0
        %v1735 = vpop.f32.mrf.mxu0
        %1736 = vdwg.mxu0
        %v1737 = vrcp.pop %v1686
        %v1738 = vmul.f32 %v1732, %v1737
        %v1739 = vpack.c.bf16 %v1738, %v1738
        %v1741 = vunpack.c.l.b16 %v1739
        %v1742 = vpack.c.b16 %v1741, %v1741
        %1743 = vrot.lane.b32.xlu0 %v1742, 8
        %v1744 = vpop.permute.xlu0 %1743
        %1746 = vst.msk [vmem:[#allocation2] sm:$0xf] %vm968, %v1744
        %1747 = vrot.lane.b32.xlu0 %v1388, 112
        %v1748 = vpop.permute.xlu0 %1747
        %1749 = vrot.lane.b32.xlu0 %v1452, 112
        %v1750 = vpop.permute.xlu0 %1749
        %v1752 = vsel %vm739, %v1748, 0
        %v1755 = vsel %vm739, %v1750, 0
        %1757 = vmatprep.subr.bf16.mxu0 0
        %1758 = vmatpush1.bf16.xpose.msra.mxu0 0
        %1759 = vmatprep.subr.bf16.mxu0 0
        %1760 = vmatpush1.bf16.xpose.msra.mxu0 0
        %1761 = vmatprep.subr.bf16.mxu0 0
        %1762 = vmatpush1.bf16.xpose.msra.mxu0 0
        %1763 = vmatprep.subr.bf16.mxu0 0
        %1764 = vmatpush1.bf16.xpose.msra.mxu0 0
        %1765 = vmatprep.subr.bf16.mxu0 0
        %1766 = vmatpush1.bf16.xpose.msra.mxu0 0
        %1767 = vmatprep.subr.bf16.mxu0 0
        %1768 = vmatpush1.bf16.xpose.msra.mxu0 0
        %1769 = vmatprep.subr.bf16.mxu0 0
        %1770 = vmatpush1.bf16.xpose.msra.mxu0 0
        %1771 = vmatprep.subr.bf16.mxu0 0
        %1772 = vmatpush1.bf16.xpose.msra.mxu0 %v1755
        %1773 = vmatprep.subr.bf16.mxu0 0
        %1774 = vmatpush2.bf16.xpose.msra.mxu0 0
        %1775 = vmatprep.subr.bf16.mxu0 0
        %1776 = vmatpush2.bf16.xpose.msra.mxu0 0
        %1777 = vmatprep.subr.bf16.mxu0 0
        %1778 = vmatpush2.bf16.xpose.msra.mxu0 0
        %1779 = vmatprep.subr.bf16.mxu0 0
        %1780 = vmatpush2.bf16.xpose.msra.mxu0 0
        %1781 = vmatprep.subr.bf16.mxu0 0
        %1782 = vmatpush2.bf16.xpose.msra.mxu0 0
        %1783 = vmatprep.subr.bf16.mxu0 0
        %1784 = vmatpush2.bf16.xpose.msra.mxu0 0
        %1785 = vmatprep.subr.bf16.mxu0 0
        %1786 = vmatpush2.bf16.xpose.msra.mxu0 0
        %1787 = vmatprep.subr.bf16.mxu0 0
        %1788 = vmatpush2.bf16.xpose.msra.mxu0 0
        %1789 = vmatprep.mubr.bf16.mxu0 0
        %1790 = vmatmul.mubr.bf16.gmra.mxu0 %v1752
        %v1791 = vpop.f32.mrf.mxu0
        %v1792 = vadd.f32 %v1518, %v1791
        %v1793 = vpop.f32.mrf.mxu0
        %v1794 = vpop.f32.mrf.mxu0
        %v1795 = vpop.f32.mrf.mxu0
        %1796 = vdwg.mxu0
        %v1797 = vsel %vm739, %v1792, -inf
        %1798 = vmax.xlane.f32.xlu0 %v1797
        %v1799 = vpop.xlane.xlu0 %1798
        %v1800 = vsub.f32 %v1792, %v1799
        %v1801 = vmul.f32 %v1800, 1.442695
        %v1802 = vpow.pop %v1801
        %v1803 = vsel %vm739, %v1802, 0.0
        %1804 = vadd.xlane.f32.xlu0 %v1803
        %v1805 = vpop.xlane.xlu0 %1804
        %v1806 = vpack.c.bf16 %v1802, %v1802
        %1807 = vrot.lane.b32.xlu0 %v1513, 112
        %v1808 = vpop.permute.xlu0 %1807
        %v1810 = vsel %vm739, %v1806, 0
        %v1813 = vsel %vm799, %v1808, 0
        %1815 = vmatprep.subr.bf16.mxu0 0
        %1816 = vmatpush1.bf16.msra.mxu0 0
        %1817 = vmatprep.subr.bf16.mxu0 0
        %1818 = vmatpush1.bf16.msra.mxu0 0
        %1819 = vmatprep.subr.bf16.mxu0 0
        %1820 = vmatpush1.bf16.msra.mxu0 0
        %1821 = vmatprep.subr.bf16.mxu0 0
        %1822 = vmatpush1.bf16.msra.mxu0 0
        %1823 = vmatprep.subr.bf16.mxu0 0
        %1824 = vmatpush1.bf16.msra.mxu0 0
        %1825 = vmatprep.subr.bf16.mxu0 0
        %1826 = vmatpush1.bf16.msra.mxu0 0
        %1827 = vmatprep.subr.bf16.mxu0 0
        %1828 = vmatpush1.bf16.msra.mxu0 0
        %1829 = vmatprep.subr.bf16.mxu0 0
        %1830 = vmatpush1.bf16.msra.mxu0 %v1813
        %1831 = vmatprep.subr.bf16.mxu0 0
        %1832 = vmatpush2.bf16.msra.mxu0 0
        %1833 = vmatprep.subr.bf16.mxu0 0
        %1834 = vmatpush2.bf16.msra.mxu0 0
        %1835 = vmatprep.subr.bf16.mxu0 0
        %1836 = vmatpush2.bf16.msra.mxu0 0
        %1837 = vmatprep.subr.bf16.mxu0 0
        %1838 = vmatpush2.bf16.msra.mxu0 0
        %1839 = vmatprep.subr.bf16.mxu0 0
        %1840 = vmatpush2.bf16.msra.mxu0 0
        %1841 = vmatprep.subr.bf16.mxu0 0
        %1842 = vmatpush2.bf16.msra.mxu0 0
        %1843 = vmatprep.subr.bf16.mxu0 0
        %1844 = vmatpush2.bf16.msra.mxu0 0
        %1845 = vmatprep.subr.bf16.mxu0 0
        %1846 = vmatpush2.bf16.msra.mxu0 0
        %1847 = vmatprep.mubr.bf16.mxu0 0
        %1848 = vmatmul.mubr.bf16.gmra.mxu0 %v1810
        %v1849 = vpop.f32.mrf.mxu0
        %v1850 = vadd.f32 0.0, %v1849
        %v1851 = vpop.f32.mrf.mxu0
        %v1852 = vpop.f32.mrf.mxu0
        %v1853 = vpop.f32.mrf.mxu0
        %1854 = vdwg.mxu0
        %v1855 = vrcp.pop %v1805
        %v1856 = vmul.f32 %v1850, %v1855
        %v1857 = vpack.c.bf16 %v1856, %v1856
        %v1859 = vunpack.c.l.b16 %v1857
        %v1860 = vpack.c.b16 %v1859, %v1859
        %1861 = vrot.lane.b32.xlu0 %v1860, 16
        %v1862 = vpop.permute.xlu0 %1861
        %1864 = vst.msk [vmem:[#allocation2] sm:$0xf] %vm1087, %v1862
        %1865 = vrot.lane.b32.xlu0 %v1388, 104
        %v1866 = vpop.permute.xlu0 %1865
        %1867 = vrot.lane.b32.xlu0 %v1452, 104
        %v1868 = vpop.permute.xlu0 %1867
        %v1870 = vsel %vm739, %v1866, 0
        %v1873 = vsel %vm739, %v1868, 0
        %1875 = vmatprep.subr.bf16.mxu0 0
        %1876 = vmatpush1.bf16.xpose.msra.mxu0 0
        %1877 = vmatprep.subr.bf16.mxu0 0
        %1878 = vmatpush1.bf16.xpose.msra.mxu0 0
        %1879 = vmatprep.subr.bf16.mxu0 0
        %1880 = vmatpush1.bf16.xpose.msra.mxu0 0
        %1881 = vmatprep.subr.bf16.mxu0 0
        %1882 = vmatpush1.bf16.xpose.msra.mxu0 0
        %1883 = vmatprep.subr.bf16.mxu0 0
        %1884 = vmatpush1.bf16.xpose.msra.mxu0 0
        %1885 = vmatprep.subr.bf16.mxu0 0
        %1886 = vmatpush1.bf16.xpose.msra.mxu0 0
        %1887 = vmatprep.subr.bf16.mxu0 0
        %1888 = vmatpush1.bf16.xpose.msra.mxu0 0
        %1889 = vmatprep.subr.bf16.mxu0 0
        %1890 = vmatpush1.bf16.xpose.msra.mxu0 %v1873
        %1891 = vmatprep.subr.bf16.mxu0 0
        %1892 = vmatpush2.bf16.xpose.msra.mxu0 0
        %1893 = vmatprep.subr.bf16.mxu0 0
        %1894 = vmatpush2.bf16.xpose.msra.mxu0 0
        %1895 = vmatprep.subr.bf16.mxu0 0
        %1896 = vmatpush2.bf16.xpose.msra.mxu0 0
        %1897 = vmatprep.subr.bf16.mxu0 0
        %1898 = vmatpush2.bf16.xpose.msra.mxu0 0
        %1899 = vmatprep.subr.bf16.mxu0 0
        %1900 = vmatpush2.bf16.xpose.msra.mxu0 0
        %1901 = vmatprep.subr.bf16.mxu0 0
        %1902 = vmatpush2.bf16.xpose.msra.mxu0 0
        %1903 = vmatprep.subr.bf16.mxu0 0
        %1904 = vmatpush2.bf16.xpose.msra.mxu0 0
        %1905 = vmatprep.subr.bf16.mxu0 0
        %1906 = vmatpush2.bf16.xpose.msra.mxu0 0
        %1907 = vmatprep.mubr.bf16.mxu0 0
        %1908 = vmatmul.mubr.bf16.gmra.mxu0 %v1870
        %v1909 = vpop.f32.mrf.mxu0
        %v1910 = vadd.f32 %v1518, %v1909
        %v1911 = vpop.f32.mrf.mxu0
        %v1912 = vpop.f32.mrf.mxu0
        %v1913 = vpop.f32.mrf.mxu0
        %1914 = vdwg.mxu0
        %v1915 = vsel %vm739, %v1910, -inf
        %1916 = vmax.xlane.f32.xlu0 %v1915
        %v1917 = vpop.xlane.xlu0 %1916
        %v1918 = vsub.f32 %v1910, %v1917
        %v1919 = vmul.f32 %v1918, 1.442695
        %v1920 = vpow.pop %v1919
        %v1921 = vsel %vm739, %v1920, 0.0
        %1922 = vadd.xlane.f32.xlu0 %v1921
        %v1923 = vpop.xlane.xlu0 %1922
        %v1924 = vpack.c.bf16 %v1920, %v1920
        %1925 = vrot.lane.b32.xlu0 %v1513, 104
        %v1926 = vpop.permute.xlu0 %1925
        %v1928 = vsel %vm739, %v1924, 0
        %v1931 = vsel %vm799, %v1926, 0
        %1933 = vmatprep.subr.bf16.mxu0 0
        %1934 = vmatpush1.bf16.msra.mxu0 0
        %1935 = vmatprep.subr.bf16.mxu0 0
        %1936 = vmatpush1.bf16.msra.mxu0 0
        %1937 = vmatprep.subr.bf16.mxu0 0
        %1938 = vmatpush1.bf16.msra.mxu0 0
        %1939 = vmatprep.subr.bf16.mxu0 0
        %1940 = vmatpush1.bf16.msra.mxu0 0
        %1941 = vmatprep.subr.bf16.mxu0 0
        %1942 = vmatpush1.bf16.msra.mxu0 0
        %1943 = vmatprep.subr.bf16.mxu0 0
        %1944 = vmatpush1.bf16.msra.mxu0 0
        %1945 = vmatprep.subr.bf16.mxu0 0
        %1946 = vmatpush1.bf16.msra.mxu0 0
        %1947 = vmatprep.subr.bf16.mxu0 0
        %1948 = vmatpush1.bf16.msra.mxu0 %v1931
        %1949 = vmatprep.subr.bf16.mxu0 0
        %1950 = vmatpush2.bf16.msra.mxu0 0
        %1951 = vmatprep.subr.bf16.mxu0 0
        %1952 = vmatpush2.bf16.msra.mxu0 0
        %1953 = vmatprep.subr.bf16.mxu0 0
        %1954 = vmatpush2.bf16.msra.mxu0 0
        %1955 = vmatprep.subr.bf16.mxu0 0
        %1956 = vmatpush2.bf16.msra.mxu0 0
        %1957 = vmatprep.subr.bf16.mxu0 0
        %1958 = vmatpush2.bf16.msra.mxu0 0
        %1959 = vmatprep.subr.bf16.mxu0 0
        %1960 = vmatpush2.bf16.msra.mxu0 0
        %1961 = vmatprep.subr.bf16.mxu0 0
        %1962 = vmatpush2.bf16.msra.mxu0 0
        %1963 = vmatprep.subr.bf16.mxu0 0
        %1964 = vmatpush2.bf16.msra.mxu0 0
        %1965 = vmatprep.mubr.bf16.mxu0 0
        %1966 = vmatmul.mubr.bf16.gmra.mxu0 %v1928
        %v1967 = vpop.f32.mrf.mxu0
        %v1968 = vadd.f32 0.0, %v1967
        %v1969 = vpop.f32.mrf.mxu0
        %v1970 = vpop.f32.mrf.mxu0
        %v1971 = vpop.f32.mrf.mxu0
        %1972 = vdwg.mxu0
        %v1973 = vrcp.pop %v1923
        %v1974 = vmul.f32 %v1968, %v1973
        %v1975 = vpack.c.bf16 %v1974, %v1974
        %v1977 = vunpack.c.l.b16 %v1975
        %v1978 = vpack.c.b16 %v1977, %v1977
        %1979 = vrot.lane.b32.xlu0 %v1978, 24
        %v1980 = vpop.permute.xlu0 %1979
        %1982 = vst.msk [vmem:[#allocation2] sm:$0xf] %vm1206, %v1980
        %v1983 = vld [vmem:[#allocation2] sm:$0xf]
        %s1984 = scalar_lea.vmem %s5, 7
        %v1985 = vld [vmem:[%s1984] sm:$0x1]
        %v1987 = vlaneseq
        %v1988 = vshrl.u32 %v1987, 7
        %v1989 = vsub.s32 0, %v1988
        %v1990 = vrot.slane %v1985, %v1989
        %v1996 = vunpack.c.l.b16 %v1321
        %v1997 = vunpack.c.l.b16 %v1322
        %v1998 = vunpack.c.l.b16 %v1323
        %v1999 = vunpack.c.l.b16 %v1324
        %v2000 = vpack.c.b16 %v1997, %v1996
        %v2001 = vpack.c.b16 %v1999, %v1998
        %v2005 = vsel %vm502, %v1983, 0
        %2007 = vmatprep.subr.bf16.mxu0 0
        %2008 = vmatpush1.bf16.msra.mxu0 0
        %2009 = vmatprep.subr.bf16.mxu0 0
        %2010 = vmatpush1.bf16.msra.mxu0 0
        %2011 = vmatprep.subr.bf16.mxu0 0
        %2012 = vmatpush1.bf16.msra.mxu0 0
        %2013 = vmatprep.subr.bf16.mxu0 0
        %2014 = vmatpush1.bf16.msra.mxu0 0
        %2015 = vmatprep.subr.bf16.mxu0 0
        %2016 = vmatpush1.bf16.msra.mxu0 0
        %2017 = vmatprep.subr.bf16.mxu0 0
        %2018 = vmatpush1.bf16.msra.mxu0 0
        %2019 = vmatprep.subr.bf16.mxu0 0
        %2020 = vmatpush1.bf16.msra.mxu0 %v2001
        %2021 = vmatprep.subr.bf16.mxu0 0
        %2022 = vmatpush1.bf16.msra.mxu0 %v2000
        %2023 = vmatprep.subr.bf16.mxu0 0
        %2024 = vmatpush2.bf16.msra.mxu0 0
        %2025 = vmatprep.subr.bf16.mxu0 0
        %2026 = vmatpush2.bf16.msra.mxu0 0
        %2027 = vmatprep.subr.bf16.mxu0 0
        %2028 = vmatpush2.bf16.msra.mxu0 0
        %2029 = vmatprep.subr.bf16.mxu0 0
        %2030 = vmatpush2.bf16.msra.mxu0 0
        %2031 = vmatprep.subr.bf16.mxu0 0
        %2032 = vmatpush2.bf16.msra.mxu0 0
        %2033 = vmatprep.subr.bf16.mxu0 0
        %2034 = vmatpush2.bf16.msra.mxu0 0
        %2035 = vmatprep.subr.bf16.mxu0 0
        %2036 = vmatpush2.bf16.msra.mxu0 0
        %2037 = vmatprep.subr.bf16.mxu0 0
        %2038 = vmatpush2.bf16.msra.mxu0 0
        %2039 = vmatprep.mubr.bf16.mxu0 0
        %2040 = vmatmul.mubr.bf16.gmra.mxu0 %v2005
        %v2041 = vpop.f32.mrf.mxu0
        %v2042 = vadd.f32 %v1990, %v2041
        %v2043 = vpop.f32.mrf.mxu0
        %v2044 = vpop.f32.mrf.mxu0
        %v2045 = vpop.f32.mrf.mxu0
        %2046 = vdwg.mxu0
        %v2047 = vadd.f32 %v1272, %v2042
        %v2048 = vsel %vm502, %v2047, 0.0
        %2049 = vadd.xlane.f32.xlu0 %v2048
        %v2050 = vpop.xlane.xlu0 %2049
        %v2051 = vmul.f32 %v2050, %v506
        %v2052 = vsub.f32 %v2047, %v2051
        %v2053 = vmul.f32 %v2052, %v2052
        %v2054 = vsel %vm502, %v2053, 0.0
        %2055 = vadd.xlane.f32.xlu0 %v2054
        %v2056 = vpop.xlane.xlu0 %2055
        %v2057 = vmul.f32 %v2056, 0.032258064
        %v2058 = vadd.f32 %v2057, 1e-06
        %v2059 = vrsqrt.pop %v2058
        %s2060 = scalar_lea.vmem %s10, 4
        %v2061 = vld [vmem:[%s2060] sm:$0x1]
        %v2062 = vmul.f32 %v2052, %v2059
        %v2064 = vlaneseq
        %v2065 = vshrl.u32 %v2064, 7
        %v2066 = vsub.s32 0, %v2065
        %v2067 = vrot.slane %v2061, %v2066
        %v2069 = vmul.f32 %v2067, %v2062
        %s2070 = scalar_lea.vmem %s10, 5
        %v2071 = vld [vmem:[%s2070] sm:$0x1]
        %v2073 = vlaneseq
        %v2074 = vshrl.u32 %v2073, 7
        %v2075 = vsub.s32 0, %v2074
        %v2076 = vrot.slane %v2071, %v2075
        %v2078 = vadd.f32 %v2069, %v2076
        %v2079 = vpack.c.bf16 %v2078, %v2078
        %v2080 = vld [vmem:[%s6] sm:$0xf]
        %v2081 = vld [vmem:[%s6 + $0x4] sm:$0xf]
        %v2082 = vld [vmem:[%s6 + $0x8] sm:$0xf]
        %v2083 = vld [vmem:[%s6 + $0xc] sm:$0xf]
        %v2084 = vld [vmem:[%s7] sm:$0x1]
        %v2086 = vlaneseq
        %v2087 = vshrl.u32 %v2086, 7
        %v2088 = vsub.s32 0, %v2087
        %v2089 = vrot.slane %v2084, %v2088
        %v2095 = vunpack.c.l.b16 %v2080
        %v2096 = vunpack.c.l.b16 %v2081
        %v2097 = vunpack.c.l.b16 %v2082
        %v2098 = vunpack.c.l.b16 %v2083
        %v2099 = vpack.c.b16 %v2096, %v2095
        %v2100 = vpack.c.b16 %v2098, %v2097
        %v2104 = vsel %vm502, %v2079, 0
        %2106 = vmatprep.subr.bf16.mxu0 0
        %2107 = vmatpush1.bf16.msra.mxu0 0
        %2108 = vmatprep.subr.bf16.mxu0 0
        %2109 = vmatpush1.bf16.msra.mxu0 0
        %2110 = vmatprep.subr.bf16.mxu0 0
        %2111 = vmatpush1.bf16.msra.mxu0 0
        %2112 = vmatprep.subr.bf16.mxu0 0
        %2113 = vmatpush1.bf16.msra.mxu0 0
        %2114 = vmatprep.subr.bf16.mxu0 0
        %2115 = vmatpush1.bf16.msra.mxu0 0
        %2116 = vmatprep.subr.bf16.mxu0 0
        %2117 = vmatpush1.bf16.msra.mxu0 0
        %2118 = vmatprep.subr.bf16.mxu0 0
        %2119 = vmatpush1.bf16.msra.mxu0 %v2100
        %2120 = vmatprep.subr.bf16.mxu0 0
        %2121 = vmatpush1.bf16.msra.mxu0 %v2099
        %2122 = vmatprep.subr.bf16.mxu0 0
        %2123 = vmatpush2.bf16.msra.mxu0 0
        %2124 = vmatprep.subr.bf16.mxu0 0
        %2125 = vmatpush2.bf16.msra.mxu0 0
        %2126 = vmatprep.subr.bf16.mxu0 0
        %2127 = vmatpush2.bf16.msra.mxu0 0
        %2128 = vmatprep.subr.bf16.mxu0 0
        %2129 = vmatpush2.bf16.msra.mxu0 0
        %2130 = vmatprep.subr.bf16.mxu0 0
        %2131 = vmatpush2.bf16.msra.mxu0 0
        %2132 = vmatprep.subr.bf16.mxu0 0
        %2133 = vmatpush2.bf16.msra.mxu0 0
        %2134 = vmatprep.subr.bf16.mxu0 0
        %2135 = vmatpush2.bf16.msra.mxu0 0
        %2136 = vmatprep.subr.bf16.mxu0 0
        %2137 = vmatpush2.bf16.msra.mxu0 0
        %2138 = vmatprep.mubr.bf16.mxu0 0
        %2139 = vmatmul.mubr.bf16.gmra.mxu0 %v2104
        %v2140 = vpop.f32.mrf.mxu0
        %v2141 = vadd.f32 %v2089, %v2140
        %v2142 = vpop.f32.mrf.mxu0
        %v2143 = vpop.f32.mrf.mxu0
        %v2144 = vpop.f32.mrf.mxu0
        %2145 = vdwg.mxu0
        %v2146 = vmax.f32 %v2141, 0.0
        %v2147 = vpack.c.bf16 %v2146, %v2146
        %v2148 = vld [vmem:[%s8] sm:$0xf]
        %v2149 = vld [vmem:[%s8 + $0x4] sm:$0xf]
        %v2150 = vld [vmem:[%s8 + $0x8] sm:$0xf]
        %v2151 = vld [vmem:[%s8 + $0xc] sm:$0xf]
        %v2152 = vld [vmem:[%s8 + $0x10] sm:$0xf]
        %v2153 = vld [vmem:[%s8 + $0x14] sm:$0xf]
        %v2154 = vld [vmem:[%s8 + $0x18] sm:$0xf]
        %v2155 = vld [vmem:[%s8 + $0x1c] sm:$0xf]
        %v2156 = vld [vmem:[%s9] sm:$0x1]
        %v2158 = vlaneseq
        %v2159 = vshrl.u32 %v2158, 7
        %v2160 = vsub.s32 0, %v2159
        %v2161 = vrot.slane %v2156, %v2160
        %v2171 = vunpack.c.l.b16 %v2148
        %v2172 = vunpack.c.l.b16 %v2149
        %v2173 = vunpack.c.l.b16 %v2150
        %v2174 = vunpack.c.l.b16 %v2151
        %v2175 = vunpack.c.l.b16 %v2152
        %v2176 = vunpack.c.l.b16 %v2153
        %v2177 = vunpack.c.l.b16 %v2154
        %v2178 = vunpack.c.l.b16 %v2155
        %v2179 = vpack.c.b16 %v2172, %v2171
        %v2180 = vpack.c.b16 %v2174, %v2173
        %v2181 = vpack.c.b16 %v2176, %v2175
        %v2182 = vpack.c.b16 %v2178, %v2177
        %vm2187 = vcmask 523264
        %v2189 = vsel %vm2187, %v2147, 0
        %2191 = vmatprep.subr.bf16.mxu0 0
        %2192 = vmatpush1.bf16.msra.mxu0 0
        %2193 = vmatprep.subr.bf16.mxu0 0
        %2194 = vmatpush1.bf16.msra.mxu0 0
        %2195 = vmatprep.subr.bf16.mxu0 0
        %2196 = vmatpush1.bf16.msra.mxu0 0
        %2197 = vmatprep.subr.bf16.mxu0 0
        %2198 = vmatpush1.bf16.msra.mxu0 0
        %2199 = vmatprep.subr.bf16.mxu0 0
        %2200 = vmatpush1.bf16.msra.mxu0 %v2182
        %2201 = vmatprep.subr.bf16.mxu0 0
        %2202 = vmatpush1.bf16.msra.mxu0 %v2181
        %2203 = vmatprep.subr.bf16.mxu0 0
        %2204 = vmatpush1.bf16.msra.mxu0 %v2180
        %2205 = vmatprep.subr.bf16.mxu0 0
        %2206 = vmatpush1.bf16.msra.mxu0 %v2179
        %2207 = vmatprep.subr.bf16.mxu0 0
        %2208 = vmatpush2.bf16.msra.mxu0 0
        %2209 = vmatprep.subr.bf16.mxu0 0
        %2210 = vmatpush2.bf16.msra.mxu0 0
        %2211 = vmatprep.subr.bf16.mxu0 0
        %2212 = vmatpush2.bf16.msra.mxu0 0
        %2213 = vmatprep.subr.bf16.mxu0 0
        %2214 = vmatpush2.bf16.msra.mxu0 0
        %2215 = vmatprep.subr.bf16.mxu0 0
        %2216 = vmatpush2.bf16.msra.mxu0 0
        %2217 = vmatprep.subr.bf16.mxu0 0
        %2218 = vmatpush2.bf16.msra.mxu0 0
        %2219 = vmatprep.subr.bf16.mxu0 0
        %2220 = vmatpush2.bf16.msra.mxu0 0
        %2221 = vmatprep.subr.bf16.mxu0 0
        %2222 = vmatpush2.bf16.msra.mxu0 0
        %2223 = vmatprep.mubr.bf16.mxu0 0
        %2224 = vmatmul.mubr.bf16.gmra.mxu0 %v2189
        %v2225 = vpop.f32.mrf.mxu0
        %v2226 = vadd.f32 %v2161, %v2225
        %v2227 = vpop.f32.mrf.mxu0
        %v2228 = vpop.f32.mrf.mxu0
        %v2229 = vpop.f32.mrf.mxu0
        %2230 = vdwg.mxu0
        %v2231 = vadd.f32 %v2047, %v2226
        %2232 = vst.msk [vmem:[%s472] sm:$0xff] %vm502, %v2231
        %s2233 = sand.u32 %s290, 1
        %s2234 = scalar_lea.sflag [#allocation5], %s2233
        %s2235 = sand.u32 %s290, 1
        %s2236 = smul.addr %s2235, 8
        %s2237 = scalar_lea.vmem [#allocation9], %s2236
        // Predicated region
        $region77: #{tpu_custom_call.1} parent=63 // pred_check
          %p2238 = pneg %p300
        $region78: #{tpu_custom_call.1} parent=63 // pred_check_branch
          %2240 = sbr.rel (%p2238) target = $region80
        $region79: #{tpu_custom_call.1} parent=63 // pred_region
          %s2242 = ssub.s32 128, 128
          %2243 = vsyncadd %s2234, %s2242
          %s2244 = smul.addr %s31, 128
          %s2245 = scalar_lea.hbm %s11, %s2244
          %s2247 = sshll.u32 %s2237, 4
          %s2248 = int_to_ptr.vmem [resolvable:$true] %s2247
          %2250 = dma.vmem_to_hbm [thread:$0]  %s2248, 128, %s2245, %s2234
        $region80: #{tpu_custom_call.1} parent=63 // pred_fallthru
          _
      $region64: #{tpu_custom_call.1} parent=5 // pred_fallthru
        _
      %p2251 = scmp.le.s32.totalorder 2, %s26
      // Predicated region
      $region81: #{tpu_custom_call.1} parent=5 // pred_check
        %p2252 = pneg %p2251
      $region82: #{tpu_custom_call.1} parent=5 // pred_check_branch
        %2254 = sbr.rel (%p2252) target = $region84
      $region83: #{tpu_custom_call.1} parent=5 // pred_region
        %s2255 = ssub.s32 %s26, 2
        // Predicated region
        $region85: #{tpu_custom_call.1} parent=83 // pred_check
          %p2256 = pneg %p306
        $region86: #{tpu_custom_call.1} parent=83 // pred_check_branch
          %2258 = sbr.rel (%p2256) target = $region88
        $region87: #{tpu_custom_call.1} parent=83 // pred_region
          %s2259 = sand.u32 %s291, 1
          %s2260 = scalar_lea.sflag [#allocation5], %s2259
          %s2261 = sand.u32 %s291, 1
          %s2262 = smul.addr %s2261, 8
          %s2263 = scalar_lea.vmem [#allocation9], %s2262
          %2264 = dma.done %s2260, 128
        $region88: #{tpu_custom_call.1} parent=83 // pred_fallthru
          _
      $region84: #{tpu_custom_call.1} parent=5 // pred_fallthru
        _
    $region6: #{tpu_custom_call.1} parent=1 // loop_footer
      %s30 = sadd.s32 1, %s26
    $region7: #{tpu_custom_call.1} parent=1 // loop_footer_branch
      %25 = sbr.rel target = $region3
    $region8: #{tpu_custom_call.1} parent=1 // loop_exit
      _
    %2265 = vsyncpa [#allocation4], 1
    %s2266 = scalar_lea.sflag [#allocation4], 1
    %2267 = vsyncpa %s2266, 1
    %2268 = vsyncpa [#allocation7], 1
    %s2269 = scalar_lea.sflag [#allocation7], 1
    %2270 = vsyncpa %s2269, 1
    %2271 = vsyncpa [#allocation5], 1
    %s2272 = scalar_lea.sflag [#allocation5], 1
    %2273 = vsyncpa %s2272, 1

</llo_original>
